<compile_context>
chip_gen: v6e
topology: v6e:2x2x1
jax: 0.10.0
libtpu: 0.0.40
codegen_flags: <defaults>
</compile_context>

<pallas_src>
import functools
import math

import jax
import jax.numpy as jnp
from jax import lax
from jax.experimental import pallas as pl
from jax.experimental.pallas import tpu as pltpu


def _co_attention_kernel(s1_ref, s2_ref, mask_ref,
                         wq_ref, bq_ref, wkv_ref, bkv_ref,
                         ctx_ref, amap_ref,
                         kT_scr, v_scr, q_scr, ctx_scr,
                         *, num_heads, head_size, group):
    H = num_heads * head_size
    q_tile = s1_ref.shape[1]
    S2 = s2_ref.shape[1]
    n_groups = num_heads // group
    qi = pl.program_id(1)

    # ---- K / V projections: once per batch element (the q-tile axis is the
    # innermost "arbitrary" axis, so the scratch persists across it).
    # K is stored pre-transposed (H, S2) and V head-major (nh, S2, d): all
    # relayout work happens ONCE here instead of per head per q-tile.
    @pl.when(qi == 0)
    def _():
        x2 = s2_ref[0]                                              # (S2, H)
        kv = jnp.dot(x2, wkv_ref[...],
                     preferred_element_type=jnp.float32) + bkv_ref[...]
        kT_scr[...] = jnp.transpose(kv[:, :H]).astype(kT_scr.dtype)  # (H, S2)
        for h in range(num_heads):
            lo = H + h * head_size
            v_scr[h] = kv[:, lo:lo + head_size].astype(v_scr.dtype)

    # ---- Q projection (1/sqrt(d) folded into wq/bq by the wrapper), stored
    # head-major so the head loop below only does cheap leading-index reads.
    x1 = s1_ref[0]                                                  # (q_tile, H)
    q = jnp.dot(x1, wq_ref[...],
                preferred_element_type=jnp.float32) + bq_ref[...]
    qc = q.astype(q_scr.dtype)
    for h in range(num_heads):
        q_scr[h] = qc[:, h * head_size:(h + 1) * head_size]

    # ---- Hoisted mask broadcast (used num_heads + 1 times below).
    mask = jnp.broadcast_to(mask_ref[0], (q_tile, S2)).astype(jnp.float32)

    # ---- Mean-over-heads pre-softmax map collapses to one full-depth (K = H)
    # MXU matmul:  mean_h(q_h k_h^T)/sqrt(d) + mask == (q_scaled @ K^T)/nh + mask.
    # (If profiling shows the MXU issue slot binding, this could instead be
    # accumulated from the per-head scores on the VPU.)
    amap = jnp.dot(qc, kT_scr[...], preferred_element_type=jnp.float32)
    amap_ref[0] = (amap * (1.0 / num_heads) + mask).astype(amap_ref.dtype)

    # ---- Per-head scaled-dot-product attention, looped over head groups so
    # live ranges stay bounded; each group's context is one leading-index store.
    def group_body(grp, carry):
        parts = []
        for j in range(group):
            h = grp * group + j
            koff = h * head_size
            if not isinstance(koff, int):
                koff = pl.multiple_of(koff, head_size)
            qh = q_scr[h]                                    # (q_tile, d)
            khT = kT_scr[pl.ds(koff, head_size), :]          # (d, S2) sublane slice
            vh = v_scr[h]                                    # (S2, d)

            scores = jnp.dot(qh, khT,
                             preferred_element_type=jnp.float32) + mask
            m = jnp.max(scores, axis=-1, keepdims=True)
            e = jnp.exp(scores - m)
            inv = pl.reciprocal(jnp.sum(e, axis=-1, keepdims=True), approx=True)
            probs = (e * inv).astype(vh.dtype)
            # TODO(synk): attention-probs dropout is identity at inference; no RNG.
            parts.append(jnp.dot(probs, vh,
                                 preferred_element_type=jnp.float32))
        ctx_scr[grp] = parts[0] if group == 1 else jnp.concatenate(parts, axis=-1)
        return carry

    if n_groups == 1:
        group_body(0, 0)
    else:
        lax.fori_loop(0, n_groups, group_body, 0, unroll=2)

    # ---- Assemble the context from 128-lane-aligned group slabs; one dense store.
    if n_groups == 1:
        ctx = ctx_scr[0]
    else:
        ctx = jnp.concatenate([ctx_scr[i] for i in range(n_groups)], axis=-1)
    ctx_ref[0] = ctx.astype(ctx_ref.dtype)


def bert_co_attention(s1_hidden, s2_hidden, s2_attention_mask, params, num_heads,
                      *, compute_dtype=jnp.bfloat16, amap_dtype=jnp.float32,
                      q_tile=None):
    """s1_hidden: (B, S1, H); s2_hidden: (B, S2, H);
    s2_attention_mask: (B, 1, 1, S2) additive mask.
    params: wq/wk/wv (H, H) (= torch weight.T); bq/bk/bv (H,).
    compute_dtype: MXU-input dtype (bf16 by default on all generations; all
    accumulation stays f32). amap_dtype: dtype of the returned attention map
    (bf16 relieves the v5e HBM writeback roofline)."""
    B, S1, H = s1_hidden.shape
    _, S2, _ = s2_hidden.shape
    assert H % num_heads == 0
    head_size = H // num_heads
    scale = 1.0 / math.sqrt(head_size)

    # Head grouping for context stores: group*head_size == 128 lanes when
    # possible (e.g. 2 heads of 64) so every context slab is unmasked.
    if head_size % 128 == 0 or 128 % head_size != 0:
        group = 1
    else:
        group = min(num_heads, 128 // head_size)
        while num_heads % group != 0:
            group -= 1
    n_groups = num_heads // group

    try:
        vmem_cap = int(pltpu.get_tpu_info().vmem_capacity_bytes)
    except Exception:
        vmem_cap = 64 * 1024 * 1024          # v7x: smallest VMEM per TensorCore

    cbytes = jnp.dtype(compute_dtype).itemsize
    abytes = jnp.dtype(amap_dtype).itemsize
    _lane = lambda n: -(-n // 128) * 128
    _sub = lambda n: -(-n // 8) * 8

    def _vmem_needed(qt):
        """Estimated resident VMEM: pipeline buffers + scratch + f32 temporaries."""
        nq_ = S1 // qt
        b = 2 * qt * H * cbytes                                   # s1 (x2 buffers)
        b += (1 if nq_ > 1 else 2) * _sub(S2) * H * cbytes        # s2
        b += 2 * 8 * _lane(S2) * 4                                # mask
        b += 3 * H * H * cbytes + 3 * _lane(H) * 4                # wq|wkv + biases (x1)
        b += 2 * qt * H * 4                                       # ctx out (f32)
        b += 2 * qt * _lane(S2) * abytes                          # amap out
        b += H * _lane(S2) * cbytes                               # K^T scratch
        b += num_heads * _sub(S2) * _lane(head_size) * cbytes     # V head-major
        b += num_heads * qt * _lane(head_size) * cbytes           # Q head-major
        b += n_groups * qt * _lane(group * head_size) * 4         # ctx group scratch
        b += (S2 * 2 * H + qt * H + (1 + 2 * group) * qt * _lane(S2)) * 4  # temps
        return int(b * 1.25) + (2 << 20)

    # Query-tile auto-pick: prefer the full sequence (<= 1024 rows) or the
    # largest nice divisor; only tile down if the footprint exceeds VMEM.
    if q_tile is None:
        cands = [S1] if S1 <= 1024 else []
        cands += [t for t in (1024, 768, 512, 384, 256, 128)
                  if t < S1 and S1 % t == 0 and t not in cands]
        if not cands:
            cands = [S1]
        q_tile = cands[-1]
        for t in cands:
            if _vmem_needed(t) <= vmem_cap:
                q_tile = t
                break
    assert S1 % q_tile == 0, "q_tile must divide S1"
    nq = S1 // q_tile
    vmem_limit = int(min(max(_vmem_needed(q_tile), 32 * 1024 * 1024), vmem_cap))

    mask = s2_attention_mask.reshape(B, 1, S2).astype(jnp.float32)

    # Fold the 1/sqrt(d) score scaling into the query projection and fuse the
    # K|V projections into one (H, 2H) matmul. Biases stay f32 (added after the
    # f32-accumulated matmul).
    wq = (params["wq"] * scale).astype(compute_dtype)
    bq = (params["bq"] * scale).reshape(1, H).astype(jnp.float32)
    wkv = jnp.concatenate([params["wk"], params["wv"]], axis=1).astype(compute_dtype)
    bkv = jnp.concatenate([params["bk"], params["bv"]]).reshape(1, 2 * H).astype(jnp.float32)

    s1c = s1_hidden.astype(compute_dtype)
    s2c = s2_hidden.astype(compute_dtype)

    kernel = functools.partial(_co_attention_kernel, num_heads=num_heads,
                               head_size=head_size, group=group)

    out_shape = (jax.ShapeDtypeStruct((B, S1, H), jnp.float32),
                 jax.ShapeDtypeStruct((B, S1, S2), amap_dtype))
    out_specs = [
        pl.BlockSpec((1, q_tile, H), lambda b, qi: (b, qi, 0)),    # context
        pl.BlockSpec((1, q_tile, S2), lambda b, qi: (b, qi, 0)),   # attention map
    ]
    scratch_shapes = [
        pltpu.VMEM((H, S2), compute_dtype),                         # K^T
        pltpu.VMEM((num_heads, S2, head_size), compute_dtype),      # V head-major
        pltpu.VMEM((num_heads, q_tile, head_size), compute_dtype),  # Q head-major
        pltpu.VMEM((n_groups, q_tile, group * head_size), jnp.float32),  # ctx groups
    ]

    def _make_call(single_buffer_consts):
        def _const(shape, imap):
            # Grid-constant operands: single-buffer to halve their VMEM cost.
            if single_buffer_consts:
                return pl.BlockSpec(shape, imap, pipeline_mode=pl.Buffered(1))
            return pl.BlockSpec(shape, imap)

        if single_buffer_consts and nq > 1:
            s2_spec = pl.BlockSpec((1, S2, H), lambda b, qi: (b, 0, 0),
                                   pipeline_mode=pl.Buffered(1))
        else:
            s2_spec = pl.BlockSpec((1, S2, H), lambda b, qi: (b, 0, 0))

        in_specs = [
            pl.BlockSpec((1, q_tile, H), lambda b, qi: (b, qi, 0)),   # s1
            s2_spec,                                                  # s2
            pl.BlockSpec((1, 1, S2), lambda b, qi: (b, 0, 0)),        # mask (tiny)
            _const((H, H), lambda b, qi: (0, 0)),                     # wq (pre-scaled)
            _const((1, H), lambda b, qi: (0, 0)),                     # bq (pre-scaled)
            _const((H, 2 * H), lambda b, qi: (0, 0)),                 # wk|wv fused
            _const((1, 2 * H), lambda b, qi: (0, 0)),                 # bk|bv fused
        ]
        return pl.pallas_call(
            kernel,
            out_shape=out_shape,
            grid_spec=pltpu.PrefetchScalarGridSpec(
                num_scalar_prefetch=0,
                grid=(B, nq),                    # batch parallel, q-tiles inner
                in_specs=in_specs,
                out_specs=out_specs,
                scratch_shapes=scratch_shapes),
            compiler_params=pltpu.CompilerParams(
                dimension_semantics=("parallel", "arbitrary"),
                vmem_limit_bytes=vmem_limit),
        )

    args = (s1c, s2c, mask, wq, bq, wkv, bkv)
    try:
        return _make_call(True)(*args)
    except Exception:
        # TODO(synk): this jax build rejected pipeline_mode=pl.Buffered(1);
        # fall back to default double-buffering of the grid-constant operands.
        return _make_call(False)(*args)


def _reference(s1, s2, mask, params, num_heads):
    """Pure-JAX reference mirroring the PyTorch forward."""
    B, S1, H = s1.shape
    S2 = s2.shape[1]
    d = H // num_heads
    q = s1 @ params["wq"] + params["bq"]
    k = s2 @ params["wk"] + params["bk"]
    v = s2 @ params["wv"] + params["bv"]
    split = lambda x, S: x.reshape(B, S, num_heads, d).transpose(0, 2, 1, 3)
    qh, kh, vh = split(q, S1), split(k, S2), split(v, S2)
    scores = jnp.einsum("bhqd,bhkd->bhqk", qh, kh) / math.sqrt(d)
    scores = scores + mask  # (B,1,1,S2) broadcasts
    amap = jnp.mean(scores, axis=1)
    probs = jax.nn.softmax(scores, axis=-1)
    ctx = jnp.einsum("bhqk,bhkd->bhqd", probs, vh)
    ctx = ctx.transpose(0, 2, 1, 3).reshape(B, S1, H)
    return ctx, amap


if __name__ == "__main__":
    def _run_case(B, S1, S2, H, NUM_HEADS, **kw):
        key = jax.random.PRNGKey(0)
        ks = jax.random.split(key, 8)
        s1 = jax.random.normal(ks[0], (B, S1, H), jnp.float32)
        s2 = jax.random.normal(ks[1], (B, S2, H), jnp.float32)
        # BERT-style additive mask: 0 for attend, -10000 for masked positions.
        keep = (jax.random.uniform(ks[2], (B, 1, 1, S2)) > 0.2).astype(jnp.float32)
        mask = (1.0 - keep) * -10000.0
        params = {
            "wq": 0.02 * jax.random.normal(ks[3], (H, H), jnp.float32),
            "wk": 0.02 * jax.random.normal(ks[4], (H, H), jnp.float32),
            "wv": 0.02 * jax.random.normal(ks[5], (H, H), jnp.float32),
            "bq": 0.01 * jax.random.normal(ks[6], (H,), jnp.float32),
            "bk": jnp.zeros((H,), jnp.float32),
            "bv": 0.01 * jax.random.normal(ks[7], (H,), jnp.float32),
        }
        ctx_ref, amap_ref = _reference(s1, s2, mask, params, NUM_HEADS)
        ctx, amap = bert_co_attention(s1, s2, mask, params, NUM_HEADS, **kw)
        jax.block_until_ready((ctx, amap))
        return ctx, amap, ctx_ref, amap_ref

    # Config 1 (tiny): f32 MXU inputs, single head group. Tolerances allow the
    # EUP approximate-reciprocal softmax denominator (~1e-3 on row sums).
    ctx, amap, ctx_r, amap_r = _run_case(2, 8, 8, 32, 4, compute_dtype=jnp.float32)
    assert jnp.allclose(ctx, ctx_r, atol=5e-3, rtol=5e-3), "context mismatch (f32)"
    assert jnp.allclose(amap, amap_r, atol=1e-3, rtol=1e-4), "attn_map mismatch (f32)"

    # Config 1, default bf16 compute (f32 accumulation): looser tolerance.
    ctx, amap, ctx_r, amap_r = _run_case(2, 8, 8, 32, 4)
    assert jnp.allclose(ctx, ctx_r, atol=2e-2, rtol=5e-2), "context mismatch (bf16)"
    assert jnp.allclose(amap, amap_r, atol=1e-2, rtol=1e-2), "attn_map mismatch (bf16)"

    # Config 2: head_size=64 -> paired-head (128-lane) context slabs, two head
    # groups in the fori_loop, and nq=2 q-tiles (exercises the K/V scratch carry
    # and the single-buffered s2 spec).
    ctx, amap, ctx_r, amap_r = _run_case(1, 256, 128, 256, 4, q_tile=128)
    assert jnp.allclose(ctx, ctx_r, atol=2e-2, rtol=5e-2), "context mismatch (cfg2)"
    assert jnp.allclose(amap, amap_r, atol=1e-2, rtol=1e-2), "attn_map mismatch (cfg2)"

    print("KERNEL_OK")
</pallas_src>

<mosaic_0001>
module attributes {stable_mosaic.version = 11 : i64} {
  func.func @_co_attention_kernel(%arg0: i32, %arg1: i32, %arg2: memref<1x8x32xf32, #tpu.memory_space<vmem>>, %arg3: memref<1x8x32xf32, #tpu.memory_space<vmem>>, %arg4: memref<1x1x8xf32, #tpu.memory_space<vmem>>, %arg5: memref<32x32xf32, #tpu.memory_space<vmem>>, %arg6: memref<1x32xf32, #tpu.memory_space<vmem>>, %arg7: memref<32x64xf32, #tpu.memory_space<vmem>>, %arg8: memref<1x64xf32, #tpu.memory_space<vmem>>, %arg9: memref<1x8x32xf32, #tpu.memory_space<vmem>>, %arg10: memref<1x8x8xf32, #tpu.memory_space<vmem>>, %arg11: memref<32x8xf32, #tpu.memory_space<vmem>>, %arg12: memref<4x8x8xf32, #tpu.memory_space<vmem>>, %arg13: memref<4x8x8xf32, #tpu.memory_space<vmem>>, %arg14: memref<1x8x32xf32, #tpu.memory_space<vmem>>) attributes {dimension_semantics = [#tpu.dimension_semantics<parallel>, #tpu.dimension_semantics<arbitrary>], iteration_bounds = array<i64: 2, 1>, scalar_prefetch = 0 : i64, scratch_operands = 4 : i64, tpu.core_type = #tpu.core_type<tc>, window_params = [{transform_indices = @transform_0, window_bounds = array<i64: 1, 8, 32>}, {transform_indices = @transform_1, window_bounds = array<i64: 1, 8, 32>}, {transform_indices = @transform_2, window_bounds = array<i64: 1, 1, 8>}, {pipeline_mode = #tpu.pipeline_mode<synchronous>, transform_indices = @transform_3, window_bounds = array<i64: 32, 32>}, {pipeline_mode = #tpu.pipeline_mode<synchronous>, transform_indices = @transform_4, window_bounds = array<i64: 1, 32>}, {pipeline_mode = #tpu.pipeline_mode<synchronous>, transform_indices = @transform_5, window_bounds = array<i64: 32, 64>}, {pipeline_mode = #tpu.pipeline_mode<synchronous>, transform_indices = @transform_6, window_bounds = array<i64: 1, 64>}, {transform_indices = @transform_7, window_bounds = array<i64: 1, 8, 32>}, {transform_indices = @transform_8, window_bounds = array<i64: 1, 8, 8>}]} {
    %c0_i32 = arith.constant 0 : i32
    %0 = arith.cmpi eq, %arg1, %c0_i32 : i32
    %1 = arith.extui %0 : i1 to i32
    %c0_i32_0 = arith.constant 0 : i32
    %2 = arith.cmpi ne, %1, %c0_i32_0 : i32
    scf.if %2 {
      %c0_80 = arith.constant 0 : index
      %c0_81 = arith.constant 0 : index
      %c0_82 = arith.constant 0 : index
      %119 = vector.load %arg3[%c0_80, %c0_81, %c0_82] : memref<1x8x32xf32, #tpu.memory_space<vmem>>, vector<1x8x32xf32>
      %120 = vector.shape_cast %119 : vector<1x8x32xf32> to vector<8x32xf32>
      %c0_83 = arith.constant 0 : index
      %c0_84 = arith.constant 0 : index
      %121 = vector.load %arg7[%c0_83, %c0_84] : memref<32x64xf32, #tpu.memory_space<vmem>>, vector<32x64xf32>
      %cst_85 = arith.constant dense<0.000000e+00> : vector<8x64xf32>
      %122 = tpu.matmul %120, %121, %cst_85 {dimension_numbers = #tpu.dot_dimension_numbers<[1], [0], [0], [1], [0, 0, 1, 1], [], []>} : vector<8x32xf32>, vector<32x64xf32>, vector<8x64xf32> -> vector<8x64xf32>
      %c0_86 = arith.constant 0 : index
      %c0_87 = arith.constant 0 : index
      %123 = vector.load %arg8[%c0_86, %c0_87] : memref<1x64xf32, #tpu.memory_space<vmem>>, vector<1x64xf32>
      %124 = vector.broadcast %123 : vector<1x64xf32> to vector<8x64xf32>
      %125 = arith.addf %122, %124 : vector<8x64xf32>
      %126 = vector.extract_strided_slice %125 {offsets = [0, 0], sizes = [8, 32], strides = [1, 1]} : vector<8x64xf32> to vector<8x32xf32>
      %127 = tpu.transpose %126, [1, 0] : vector<8x32xf32> -> vector<32x8xf32>
      %c0_88 = arith.constant 0 : index
      %c0_89 = arith.constant 0 : index
      %128 = vector.load %arg11[%c0_88, %c0_89] : memref<32x8xf32, #tpu.memory_space<vmem>>, vector<32x8xf32>
      tpu.vector_store %arg11[%c0_88, %c0_89], %127 {strides = array<i32>} : memref<32x8xf32, #tpu.memory_space<vmem>>, vector<32x8xf32>,
      %129 = vector.extract_strided_slice %125 {offsets = [0, 32], sizes = [8, 8], strides = [1, 1]} : vector<8x64xf32> to vector<8x8xf32>
      %c0_90 = arith.constant 0 : index
      %c0_91 = arith.constant 0 : index
      %c0_92 = arith.constant 0 : index
      %130 = vector.load %arg12[%c0_90, %c0_91, %c0_92] : memref<4x8x8xf32, #tpu.memory_space<vmem>>, vector<1x8x8xf32>
      %131 = vector.shape_cast %130 : vector<1x8x8xf32> to vector<8x8xf32>
      %132 = vector.shape_cast %129 : vector<8x8xf32> to vector<1x8x8xf32>
      tpu.vector_store %arg12[%c0_90, %c0_91, %c0_92], %132 {strides = array<i32>} : memref<4x8x8xf32, #tpu.memory_space<vmem>>, vector<1x8x8xf32>,
      %133 = vector.extract_strided_slice %125 {offsets = [0, 40], sizes = [8, 8], strides = [1, 1]} : vector<8x64xf32> to vector<8x8xf32>
      %c1_93 = arith.constant 1 : index
      %c0_94 = arith.constant 0 : index
      %c0_95 = arith.constant 0 : index
      %134 = vector.load %arg12[%c1_93, %c0_94, %c0_95] : memref<4x8x8xf32, #tpu.memory_space<vmem>>, vector<1x8x8xf32>
      %135 = vector.shape_cast %134 : vector<1x8x8xf32> to vector<8x8xf32>
      %136 = vector.shape_cast %133 : vector<8x8xf32> to vector<1x8x8xf32>
      tpu.vector_store %arg12[%c1_93, %c0_94, %c0_95], %136 {strides = array<i32>} : memref<4x8x8xf32, #tpu.memory_space<vmem>>, vector<1x8x8xf32>,
      %137 = vector.extract_strided_slice %125 {offsets = [0, 48], sizes = [8, 8], strides = [1, 1]} : vector<8x64xf32> to vector<8x8xf32>
      %c2_96 = arith.constant 2 : index
      %c0_97 = arith.constant 0 : index
      %c0_98 = arith.constant 0 : index
      %138 = vector.load %arg12[%c2_96, %c0_97, %c0_98] : memref<4x8x8xf32, #tpu.memory_space<vmem>>, vector<1x8x8xf32>
      %139 = vector.shape_cast %138 : vector<1x8x8xf32> to vector<8x8xf32>
      %140 = vector.shape_cast %137 : vector<8x8xf32> to vector<1x8x8xf32>
      tpu.vector_store %arg12[%c2_96, %c0_97, %c0_98], %140 {strides = array<i32>} : memref<4x8x8xf32, #tpu.memory_space<vmem>>, vector<1x8x8xf32>,
      %141 = vector.extract_strided_slice %125 {offsets = [0, 56], sizes = [8, 8], strides = [1, 1]} : vector<8x64xf32> to vector<8x8xf32>
      %c3_99 = arith.constant 3 : index
      %c0_100 = arith.constant 0 : index
      %c0_101 = arith.constant 0 : index
      %142 = vector.load %arg12[%c3_99, %c0_100, %c0_101] : memref<4x8x8xf32, #tpu.memory_space<vmem>>, vector<1x8x8xf32>
      %143 = vector.shape_cast %142 : vector<1x8x8xf32> to vector<8x8xf32>
      %144 = vector.shape_cast %141 : vector<8x8xf32> to vector<1x8x8xf32>
      tpu.vector_store %arg12[%c3_99, %c0_100, %c0_101], %144 {strides = array<i32>} : memref<4x8x8xf32, #tpu.memory_space<vmem>>, vector<1x8x8xf32>,
    } else {
    }
    %c0 = arith.constant 0 : index
    %c0_1 = arith.constant 0 : index
    %c0_2 = arith.constant 0 : index
    %3 = vector.load %arg2[%c0, %c0_1, %c0_2] : memref<1x8x32xf32, #tpu.memory_space<vmem>>, vector<1x8x32xf32>
    %4 = vector.shape_cast %3 : vector<1x8x32xf32> to vector<8x32xf32>
    %c0_3 = arith.constant 0 : index
    %c0_4 = arith.constant 0 : index
    %5 = vector.load %arg5[%c0_3, %c0_4] : memref<32x32xf32, #tpu.memory_space<vmem>>, vector<32x32xf32>
    %cst = arith.constant dense<0.000000e+00> : vector<8x32xf32>
    %6 = tpu.matmul %4, %5, %cst {dimension_numbers = #tpu.dot_dimension_numbers<[1], [0], [0], [1], [0, 0, 1, 1], [], []>} : vector<8x32xf32>, vector<32x32xf32>, vector<8x32xf32> -> vector<8x32xf32>
    %c0_5 = arith.constant 0 : index
    %c0_6 = arith.constant 0 : index
    %7 = vector.load %arg6[%c0_5, %c0_6] : memref<1x32xf32, #tpu.memory_space<vmem>>, vector<1x32xf32>
    %8 = vector.broadcast %7 : vector<1x32xf32> to vector<8x32xf32>
    %9 = arith.addf %6, %8 : vector<8x32xf32>
    %10 = vector.extract_strided_slice %9 {offsets = [0, 0], sizes = [8, 8], strides = [1, 1]} : vector<8x32xf32> to vector<8x8xf32>
    %c0_7 = arith.constant 0 : index
    %c0_8 = arith.constant 0 : index
    %c0_9 = arith.constant 0 : index
    %11 = vector.load %arg13[%c0_7, %c0_8, %c0_9] : memref<4x8x8xf32, #tpu.memory_space<vmem>>, vector<1x8x8xf32>
    %12 = vector.shape_cast %11 : vector<1x8x8xf32> to vector<8x8xf32>
    %13 = vector.shape_cast %10 : vector<8x8xf32> to vector<1x8x8xf32>
    tpu.vector_store %arg13[%c0_7, %c0_8, %c0_9], %13 {strides = array<i32>} : memref<4x8x8xf32, #tpu.memory_space<vmem>>, vector<1x8x8xf32>,
    %14 = vector.extract_strided_slice %9 {offsets = [0, 8], sizes = [8, 8], strides = [1, 1]} : vector<8x32xf32> to vector<8x8xf32>
    %c1 = arith.constant 1 : index
    %c0_10 = arith.constant 0 : index
    %c0_11 = arith.constant 0 : index
    %15 = vector.load %arg13[%c1, %c0_10, %c0_11] : memref<4x8x8xf32, #tpu.memory_space<vmem>>, vector<1x8x8xf32>
    %16 = vector.shape_cast %15 : vector<1x8x8xf32> to vector<8x8xf32>
    %17 = vector.shape_cast %14 : vector<8x8xf32> to vector<1x8x8xf32>
    tpu.vector_store %arg13[%c1, %c0_10, %c0_11], %17 {strides = array<i32>} : memref<4x8x8xf32, #tpu.memory_space<vmem>>, vector<1x8x8xf32>,
    %18 = vector.extract_strided_slice %9 {offsets = [0, 16], sizes = [8, 8], strides = [1, 1]} : vector<8x32xf32> to vector<8x8xf32>
    %c2 = arith.constant 2 : index
    %c0_12 = arith.constant 0 : index
    %c0_13 = arith.constant 0 : index
    %19 = vector.load %arg13[%c2, %c0_12, %c0_13] : memref<4x8x8xf32, #tpu.memory_space<vmem>>, vector<1x8x8xf32>
    %20 = vector.shape_cast %19 : vector<1x8x8xf32> to vector<8x8xf32>
    %21 = vector.shape_cast %18 : vector<8x8xf32> to vector<1x8x8xf32>
    tpu.vector_store %arg13[%c2, %c0_12, %c0_13], %21 {strides = array<i32>} : memref<4x8x8xf32, #tpu.memory_space<vmem>>, vector<1x8x8xf32>,
    %22 = vector.extract_strided_slice %9 {offsets = [0, 24], sizes = [8, 8], strides = [1, 1]} : vector<8x32xf32> to vector<8x8xf32>
    %c3 = arith.constant 3 : index
    %c0_14 = arith.constant 0 : index
    %c0_15 = arith.constant 0 : index
    %23 = vector.load %arg13[%c3, %c0_14, %c0_15] : memref<4x8x8xf32, #tpu.memory_space<vmem>>, vector<1x8x8xf32>
    %24 = vector.shape_cast %23 : vector<1x8x8xf32> to vector<8x8xf32>
    %25 = vector.shape_cast %22 : vector<8x8xf32> to vector<1x8x8xf32>
    tpu.vector_store %arg13[%c3, %c0_14, %c0_15], %25 {strides = array<i32>} : memref<4x8x8xf32, #tpu.memory_space<vmem>>, vector<1x8x8xf32>,
    %c0_16 = arith.constant 0 : index
    %c0_17 = arith.constant 0 : index
    %c0_18 = arith.constant 0 : index
    %26 = vector.load %arg4[%c0_16, %c0_17, %c0_18] : memref<1x1x8xf32, #tpu.memory_space<vmem>>, vector<1x1x8xf32>
    %27 = vector.shape_cast %26 : vector<1x1x8xf32> to vector<1x8xf32>
    %28 = vector.shape_cast %27 : vector<1x8xf32> to vector<1x8xf32>
    %29 = vector.broadcast %28 : vector<1x8xf32> to vector<8x8xf32>
    %c0_19 = arith.constant 0 : index
    %c0_20 = arith.constant 0 : index
    %30 = vector.load %arg11[%c0_19, %c0_20] : memref<32x8xf32, #tpu.memory_space<vmem>>, vector<32x8xf32>
    %cst_21 = arith.constant dense<0.000000e+00> : vector<8x8xf32>
    %31 = tpu.matmul %9, %30, %cst_21 {dimension_numbers = #tpu.dot_dimension_numbers<[1], [0], [0], [1], [0, 0, 1, 1], [], []>} : vector<8x32xf32>, vector<32x8xf32>, vector<8x8xf32> -> vector<8x8xf32>
    %cst_22 = arith.constant 2.500000e-01 : f32
    %32 = vector.broadcast %cst_22 : f32 to vector<8x8xf32>
    %33 = arith.mulf %31, %32 : vector<8x8xf32>
    %34 = arith.addf %33, %29 : vector<8x8xf32>
    %c0_23 = arith.constant 0 : index
    %c0_24 = arith.constant 0 : index
    %c0_25 = arith.constant 0 : index
    %35 = vector.load %arg10[%c0_23, %c0_24, %c0_25] : memref<1x8x8xf32, #tpu.memory_space<vmem>>, vector<1x8x8xf32>
    %36 = vector.shape_cast %35 : vector<1x8x8xf32> to vector<8x8xf32>
    %37 = vector.shape_cast %34 : vector<8x8xf32> to vector<1x8x8xf32>
    tpu.vector_store %arg10[%c0_23, %c0_24, %c0_25], %37 {strides = array<i32>} : memref<1x8x8xf32, #tpu.memory_space<vmem>>, vector<1x8x8xf32>,
    %c0_26 = arith.constant 0 : index
    %c0_27 = arith.constant 0 : index
    %c0_28 = arith.constant 0 : index
    %38 = vector.load %arg13[%c0_26, %c0_27, %c0_28] : memref<4x8x8xf32, #tpu.memory_space<vmem>>, vector<1x8x8xf32>
    %39 = vector.shape_cast %38 : vector<1x8x8xf32> to vector<8x8xf32>
    %c0_29 = arith.constant 0 : index
    %c0_30 = arith.constant 0 : index
    %40 = vector.load %arg11[%c0_29, %c0_30] : memref<32x8xf32, #tpu.memory_space<vmem>>, vector<8x8xf32>
    %c0_31 = arith.constant 0 : index
    %c0_32 = arith.constant 0 : index
    %c0_33 = arith.constant 0 : index
    %41 = vector.load %arg12[%c0_31, %c0_32, %c0_33] : memref<4x8x8xf32, #tpu.memory_space<vmem>>, vector<1x8x8xf32>
    %42 = vector.shape_cast %41 : vector<1x8x8xf32> to vector<8x8xf32>
    %cst_34 = arith.constant dense<0.000000e+00> : vector<8x8xf32>
    %43 = tpu.matmul %39, %40, %cst_34 {dimension_numbers = #tpu.dot_dimension_numbers<[1], [0], [0], [1], [0, 0, 1, 1], [], []>} : vector<8x8xf32>, vector<8x8xf32>, vector<8x8xf32> -> vector<8x8xf32>
    %44 = arith.addf %43, %29 : vector<8x8xf32>
    %cst_35 = arith.constant dense<0xFF800000> : vector<8xf32>
    %45 = vector.multi_reduction <maximumf>, %44, %cst_35 [1] : vector<8x8xf32> to vector<8xf32>
    %46 = vector.shape_cast %45 : vector<8xf32> to vector<8x1xf32>
    %47 = vector.broadcast %46 : vector<8x1xf32> to vector<8x8xf32>
    %48 = arith.subf %44, %47 : vector<8x8xf32>
    %49 = math.exp %48 : vector<8x8xf32>
    %cst_36 = arith.constant dense<0.000000e+00> : vector<8xf32>
    %50 = vector.multi_reduction <add>, %49, %cst_36 [1] : vector<8x8xf32> to vector<8xf32>
    %51 = vector.shape_cast %50 : vector<8xf32> to vector<8x1xf32>
    %52 = tpu.reciprocal %51 {approx = true} : vector<8x1xf32> -> vector<8x1xf32>
    %53 = vector.broadcast %52 : vector<8x1xf32> to vector<8x8xf32>
    %54 = arith.mulf %49, %53 : vector<8x8xf32>
    %cst_37 = arith.constant dense<0.000000e+00> : vector<8x8xf32>
    %55 = tpu.matmul %54, %42, %cst_37 {dimension_numbers = #tpu.dot_dimension_numbers<[1], [0], [0], [1], [0, 0, 1, 1], [], []>} : vector<8x8xf32>, vector<8x8xf32>, vector<8x8xf32> -> vector<8x8xf32>
    %c1_38 = arith.constant 1 : index
    %c0_39 = arith.constant 0 : index
    %c0_40 = arith.constant 0 : index
    %56 = vector.load %arg13[%c1_38, %c0_39, %c0_40] : memref<4x8x8xf32, #tpu.memory_space<vmem>>, vector<1x8x8xf32>
    %57 = vector.shape_cast %56 : vector<1x8x8xf32> to vector<8x8xf32>
    %c8 = arith.constant 8 : index
    %c0_41 = arith.constant 0 : index
    %58 = vector.load %arg11[%c8, %c0_41] : memref<32x8xf32, #tpu.memory_space<vmem>>, vector<8x8xf32>
    %c1_42 = arith.constant 1 : index
    %c0_43 = arith.constant 0 : index
    %c0_44 = arith.constant 0 : index
    %59 = vector.load %arg12[%c1_42, %c0_43, %c0_44] : memref<4x8x8xf32, #tpu.memory_space<vmem>>, vector<1x8x8xf32>
    %60 = vector.shape_cast %59 : vector<1x8x8xf32> to vector<8x8xf32>
    %cst_45 = arith.constant dense<0.000000e+00> : vector<8x8xf32>
    %61 = tpu.matmul %57, %58, %cst_45 {dimension_numbers = #tpu.dot_dimension_numbers<[1], [0], [0], [1], [0, 0, 1, 1], [], []>} : vector<8x8xf32>, vector<8x8xf32>, vector<8x8xf32> -> vector<8x8xf32>
    %62 = arith.addf %61, %29 : vector<8x8xf32>
    %cst_46 = arith.constant dense<0xFF800000> : vector<8xf32>
    %63 = vector.multi_reduction <maximumf>, %62, %cst_46 [1] : vector<8x8xf32> to vector<8xf32>
    %64 = vector.shape_cast %63 : vector<8xf32> to vector<8x1xf32>
    %65 = vector.broadcast %64 : vector<8x1xf32> to vector<8x8xf32>
    %66 = arith.subf %62, %65 : vector<8x8xf32>
    %67 = math.exp %66 : vector<8x8xf32>
    %cst_47 = arith.constant dense<0.000000e+00> : vector<8xf32>
    %68 = vector.multi_reduction <add>, %67, %cst_47 [1] : vector<8x8xf32> to vector<8xf32>
    %69 = vector.shape_cast %68 : vector<8xf32> to vector<8x1xf32>
    %70 = tpu.reciprocal %69 {approx = true} : vector<8x1xf32> -> vector<8x1xf32>
    %71 = vector.broadcast %70 : vector<8x1xf32> to vector<8x8xf32>
    %72 = arith.mulf %67, %71 : vector<8x8xf32>
    %cst_48 = arith.constant dense<0.000000e+00> : vector<8x8xf32>
    %73 = tpu.matmul %72, %60, %cst_48 {dimension_numbers = #tpu.dot_dimension_numbers<[1], [0], [0], [1], [0, 0, 1, 1], [], []>} : vector<8x8xf32>, vector<8x8xf32>, vector<8x8xf32> -> vector<8x8xf32>
    %c2_49 = arith.constant 2 : index
    %c0_50 = arith.constant 0 : index
    %c0_51 = arith.constant 0 : index
    %74 = vector.load %arg13[%c2_49, %c0_50, %c0_51] : memref<4x8x8xf32, #tpu.memory_space<vmem>>, vector<1x8x8xf32>
    %75 = vector.shape_cast %74 : vector<1x8x8xf32> to vector<8x8xf32>
    %c16 = arith.constant 16 : index
    %c0_52 = arith.constant 0 : index
    %76 = vector.load %arg11[%c16, %c0_52] : memref<32x8xf32, #tpu.memory_space<vmem>>, vector<8x8xf32>
    %c2_53 = arith.constant 2 : index
    %c0_54 = arith.constant 0 : index
    %c0_55 = arith.constant 0 : index
    %77 = vector.load %arg12[%c2_53, %c0_54, %c0_55] : memref<4x8x8xf32, #tpu.memory_space<vmem>>, vector<1x8x8xf32>
    %78 = vector.shape_cast %77 : vector<1x8x8xf32> to vector<8x8xf32>
    %cst_56 = arith.constant dense<0.000000e+00> : vector<8x8xf32>
    %79 = tpu.matmul %75, %76, %cst_56 {dimension_numbers = #tpu.dot_dimension_numbers<[1], [0], [0], [1], [0, 0, 1, 1], [], []>} : vector<8x8xf32>, vector<8x8xf32>, vector<8x8xf32> -> vector<8x8xf32>
    %80 = arith.addf %79, %29 : vector<8x8xf32>
    %cst_57 = arith.constant dense<0xFF800000> : vector<8xf32>
    %81 = vector.multi_reduction <maximumf>, %80, %cst_57 [1] : vector<8x8xf32> to vector<8xf32>
    %82 = vector.shape_cast %81 : vector<8xf32> to vector<8x1xf32>
    %83 = vector.broadcast %82 : vector<8x1xf32> to vector<8x8xf32>
    %84 = arith.subf %80, %83 : vector<8x8xf32>
    %85 = math.exp %84 : vector<8x8xf32>
    %cst_58 = arith.constant dense<0.000000e+00> : vector<8xf32>
    %86 = vector.multi_reduction <add>, %85, %cst_58 [1] : vector<8x8xf32> to vector<8xf32>
    %87 = vector.shape_cast %86 : vector<8xf32> to vector<8x1xf32>
    %88 = tpu.reciprocal %87 {approx = true} : vector<8x1xf32> -> vector<8x1xf32>
    %89 = vector.broadcast %88 : vector<8x1xf32> to vector<8x8xf32>
    %90 = arith.mulf %85, %89 : vector<8x8xf32>
    %cst_59 = arith.constant dense<0.000000e+00> : vector<8x8xf32>
    %91 = tpu.matmul %90, %78, %cst_59 {dimension_numbers = #tpu.dot_dimension_numbers<[1], [0], [0], [1], [0, 0, 1, 1], [], []>} : vector<8x8xf32>, vector<8x8xf32>, vector<8x8xf32> -> vector<8x8xf32>
    %c3_60 = arith.constant 3 : index
    %c0_61 = arith.constant 0 : index
    %c0_62 = arith.constant 0 : index
    %92 = vector.load %arg13[%c3_60, %c0_61, %c0_62] : memref<4x8x8xf32, #tpu.memory_space<vmem>>, vector<1x8x8xf32>
    %93 = vector.shape_cast %92 : vector<1x8x8xf32> to vector<8x8xf32>
    %c24 = arith.constant 24 : index
    %c0_63 = arith.constant 0 : index
    %94 = vector.load %arg11[%c24, %c0_63] : memref<32x8xf32, #tpu.memory_space<vmem>>, vector<8x8xf32>
    %c3_64 = arith.constant 3 : index
    %c0_65 = arith.constant 0 : index
    %c0_66 = arith.constant 0 : index
    %95 = vector.load %arg12[%c3_64, %c0_65, %c0_66] : memref<4x8x8xf32, #tpu.memory_space<vmem>>, vector<1x8x8xf32>
    %96 = vector.shape_cast %95 : vector<1x8x8xf32> to vector<8x8xf32>
    %cst_67 = arith.constant dense<0.000000e+00> : vector<8x8xf32>
    %97 = tpu.matmul %93, %94, %cst_67 {dimension_numbers = #tpu.dot_dimension_numbers<[1], [0], [0], [1], [0, 0, 1, 1], [], []>} : vector<8x8xf32>, vector<8x8xf32>, vector<8x8xf32> -> vector<8x8xf32>
    %98 = arith.addf %97, %29 : vector<8x8xf32>
    %cst_68 = arith.constant dense<0xFF800000> : vector<8xf32>
    %99 = vector.multi_reduction <maximumf>, %98, %cst_68 [1] : vector<8x8xf32> to vector<8xf32>
    %100 = vector.shape_cast %99 : vector<8xf32> to vector<8x1xf32>
    %101 = vector.broadcast %100 : vector<8x1xf32> to vector<8x8xf32>
    %102 = arith.subf %98, %101 : vector<8x8xf32>
    %103 = math.exp %102 : vector<8x8xf32>
    %cst_69 = arith.constant dense<0.000000e+00> : vector<8xf32>
    %104 = vector.multi_reduction <add>, %103, %cst_69 [1] : vector<8x8xf32> to vector<8xf32>
    %105 = vector.shape_cast %104 : vector<8xf32> to vector<8x1xf32>
    %106 = tpu.reciprocal %105 {approx = true} : vector<8x1xf32> -> vector<8x1xf32>
    %107 = vector.broadcast %106 : vector<8x1xf32> to vector<8x8xf32>
    %108 = arith.mulf %103, %107 : vector<8x8xf32>
    %cst_70 = arith.constant dense<0.000000e+00> : vector<8x8xf32>
    %109 = tpu.matmul %108, %96, %cst_70 {dimension_numbers = #tpu.dot_dimension_numbers<[1], [0], [0], [1], [0, 0, 1, 1], [], []>} : vector<8x8xf32>, vector<8x8xf32>, vector<8x8xf32> -> vector<8x8xf32>
    %110 = tpu.concatenate %55, %73, %91, %109 in 1 : vector<8x8xf32>, vector<8x8xf32>, vector<8x8xf32>, vector<8x8xf32> -> vector<8x32xf32>
    %c0_71 = arith.constant 0 : index
    %c0_72 = arith.constant 0 : index
    %c0_73 = arith.constant 0 : index
    %111 = vector.load %arg14[%c0_71, %c0_72, %c0_73] : memref<1x8x32xf32, #tpu.memory_space<vmem>>, vector<1x8x32xf32>
    %112 = vector.shape_cast %111 : vector<1x8x32xf32> to vector<8x32xf32>
    %113 = vector.shape_cast %110 : vector<8x32xf32> to vector<1x8x32xf32>
    tpu.vector_store %arg14[%c0_71, %c0_72, %c0_73], %113 {strides = array<i32>} : memref<1x8x32xf32, #tpu.memory_space<vmem>>, vector<1x8x32xf32>,
    %c0_74 = arith.constant 0 : index
    %c0_75 = arith.constant 0 : index
    %c0_76 = arith.constant 0 : index
    %114 = vector.load %arg14[%c0_74, %c0_75, %c0_76] : memref<1x8x32xf32, #tpu.memory_space<vmem>>, vector<1x8x32xf32>
    %115 = vector.shape_cast %114 : vector<1x8x32xf32> to vector<8x32xf32>
    %c0_77 = arith.constant 0 : index
    %c0_78 = arith.constant 0 : index
    %c0_79 = arith.constant 0 : index
    %116 = vector.load %arg9[%c0_77, %c0_78, %c0_79] : memref<1x8x32xf32, #tpu.memory_space<vmem>>, vector<1x8x32xf32>
    %117 = vector.shape_cast %116 : vector<1x8x32xf32> to vector<8x32xf32>
    %118 = vector.shape_cast %115 : vector<8x32xf32> to vector<1x8x32xf32>
    tpu.vector_store %arg9[%c0_77, %c0_78, %c0_79], %118 {strides = array<i32>} : memref<1x8x32xf32, #tpu.memory_space<vmem>>, vector<1x8x32xf32>,
    return
  }
  func.func @transform_0(%arg0: i32, %arg1: i32) -> (i32, i32, i32) {
    %c0_i32 = arith.constant 0 : i32
    %c0_i32_0 = arith.constant 0 : i32
    return %arg0, %arg1, %c0_i32 : i32, i32, i32
  }
  func.func @transform_1(%arg0: i32, %arg1: i32) -> (i32, i32, i32) {
    %c0_i32 = arith.constant 0 : i32
    %c0_i32_0 = arith.constant 0 : i32
    %c0_i32_1 = arith.constant 0 : i32
    return %arg0, %c0_i32, %c0_i32_0 : i32, i32, i32
  }
  func.func @transform_2(%arg0: i32, %arg1: i32) -> (i32, i32, i32) {
    %c0_i32 = arith.constant 0 : i32
    %c0_i32_0 = arith.constant 0 : i32
    %c0_i32_1 = arith.constant 0 : i32
    return %arg0, %c0_i32, %c0_i32_0 : i32, i32, i32
  }
  func.func @transform_3(%arg0: i32, %arg1: i32) -> (i32, i32) {
    %c0_i32 = arith.constant 0 : i32
    %c0_i32_0 = arith.constant 0 : i32
    %c0_i32_1 = arith.constant 0 : i32
    return %c0_i32, %c0_i32_0 : i32, i32
  }
  func.func @transform_4(%arg0: i32, %arg1: i32) -> (i32, i32) {
    %c0_i32 = arith.constant 0 : i32
    %c0_i32_0 = arith.constant 0 : i32
    %c0_i32_1 = arith.constant 0 : i32
    return %c0_i32, %c0_i32_0 : i32, i32
  }
  func.func @transform_5(%arg0: i32, %arg1: i32) -> (i32, i32) {
    %c0_i32 = arith.constant 0 : i32
    %c0_i32_0 = arith.constant 0 : i32
    %c0_i32_1 = arith.constant 0 : i32
    return %c0_i32, %c0_i32_0 : i32, i32
  }
  func.func @transform_6(%arg0: i32, %arg1: i32) -> (i32, i32) {
    %c0_i32 = arith.constant 0 : i32
    %c0_i32_0 = arith.constant 0 : i32
    %c0_i32_1 = arith.constant 0 : i32
    return %c0_i32, %c0_i32_0 : i32, i32
  }
  func.func @transform_7(%arg0: i32, %arg1: i32) -> (i32, i32, i32) {
    %c0_i32 = arith.constant 0 : i32
    %c0_i32_0 = arith.constant 0 : i32
    return %arg0, %arg1, %c0_i32 : i32, i32, i32
  }
  func.func @transform_8(%arg0: i32, %arg1: i32) -> (i32, i32, i32) {
    %c0_i32 = arith.constant 0 : i32
    %c0_i32_0 = arith.constant 0 : i32
    return %arg0, %arg1, %c0_i32 : i32, i32, i32
  }
}

module attributes {stable_mosaic.version = 11 : i64} {
  func.func @_co_attention_kernel(%arg0: i32, %arg1: i32, %arg2: memref<1x8x32xf32, #tpu.memory_space<vmem>>, %arg3: memref<1x8x32xf32, #tpu.memory_space<vmem>>, %arg4: memref<1x1x8xf32, #tpu.memory_space<vmem>>, %arg5: memref<32x32xf32, #tpu.memory_space<vmem>>, %arg6: memref<1x32xf32, #tpu.memory_space<vmem>>, %arg7: memref<32x64xf32, #tpu.memory_space<vmem>>, %arg8: memref<1x64xf32, #tpu.memory_space<vmem>>, %arg9: memref<1x8x32xf32, #tpu.memory_space<vmem>>, %arg10: memref<1x8x8xf32, #tpu.memory_space<vmem>>, %arg11: memref<32x8xf32, #tpu.memory_space<vmem>>, %arg12: memref<4x8x8xf32, #tpu.memory_space<vmem>>, %arg13: memref<4x8x8xf32, #tpu.memory_space<vmem>>, %arg14: memref<1x8x32xf32, #tpu.memory_space<vmem>>) attributes {dimension_semantics = [#tpu.dimension_semantics<parallel>, #tpu.dimension_semantics<arbitrary>], iteration_bounds = array<i64: 2, 1>, scalar_prefetch = 0 : i64, scratch_operands = 4 : i64, tpu.core_type = #tpu.core_type<tc>, window_params = [{transform_indices = @transform_0, window_bounds = array<i64: 1, 8, 32>}, {transform_indices = @transform_1, window_bounds = array<i64: 1, 8, 32>}, {transform_indices = @transform_2, window_bounds = array<i64: 1, 1, 8>}, {pipeline_mode = #tpu.pipeline_mode<synchronous>, transform_indices = @transform_3, window_bounds = array<i64: 32, 32>}, {pipeline_mode = #tpu.pipeline_mode<synchronous>, transform_indices = @transform_4, window_bounds = array<i64: 1, 32>}, {pipeline_mode = #tpu.pipeline_mode<synchronous>, transform_indices = @transform_5, window_bounds = array<i64: 32, 64>}, {pipeline_mode = #tpu.pipeline_mode<synchronous>, transform_indices = @transform_6, window_bounds = array<i64: 1, 64>}, {transform_indices = @transform_7, window_bounds = array<i64: 1, 8, 32>}, {transform_indices = @transform_8, window_bounds = array<i64: 1, 8, 8>}]} {
    %c0_i32 = arith.constant 0 : i32
    %0 = arith.cmpi eq, %arg1, %c0_i32 : i32
    %1 = arith.extui %0 : i1 to i32
    %c0_i32_0 = arith.constant 0 : i32
    %2 = arith.cmpi ne, %1, %c0_i32_0 : i32
    scf.if %2 {
      %c0_80 = arith.constant 0 : index
      %c0_81 = arith.constant 0 : index
      %c0_82 = arith.constant 0 : index
      %119 = vector.load %arg3[%c0_80, %c0_81, %c0_82] : memref<1x8x32xf32, #tpu.memory_space<vmem>>, vector<1x8x32xf32>
      %120 = vector.shape_cast %119 : vector<1x8x32xf32> to vector<8x32xf32>
      %c0_83 = arith.constant 0 : index
      %c0_84 = arith.constant 0 : index
      %121 = vector.load %arg7[%c0_83, %c0_84] : memref<32x64xf32, #tpu.memory_space<vmem>>, vector<32x64xf32>
      %cst_85 = arith.constant dense<0.000000e+00> : vector<8x64xf32>
      %122 = tpu.matmul %120, %121, %cst_85 {dimension_numbers = #tpu.dot_dimension_numbers<[1], [0], [0], [1], [0, 0, 1, 1], [], []>} : vector<8x32xf32>, vector<32x64xf32>, vector<8x64xf32> -> vector<8x64xf32>
      %c0_86 = arith.constant 0 : index
      %c0_87 = arith.constant 0 : index
      %123 = vector.load %arg8[%c0_86, %c0_87] : memref<1x64xf32, #tpu.memory_space<vmem>>, vector<1x64xf32>
      %124 = vector.broadcast %123 : vector<1x64xf32> to vector<8x64xf32>
      %125 = arith.addf %122, %124 : vector<8x64xf32>
      %126 = vector.extract_strided_slice %125 {offsets = [0, 0], sizes = [8, 32], strides = [1, 1]} : vector<8x64xf32> to vector<8x32xf32>
      %127 = tpu.transpose %126, [1, 0] : vector<8x32xf32> -> vector<32x8xf32>
      %c0_88 = arith.constant 0 : index
      %c0_89 = arith.constant 0 : index
      %128 = vector.load %arg11[%c0_88, %c0_89] : memref<32x8xf32, #tpu.memory_space<vmem>>, vector<32x8xf32>
      tpu.vector_store %arg11[%c0_88, %c0_89], %127 {strides = array<i32>} : memref<32x8xf32, #tpu.memory_space<vmem>>, vector<32x8xf32>,
      %129 = vector.extract_strided_slice %125 {offsets = [0, 32], sizes = [8, 8], strides = [1, 1]} : vector<8x64xf32> to vector<8x8xf32>
      %c0_90 = arith.constant 0 : index
      %c0_91 = arith.constant 0 : index
      %c0_92 = arith.constant 0 : index
      %130 = vector.load %arg12[%c0_90, %c0_91, %c0_92] : memref<4x8x8xf32, #tpu.memory_space<vmem>>, vector<1x8x8xf32>
      %131 = vector.shape_cast %130 : vector<1x8x8xf32> to vector<8x8xf32>
      %132 = vector.shape_cast %129 : vector<8x8xf32> to vector<1x8x8xf32>
      tpu.vector_store %arg12[%c0_90, %c0_91, %c0_92], %132 {strides = array<i32>} : memref<4x8x8xf32, #tpu.memory_space<vmem>>, vector<1x8x8xf32>,
      %133 = vector.extract_strided_slice %125 {offsets = [0, 40], sizes = [8, 8], strides = [1, 1]} : vector<8x64xf32> to vector<8x8xf32>
      %c1_93 = arith.constant 1 : index
      %c0_94 = arith.constant 0 : index
      %c0_95 = arith.constant 0 : index
      %134 = vector.load %arg12[%c1_93, %c0_94, %c0_95] : memref<4x8x8xf32, #tpu.memory_space<vmem>>, vector<1x8x8xf32>
      %135 = vector.shape_cast %134 : vector<1x8x8xf32> to vector<8x8xf32>
      %136 = vector.shape_cast %133 : vector<8x8xf32> to vector<1x8x8xf32>
      tpu.vector_store %arg12[%c1_93, %c0_94, %c0_95], %136 {strides = array<i32>} : memref<4x8x8xf32, #tpu.memory_space<vmem>>, vector<1x8x8xf32>,
      %137 = vector.extract_strided_slice %125 {offsets = [0, 48], sizes = [8, 8], strides = [1, 1]} : vector<8x64xf32> to vector<8x8xf32>
      %c2_96 = arith.constant 2 : index
      %c0_97 = arith.constant 0 : index
      %c0_98 = arith.constant 0 : index
      %138 = vector.load %arg12[%c2_96, %c0_97, %c0_98] : memref<4x8x8xf32, #tpu.memory_space<vmem>>, vector<1x8x8xf32>
      %139 = vector.shape_cast %138 : vector<1x8x8xf32> to vector<8x8xf32>
      %140 = vector.shape_cast %137 : vector<8x8xf32> to vector<1x8x8xf32>
      tpu.vector_store %arg12[%c2_96, %c0_97, %c0_98], %140 {strides = array<i32>} : memref<4x8x8xf32, #tpu.memory_space<vmem>>, vector<1x8x8xf32>,
      %141 = vector.extract_strided_slice %125 {offsets = [0, 56], sizes = [8, 8], strides = [1, 1]} : vector<8x64xf32> to vector<8x8xf32>
      %c3_99 = arith.constant 3 : index
      %c0_100 = arith.constant 0 : index
      %c0_101 = arith.constant 0 : index
      %142 = vector.load %arg12[%c3_99, %c0_100, %c0_101] : memref<4x8x8xf32, #tpu.memory_space<vmem>>, vector<1x8x8xf32>
      %143 = vector.shape_cast %142 : vector<1x8x8xf32> to vector<8x8xf32>
      %144 = vector.shape_cast %141 : vector<8x8xf32> to vector<1x8x8xf32>
      tpu.vector_store %arg12[%c3_99, %c0_100, %c0_101], %144 {strides = array<i32>} : memref<4x8x8xf32, #tpu.memory_space<vmem>>, vector<1x8x8xf32>,
    } else {
    }
    %c0 = arith.constant 0 : index
    %c0_1 = arith.constant 0 : index
    %c0_2 = arith.constant 0 : index
    %3 = vector.load %arg2[%c0, %c0_1, %c0_2] : memref<1x8x32xf32, #tpu.memory_space<vmem>>, vector<1x8x32xf32>
    %4 = vector.shape_cast %3 : vector<1x8x32xf32> to vector<8x32xf32>
    %c0_3 = arith.constant 0 : index
    %c0_4 = arith.constant 0 : index
    %5 = vector.load %arg5[%c0_3, %c0_4] : memref<32x32xf32, #tpu.memory_space<vmem>>, vector<32x32xf32>
    %cst = arith.constant dense<0.000000e+00> : vector<8x32xf32>
    %6 = tpu.matmul %4, %5, %cst {dimension_numbers = #tpu.dot_dimension_numbers<[1], [0], [0], [1], [0, 0, 1, 1], [], []>} : vector<8x32xf32>, vector<32x32xf32>, vector<8x32xf32> -> vector<8x32xf32>
    %c0_5 = arith.constant 0 : index
    %c0_6 = arith.constant 0 : index
    %7 = vector.load %arg6[%c0_5, %c0_6] : memref<1x32xf32, #tpu.memory_space<vmem>>, vector<1x32xf32>
    %8 = vector.broadcast %7 : vector<1x32xf32> to vector<8x32xf32>
    %9 = arith.addf %6, %8 : vector<8x32xf32>
    %10 = vector.extract_strided_slice %9 {offsets = [0, 0], sizes = [8, 8], strides = [1, 1]} : vector<8x32xf32> to vector<8x8xf32>
    %c0_7 = arith.constant 0 : index
    %c0_8 = arith.constant 0 : index
    %c0_9 = arith.constant 0 : index
    %11 = vector.load %arg13[%c0_7, %c0_8, %c0_9] : memref<4x8x8xf32, #tpu.memory_space<vmem>>, vector<1x8x8xf32>
    %12 = vector.shape_cast %11 : vector<1x8x8xf32> to vector<8x8xf32>
    %13 = vector.shape_cast %10 : vector<8x8xf32> to vector<1x8x8xf32>
    tpu.vector_store %arg13[%c0_7, %c0_8, %c0_9], %13 {strides = array<i32>} : memref<4x8x8xf32, #tpu.memory_space<vmem>>, vector<1x8x8xf32>,
    %14 = vector.extract_strided_slice %9 {offsets = [0, 8], sizes = [8, 8], strides = [1, 1]} : vector<8x32xf32> to vector<8x8xf32>
    %c1 = arith.constant 1 : index
    %c0_10 = arith.constant 0 : index
    %c0_11 = arith.constant 0 : index
    %15 = vector.load %arg13[%c1, %c0_10, %c0_11] : memref<4x8x8xf32, #tpu.memory_space<vmem>>, vector<1x8x8xf32>
    %16 = vector.shape_cast %15 : vector<1x8x8xf32> to vector<8x8xf32>
    %17 = vector.shape_cast %14 : vector<8x8xf32> to vector<1x8x8xf32>
    tpu.vector_store %arg13[%c1, %c0_10, %c0_11], %17 {strides = array<i32>} : memref<4x8x8xf32, #tpu.memory_space<vmem>>, vector<1x8x8xf32>,
    %18 = vector.extract_strided_slice %9 {offsets = [0, 16], sizes = [8, 8], strides = [1, 1]} : vector<8x32xf32> to vector<8x8xf32>
    %c2 = arith.constant 2 : index
    %c0_12 = arith.constant 0 : index
    %c0_13 = arith.constant 0 : index
    %19 = vector.load %arg13[%c2, %c0_12, %c0_13] : memref<4x8x8xf32, #tpu.memory_space<vmem>>, vector<1x8x8xf32>
    %20 = vector.shape_cast %19 : vector<1x8x8xf32> to vector<8x8xf32>
    %21 = vector.shape_cast %18 : vector<8x8xf32> to vector<1x8x8xf32>
    tpu.vector_store %arg13[%c2, %c0_12, %c0_13], %21 {strides = array<i32>} : memref<4x8x8xf32, #tpu.memory_space<vmem>>, vector<1x8x8xf32>,
    %22 = vector.extract_strided_slice %9 {offsets = [0, 24], sizes = [8, 8], strides = [1, 1]} : vector<8x32xf32> to vector<8x8xf32>
    %c3 = arith.constant 3 : index
    %c0_14 = arith.constant 0 : index
    %c0_15 = arith.constant 0 : index
    %23 = vector.load %arg13[%c3, %c0_14, %c0_15] : memref<4x8x8xf32, #tpu.memory_space<vmem>>, vector<1x8x8xf32>
    %24 = vector.shape_cast %23 : vector<1x8x8xf32> to vector<8x8xf32>
    %25 = vector.shape_cast %22 : vector<8x8xf32> to vector<1x8x8xf32>
    tpu.vector_store %arg13[%c3, %c0_14, %c0_15], %25 {strides = array<i32>} : memref<4x8x8xf32, #tpu.memory_space<vmem>>, vector<1x8x8xf32>,
    %c0_16 = arith.constant 0 : index
    %c0_17 = arith.constant 0 : index
    %c0_18 = arith.constant 0 : index
    %26 = vector.load %arg4[%c0_16, %c0_17, %c0_18] : memref<1x1x8xf32, #tpu.memory_space<vmem>>, vector<1x1x8xf32>
    %27 = vector.shape_cast %26 : vector<1x1x8xf32> to vector<1x8xf32>
    %28 = vector.shape_cast %27 : vector<1x8xf32> to vector<1x8xf32>
    %29 = vector.broadcast %28 : vector<1x8xf32> to vector<8x8xf32>
    %c0_19 = arith.constant 0 : index
    %c0_20 = arith.constant 0 : index
    %30 = vector.load %arg11[%c0_19, %c0_20] : memref<32x8xf32, #tpu.memory_space<vmem>>, vector<32x8xf32>
    %cst_21 = arith.constant dense<0.000000e+00> : vector<8x8xf32>
    %31 = tpu.matmul %9, %30, %cst_21 {dimension_numbers = #tpu.dot_dimension_numbers<[1], [0], [0], [1], [0, 0, 1, 1], [], []>} : vector<8x32xf32>, vector<32x8xf32>, vector<8x8xf32> -> vector<8x8xf32>
    %cst_22 = arith.constant 2.500000e-01 : f32
    %32 = vector.broadcast %cst_22 : f32 to vector<8x8xf32>
    %33 = arith.mulf %31, %32 : vector<8x8xf32>
    %34 = arith.addf %33, %29 : vector<8x8xf32>
    %c0_23 = arith.constant 0 : index
    %c0_24 = arith.constant 0 : index
    %c0_25 = arith.constant 0 : index
    %35 = vector.load %arg10[%c0_23, %c0_24, %c0_25] : memref<1x8x8xf32, #tpu.memory_space<vmem>>, vector<1x8x8xf32>
    %36 = vector.shape_cast %35 : vector<1x8x8xf32> to vector<8x8xf32>
    %37 = vector.shape_cast %34 : vector<8x8xf32> to vector<1x8x8xf32>
    tpu.vector_store %arg10[%c0_23, %c0_24, %c0_25], %37 {strides = array<i32>} : memref<1x8x8xf32, #tpu.memory_space<vmem>>, vector<1x8x8xf32>,
    %c0_26 = arith.constant 0 : index
    %c0_27 = arith.constant 0 : index
    %c0_28 = arith.constant 0 : index
    %38 = vector.load %arg13[%c0_26, %c0_27, %c0_28] : memref<4x8x8xf32, #tpu.memory_space<vmem>>, vector<1x8x8xf32>
    %39 = vector.shape_cast %38 : vector<1x8x8xf32> to vector<8x8xf32>
    %c0_29 = arith.constant 0 : index
    %c0_30 = arith.constant 0 : index
    %40 = vector.load %arg11[%c0_29, %c0_30] : memref<32x8xf32, #tpu.memory_space<vmem>>, vector<8x8xf32>
    %c0_31 = arith.constant 0 : index
    %c0_32 = arith.constant 0 : index
    %c0_33 = arith.constant 0 : index
    %41 = vector.load %arg12[%c0_31, %c0_32, %c0_33] : memref<4x8x8xf32, #tpu.memory_space<vmem>>, vector<1x8x8xf32>
    %42 = vector.shape_cast %41 : vector<1x8x8xf32> to vector<8x8xf32>
    %cst_34 = arith.constant dense<0.000000e+00> : vector<8x8xf32>
    %43 = tpu.matmul %39, %40, %cst_34 {dimension_numbers = #tpu.dot_dimension_numbers<[1], [0], [0], [1], [0, 0, 1, 1], [], []>} : vector<8x8xf32>, vector<8x8xf32>, vector<8x8xf32> -> vector<8x8xf32>
    %44 = arith.addf %43, %29 : vector<8x8xf32>
    %cst_35 = arith.constant dense<0xFF800000> : vector<8xf32>
    %45 = vector.multi_reduction <maximumf>, %44, %cst_35 [1] : vector<8x8xf32> to vector<8xf32>
    %46 = vector.shape_cast %45 : vector<8xf32> to vector<8x1xf32>
    %47 = vector.broadcast %46 : vector<8x1xf32> to vector<8x8xf32>
    %48 = arith.subf %44, %47 : vector<8x8xf32>
    %49 = math.exp %48 : vector<8x8xf32>
    %cst_36 = arith.constant dense<0.000000e+00> : vector<8xf32>
    %50 = vector.multi_reduction <add>, %49, %cst_36 [1] : vector<8x8xf32> to vector<8xf32>
    %51 = vector.shape_cast %50 : vector<8xf32> to vector<8x1xf32>
    %52 = tpu.reciprocal %51 {approx = true} : vector<8x1xf32> -> vector<8x1xf32>
    %53 = vector.broadcast %52 : vector<8x1xf32> to vector<8x8xf32>
    %54 = arith.mulf %49, %53 : vector<8x8xf32>
    %cst_37 = arith.constant dense<0.000000e+00> : vector<8x8xf32>
    %55 = tpu.matmul %54, %42, %cst_37 {dimension_numbers = #tpu.dot_dimension_numbers<[1], [0], [0], [1], [0, 0, 1, 1], [], []>} : vector<8x8xf32>, vector<8x8xf32>, vector<8x8xf32> -> vector<8x8xf32>
    %c1_38 = arith.constant 1 : index
    %c0_39 = arith.constant 0 : index
    %c0_40 = arith.constant 0 : index
    %56 = vector.load %arg13[%c1_38, %c0_39, %c0_40] : memref<4x8x8xf32, #tpu.memory_space<vmem>>, vector<1x8x8xf32>
    %57 = vector.shape_cast %56 : vector<1x8x8xf32> to vector<8x8xf32>
    %c8 = arith.constant 8 : index
    %c0_41 = arith.constant 0 : index
    %58 = vector.load %arg11[%c8, %c0_41] : memref<32x8xf32, #tpu.memory_space<vmem>>, vector<8x8xf32>
    %c1_42 = arith.constant 1 : index
    %c0_43 = arith.constant 0 : index
    %c0_44 = arith.constant 0 : index
    %59 = vector.load %arg12[%c1_42, %c0_43, %c0_44] : memref<4x8x8xf32, #tpu.memory_space<vmem>>, vector<1x8x8xf32>
    %60 = vector.shape_cast %59 : vector<1x8x8xf32> to vector<8x8xf32>
    %cst_45 = arith.constant dense<0.000000e+00> : vector<8x8xf32>
    %61 = tpu.matmul %57, %58, %cst_45 {dimension_numbers = #tpu.dot_dimension_numbers<[1], [0], [0], [1], [0, 0, 1, 1], [], []>} : vector<8x8xf32>, vector<8x8xf32>, vector<8x8xf32> -> vector<8x8xf32>
    %62 = arith.addf %61, %29 : vector<8x8xf32>
    %cst_46 = arith.constant dense<0xFF800000> : vector<8xf32>
    %63 = vector.multi_reduction <maximumf>, %62, %cst_46 [1] : vector<8x8xf32> to vector<8xf32>
    %64 = vector.shape_cast %63 : vector<8xf32> to vector<8x1xf32>
    %65 = vector.broadcast %64 : vector<8x1xf32> to vector<8x8xf32>
    %66 = arith.subf %62, %65 : vector<8x8xf32>
    %67 = math.exp %66 : vector<8x8xf32>
    %cst_47 = arith.constant dense<0.000000e+00> : vector<8xf32>
    %68 = vector.multi_reduction <add>, %67, %cst_47 [1] : vector<8x8xf32> to vector<8xf32>
    %69 = vector.shape_cast %68 : vector<8xf32> to vector<8x1xf32>
    %70 = tpu.reciprocal %69 {approx = true} : vector<8x1xf32> -> vector<8x1xf32>
    %71 = vector.broadcast %70 : vector<8x1xf32> to vector<8x8xf32>
    %72 = arith.mulf %67, %71 : vector<8x8xf32>
    %cst_48 = arith.constant dense<0.000000e+00> : vector<8x8xf32>
    %73 = tpu.matmul %72, %60, %cst_48 {dimension_numbers = #tpu.dot_dimension_numbers<[1], [0], [0], [1], [0, 0, 1, 1], [], []>} : vector<8x8xf32>, vector<8x8xf32>, vector<8x8xf32> -> vector<8x8xf32>
    %c2_49 = arith.constant 2 : index
    %c0_50 = arith.constant 0 : index
    %c0_51 = arith.constant 0 : index
    %74 = vector.load %arg13[%c2_49, %c0_50, %c0_51] : memref<4x8x8xf32, #tpu.memory_space<vmem>>, vector<1x8x8xf32>
    %75 = vector.shape_cast %74 : vector<1x8x8xf32> to vector<8x8xf32>
    %c16 = arith.constant 16 : index
    %c0_52 = arith.constant 0 : index
    %76 = vector.load %arg11[%c16, %c0_52] : memref<32x8xf32, #tpu.memory_space<vmem>>, vector<8x8xf32>
    %c2_53 = arith.constant 2 : index
    %c0_54 = arith.constant 0 : index
    %c0_55 = arith.constant 0 : index
    %77 = vector.load %arg12[%c2_53, %c0_54, %c0_55] : memref<4x8x8xf32, #tpu.memory_space<vmem>>, vector<1x8x8xf32>
    %78 = vector.shape_cast %77 : vector<1x8x8xf32> to vector<8x8xf32>
    %cst_56 = arith.constant dense<0.000000e+00> : vector<8x8xf32>
    %79 = tpu.matmul %75, %76, %cst_56 {dimension_numbers = #tpu.dot_dimension_numbers<[1], [0], [0], [1], [0, 0, 1, 1], [], []>} : vector<8x8xf32>, vector<8x8xf32>, vector<8x8xf32> -> vector<8x8xf32>
    %80 = arith.addf %79, %29 : vector<8x8xf32>
    %cst_57 = arith.constant dense<0xFF800000> : vector<8xf32>
    %81 = vector.multi_reduction <maximumf>, %80, %cst_57 [1] : vector<8x8xf32> to vector<8xf32>
    %82 = vector.shape_cast %81 : vector<8xf32> to vector<8x1xf32>
    %83 = vector.broadcast %82 : vector<8x1xf32> to vector<8x8xf32>
    %84 = arith.subf %80, %83 : vector<8x8xf32>
    %85 = math.exp %84 : vector<8x8xf32>
    %cst_58 = arith.constant dense<0.000000e+00> : vector<8xf32>
    %86 = vector.multi_reduction <add>, %85, %cst_58 [1] : vector<8x8xf32> to vector<8xf32>
    %87 = vector.shape_cast %86 : vector<8xf32> to vector<8x1xf32>
    %88 = tpu.reciprocal %87 {approx = true} : vector<8x1xf32> -> vector<8x1xf32>
    %89 = vector.broadcast %88 : vector<8x1xf32> to vector<8x8xf32>
    %90 = arith.mulf %85, %89 : vector<8x8xf32>
    %cst_59 = arith.constant dense<0.000000e+00> : vector<8x8xf32>
    %91 = tpu.matmul %90, %78, %cst_59 {dimension_numbers = #tpu.dot_dimension_numbers<[1], [0], [0], [1], [0, 0, 1, 1], [], []>} : vector<8x8xf32>, vector<8x8xf32>, vector<8x8xf32> -> vector<8x8xf32>
    %c3_60 = arith.constant 3 : index
    %c0_61 = arith.constant 0 : index
    %c0_62 = arith.constant 0 : index
    %92 = vector.load %arg13[%c3_60, %c0_61, %c0_62] : memref<4x8x8xf32, #tpu.memory_space<vmem>>, vector<1x8x8xf32>
    %93 = vector.shape_cast %92 : vector<1x8x8xf32> to vector<8x8xf32>
    %c24 = arith.constant 24 : index
    %c0_63 = arith.constant 0 : index
    %94 = vector.load %arg11[%c24, %c0_63] : memref<32x8xf32, #tpu.memory_space<vmem>>, vector<8x8xf32>
    %c3_64 = arith.constant 3 : index
    %c0_65 = arith.constant 0 : index
    %c0_66 = arith.constant 0 : index
    %95 = vector.load %arg12[%c3_64, %c0_65, %c0_66] : memref<4x8x8xf32, #tpu.memory_space<vmem>>, vector<1x8x8xf32>
    %96 = vector.shape_cast %95 : vector<1x8x8xf32> to vector<8x8xf32>
    %cst_67 = arith.constant dense<0.000000e+00> : vector<8x8xf32>
    %97 = tpu.matmul %93, %94, %cst_67 {dimension_numbers = #tpu.dot_dimension_numbers<[1], [0], [0], [1], [0, 0, 1, 1], [], []>} : vector<8x8xf32>, vector<8x8xf32>, vector<8x8xf32> -> vector<8x8xf32>
    %98 = arith.addf %97, %29 : vector<8x8xf32>
    %cst_68 = arith.constant dense<0xFF800000> : vector<8xf32>
    %99 = vector.multi_reduction <maximumf>, %98, %cst_68 [1] : vector<8x8xf32> to vector<8xf32>
    %100 = vector.shape_cast %99 : vector<8xf32> to vector<8x1xf32>
    %101 = vector.broadcast %100 : vector<8x1xf32> to vector<8x8xf32>
    %102 = arith.subf %98, %101 : vector<8x8xf32>
    %103 = math.exp %102 : vector<8x8xf32>
    %cst_69 = arith.constant dense<0.000000e+00> : vector<8xf32>
    %104 = vector.multi_reduction <add>, %103, %cst_69 [1] : vector<8x8xf32> to vector<8xf32>
    %105 = vector.shape_cast %104 : vector<8xf32> to vector<8x1xf32>
    %106 = tpu.reciprocal %105 {approx = true} : vector<8x1xf32> -> vector<8x1xf32>
    %107 = vector.broadcast %106 : vector<8x1xf32> to vector<8x8xf32>
    %108 = arith.mulf %103, %107 : vector<8x8xf32>
    %cst_70 = arith.constant dense<0.000000e+00> : vector<8x8xf32>
    %109 = tpu.matmul %108, %96, %cst_70 {dimension_numbers = #tpu.dot_dimension_numbers<[1], [0], [0], [1], [0, 0, 1, 1], [], []>} : vector<8x8xf32>, vector<8x8xf32>, vector<8x8xf32> -> vector<8x8xf32>
    %110 = tpu.concatenate %55, %73, %91, %109 in 1 : vector<8x8xf32>, vector<8x8xf32>, vector<8x8xf32>, vector<8x8xf32> -> vector<8x32xf32>
    %c0_71 = arith.constant 0 : index
    %c0_72 = arith.constant 0 : index
    %c0_73 = arith.constant 0 : index
    %111 = vector.load %arg14[%c0_71, %c0_72, %c0_73] : memref<1x8x32xf32, #tpu.memory_space<vmem>>, vector<1x8x32xf32>
    %112 = vector.shape_cast %111 : vector<1x8x32xf32> to vector<8x32xf32>
    %113 = vector.shape_cast %110 : vector<8x32xf32> to vector<1x8x32xf32>
    tpu.vector_store %arg14[%c0_71, %c0_72, %c0_73], %113 {strides = array<i32>} : memref<1x8x32xf32, #tpu.memory_space<vmem>>, vector<1x8x32xf32>,
    %c0_74 = arith.constant 0 : index
    %c0_75 = arith.constant 0 : index
    %c0_76 = arith.constant 0 : index
    %114 = vector.load %arg14[%c0_74, %c0_75, %c0_76] : memref<1x8x32xf32, #tpu.memory_space<vmem>>, vector<1x8x32xf32>
    %115 = vector.shape_cast %114 : vector<1x8x32xf32> to vector<8x32xf32>
    %c0_77 = arith.constant 0 : index
    %c0_78 = arith.constant 0 : index
    %c0_79 = arith.constant 0 : index
    %116 = vector.load %arg9[%c0_77, %c0_78, %c0_79] : memref<1x8x32xf32, #tpu.memory_space<vmem>>, vector<1x8x32xf32>
    %117 = vector.shape_cast %116 : vector<1x8x32xf32> to vector<8x32xf32>
    %118 = vector.shape_cast %115 : vector<8x32xf32> to vector<1x8x32xf32>
    tpu.vector_store %arg9[%c0_77, %c0_78, %c0_79], %118 {strides = array<i32>} : memref<1x8x32xf32, #tpu.memory_space<vmem>>, vector<1x8x32xf32>,
    return
  }
  func.func @transform_0(%arg0: i32, %arg1: i32) -> (i32, i32, i32) {
    %c0_i32 = arith.constant 0 : i32
    %c0_i32_0 = arith.constant 0 : i32
    return %arg0, %arg1, %c0_i32 : i32, i32, i32
  }
  func.func @transform_1(%arg0: i32, %arg1: i32) -> (i32, i32, i32) {
    %c0_i32 = arith.constant 0 : i32
    %c0_i32_0 = arith.constant 0 : i32
    %c0_i32_1 = arith.constant 0 : i32
    return %arg0, %c0_i32, %c0_i32_0 : i32, i32, i32
  }
  func.func @transform_2(%arg0: i32, %arg1: i32) -> (i32, i32, i32) {
    %c0_i32 = arith.constant 0 : i32
    %c0_i32_0 = arith.constant 0 : i32
    %c0_i32_1 = arith.constant 0 : i32
    return %arg0, %c0_i32, %c0_i32_0 : i32, i32, i32
  }
  func.func @transform_3(%arg0: i32, %arg1: i32) -> (i32, i32) {
    %c0_i32 = arith.constant 0 : i32
    %c0_i32_0 = arith.constant 0 : i32
    %c0_i32_1 = arith.constant 0 : i32
    return %c0_i32, %c0_i32_0 : i32, i32
  }
  func.func @transform_4(%arg0: i32, %arg1: i32) -> (i32, i32) {
    %c0_i32 = arith.constant 0 : i32
    %c0_i32_0 = arith.constant 0 : i32
    %c0_i32_1 = arith.constant 0 : i32
    return %c0_i32, %c0_i32_0 : i32, i32
  }
  func.func @transform_5(%arg0: i32, %arg1: i32) -> (i32, i32) {
    %c0_i32 = arith.constant 0 : i32
    %c0_i32_0 = arith.constant 0 : i32
    %c0_i32_1 = arith.constant 0 : i32
    return %c0_i32, %c0_i32_0 : i32, i32
  }
  func.func @transform_6(%arg0: i32, %arg1: i32) -> (i32, i32) {
    %c0_i32 = arith.constant 0 : i32
    %c0_i32_0 = arith.constant 0 : i32
    %c0_i32_1 = arith.constant 0 : i32
    return %c0_i32, %c0_i32_0 : i32, i32
  }
  func.func @transform_7(%arg0: i32, %arg1: i32) -> (i32, i32, i32) {
    %c0_i32 = arith.constant 0 : i32
    %c0_i32_0 = arith.constant 0 : i32
    return %arg0, %arg1, %c0_i32 : i32, i32, i32
  }
  func.func @transform_8(%arg0: i32, %arg1: i32) -> (i32, i32, i32) {
    %c0_i32 = arith.constant 0 : i32
    %c0_i32_0 = arith.constant 0 : i32
    return %arg0, %arg1, %c0_i32 : i32, i32, i32
  }
}

</mosaic_0001>

<llo_original>
// kernel: tpu_custom_call.1
$region0: #{tpu_custom_call.1}
  #allocation0 [shape = 'u32[]', space=smem, size = 0x4, offset = 0x4, fixed_abs, tag = 'smem constant byte address 0x4 - core index']
  #allocation1 [shape = 'u32[144,128]{1,0:T(1,128)}', space=vmem, size = 0x12000, scoped, tag = 'internal scratch']
  #allocation2 [shape = 'f32[32,8]{1,0:T(8,128)}', space=vmem, size = 0x4000, scoped, tag = 'scratch operand']
  #allocation3 [shape = 'f32[4,8,8]{2,1,0:T(8,128)}', space=vmem, size = 0x4000, scoped, tag = 'scratch operand']
  #allocation4 [shape = 'f32[4,8,8]{2,1,0:T(8,128)}', space=vmem, size = 0x4000, scoped, tag = 'scratch operand']
  #allocation5 [shape = 'f32[1,8,32]{2,1,0:T(8,128)}', space=vmem, size = 0x1000, scoped, tag = 'scratch operand']
  %s0 = inlined_call_operand.hbm [shape: f32[2,8,32], index: 0, kind: input, shape index: {}]
  %s1 = inlined_call_operand.hbm [shape: f32[2,8,32], index: 1, kind: input, shape index: {}]
  %s2 = inlined_call_operand.vmem [shape: f32[2,1,8], index: 2, kind: input, shape index: {}]
  %s3 = inlined_call_operand.hbm [shape: f32[32,32], index: 3, kind: input, shape index: {}]
  %s4 = inlined_call_operand.vmem [shape: f32[1,32], index: 4, kind: input, shape index: {}]
  %s5 = inlined_call_operand.hbm [shape: f32[32,64], index: 5, kind: input, shape index: {}]
  %s6 = inlined_call_operand.vmem [shape: f32[1,64], index: 6, kind: input, shape index: {}]
  %s7 = inlined_call_operand.hbm [shape: f32[2,8,32], index: 7, kind: output, shape index: {0}]
  %s8 = inlined_call_operand.hbm [shape: f32[2,8,8], index: 8, kind: output, shape index: {1}]
  %9 = xla_tuple %s7, %s8
  %s10 = sld [smem:[#allocation0]]
  $region89: #{tpu_custom_call.1} parent=0
    _
  %s12 = ssub.s32 1, %s10
  %s13 = scalar_select 0, %s12, %s10
  $region1: #{tpu_custom_call.1} parent=0
    #allocation6 [shape = 'u8[8192]{0}', space=vmem, size = 0x2000, scoped, tag = 'input window, operand 0']
    #allocation7 [shape = 's32[2]{0}', space=sflag, size = 0x8, scoped, tag = 'scoped memory for tpu_custom_call.1']
    #allocation8 [shape = 's32[2]{0}', space=sflag, size = 0x8, scoped, tag = 'scoped memory for tpu_custom_call.1']
    #allocation9 [shape = 'u8[8192]{0}', space=vmem, size = 0x2000, scoped, tag = 'input window, operand 1']
    #allocation10 [shape = 's32[2]{0}', space=sflag, size = 0x8, scoped, tag = 'scoped memory for tpu_custom_call.1']
    #allocation11 [shape = 'u8[16384]{0}', space=vmem, size = 0x4000, scoped, tag = 'input window, operand 3, single buffered']
    #allocation12 [shape = 'u8[16384]{0}', space=vmem, size = 0x4000, scoped, tag = 'input window, operand 5, single buffered']
    #allocation13 [shape = 's32[1]{0}', space=sflag, size = 0x4, scoped, tag = 'scoped memory for tpu_custom_call.1']
    #allocation14 [shape = 'u8[8192]{0}', space=vmem, size = 0x2000, scoped, tag = 'output window, operand 0']
    #allocation15 [shape = 'u8[8192]{0}', space=vmem, size = 0x2000, scoped, tag = 'output window, operand 1']
    #allocation16 [shape = 's32[2]{0}', space=sflag, size = 0x8, scoped, tag = 'scoped memory for tpu_custom_call.1']
    %14 = vsyncpa [#allocation7], 0
    %s15 = scalar_lea.sflag [#allocation7], 1
    %16 = vsyncpa %s15, 0
    %17 = vsyncpa [#allocation10], 0
    %s18 = scalar_lea.sflag [#allocation10], 1
    %19 = vsyncpa %s18, 0
    %20 = vsyncpa [#allocation13], 0
    %21 = vsyncpa [#allocation8], 0
    %s22 = scalar_lea.sflag [#allocation8], 1
    %23 = vsyncpa %s22, 0
    %24 = vsyncpa [#allocation16], 0
    %s25 = scalar_lea.sflag [#allocation16], 1
    %26 = vsyncpa %s25, 0
    loop: start=0, step=1, limit=4
    $region2: #{tpu_custom_call.1} parent=1 // loop_pre_header
      _
    $region3: #{tpu_custom_call.1} parent=1 // loop_header
      %s28 = sphi 0, %s32
      %p29 = scmp.ge.s32.totalorder %s28, 4
      %s35 = sphi 0, %s47
      %s36 = sphi 0, %s43
      %s37 = sphi 0, %s35
      %s38 = sphi 0, %s36
      %s39 = sphi 0, %s37
      %s40 = sphi 0, %s38
      %s52 = sphi 0, %s54
      %s55 = sphi 0, %s52
      %s56 = sphi 0, %s55
      %s72 = sphi 0, %s56
      %s78 = sphi 0, %s80
      %s81 = sphi 0, %s78
      %s82 = sphi 0, %s81
      %s98 = sphi 0, %s82
      %s104 = sphi 0, %s106
      %s107 = sphi 0, %s104
      %s108 = sphi 0, %s107
      %s124 = sphi 0, %s108
      %s128 = sphi 0, %s128
      %s130 = sphi 0, %s128
      %s131 = sphi 0, %s130
      %s145 = sphi 0, %s131
      %s149 = sphi 0, %s149
      %s151 = sphi 0, %s149
      %s152 = sphi 0, %s151
      %s166 = sphi 0, %s152
      %s170 = sphi 0, %s170
      %s172 = sphi 0, %s170
      %s173 = sphi 0, %s172
      %s187 = sphi 0, %s173
      %s191 = sphi 0, %s191
      %s193 = sphi 0, %s191
      %s194 = sphi 0, %s193
      %s208 = sphi 0, %s194
      %s216 = sphi 0, %s218
      %s219 = sphi 0, %s216
      %s220 = sphi 0, %s219
      %s236 = sphi 0, %s220
      %s244 = sphi 0, %s246
      %s247 = sphi 0, %s244
      %s248 = sphi 0, %s247
      %s264 = sphi 0, %s248
    $region4: #{tpu_custom_call.1} parent=1 // loop_header_branch
      %31 = sbr.rel (%p29) target = $region8
    $region5: #{tpu_custom_call.1} parent=1 // loop_body
      %s33 = ssub.s32 %s28, 1
      %s34 = ssub.s32 %s28, 2
      %s41 = sadd.s32 1, %s36
      %p42 = scmp.ge.s32.totalorder %s41, 1
      %s43 = scalar_select %p42, 0, %s41
      %s44 = sadd.s32 1, %s35
      %s45 = scalar_select %p42, %s44, %s35
      %p46 = scmp.ge.s32.totalorder %s45, 2
      %s47 = scalar_select %p46, 0, %s45
      %s48 = ssub.s32 %s35, %s47
      %s49 = ssub.s32 %s36, %s43
      %s50 = sor.u32 %s48, %s49
      %p51 = scmp.eq.s32.totalorder %s50, 0
      %s53 = sadd.s32 %s52, 1
      %s54 = scalar_select %p51, %s52, %s53
      %p57 = pneg %p51
      %p58 = scmp.eq.s32.totalorder %s28, 1
      %p59 = por %p57, %p58
      %p60 = scmp.ne.s32.totalorder %s52, %s55
      %p61 = scmp.eq.s32.totalorder %s28, 0
      %p62 = por %p60, %p61
      %p63 = scmp.ne.s32.totalorder %s52, %s55
      %p64 = scmp.eq.s32.totalorder %s33, 1
      %p65 = por %p63, %p64
      %p66 = scmp.ne.s32.totalorder %s55, %s56
      %p67 = scmp.eq.s32.totalorder %s33, 0
      %p68 = por %p66, %p67
      %p69 = scmp.ne.s32.totalorder %s55, %s56
      %p70 = scmp.eq.s32.totalorder %s34, 1
      %p71 = por %p69, %p70
      %p73 = scmp.ne.s32.totalorder %s56, %s72
      %p74 = scmp.eq.s32.totalorder %s34, 0
      %p75 = por %p73, %p74
      %s76 = ssub.s32 %s35, %s47
      %p77 = scmp.eq.s32.totalorder %s76, 0
      %s79 = sadd.s32 %s78, 1
      %s80 = scalar_select %p77, %s78, %s79
      %p83 = pneg %p77
      %p84 = scmp.eq.s32.totalorder %s28, 1
      %p85 = por %p83, %p84
      %p86 = scmp.ne.s32.totalorder %s78, %s81
      %p87 = scmp.eq.s32.totalorder %s28, 0
      %p88 = por %p86, %p87
      %p89 = scmp.ne.s32.totalorder %s78, %s81
      %p90 = scmp.eq.s32.totalorder %s33, 1
      %p91 = por %p89, %p90
      %p92 = scmp.ne.s32.totalorder %s81, %s82
      %p93 = scmp.eq.s32.totalorder %s33, 0
      %p94 = por %p92, %p93
      %p95 = scmp.ne.s32.totalorder %s81, %s82
      %p96 = scmp.eq.s32.totalorder %s34, 1
      %p97 = por %p95, %p96
      %p99 = scmp.ne.s32.totalorder %s82, %s98
      %p100 = scmp.eq.s32.totalorder %s34, 0
      %p101 = por %p99, %p100
      %s102 = ssub.s32 %s35, %s47
      %p103 = scmp.eq.s32.totalorder %s102, 0
      %s105 = sadd.s32 %s104, 1
      %s106 = scalar_select %p103, %s104, %s105
      %p109 = pneg %p103
      %p110 = scmp.eq.s32.totalorder %s28, 1
      %p111 = por %p109, %p110
      %p112 = scmp.ne.s32.totalorder %s104, %s107
      %p113 = scmp.eq.s32.totalorder %s28, 0
      %p114 = por %p112, %p113
      %p115 = scmp.ne.s32.totalorder %s104, %s107
      %p116 = scmp.eq.s32.totalorder %s33, 1
      %p117 = por %p115, %p116
      %p118 = scmp.ne.s32.totalorder %s107, %s108
      %p119 = scmp.eq.s32.totalorder %s33, 0
      %p120 = por %p118, %p119
      %p121 = scmp.ne.s32.totalorder %s107, %s108
      %p122 = scmp.eq.s32.totalorder %s34, 1
      %p123 = por %p121, %p122
      %p125 = scmp.ne.s32.totalorder %s108, %s124
      %p126 = scmp.eq.s32.totalorder %s34, 0
      %p127 = por %p125, %p126
      %s129 = sadd.s32 %s128, 1
      %p132 = scmp.eq.s32.totalorder %s28, 1
      %p133 = scmp.ne.s32.totalorder %s128, %s130
      %p134 = scmp.eq.s32.totalorder %s28, 0
      %p135 = por %p133, %p134
      %p136 = scmp.ne.s32.totalorder %s128, %s130
      %p137 = scmp.eq.s32.totalorder %s33, 1
      %p138 = por %p136, %p137
      %p139 = scmp.ne.s32.totalorder %s130, %s131
      %p140 = scmp.eq.s32.totalorder %s33, 0
      %p141 = por %p139, %p140
      %p142 = scmp.ne.s32.totalorder %s130, %s131
      %p143 = scmp.eq.s32.totalorder %s34, 1
      %p144 = por %p142, %p143
      %p146 = scmp.ne.s32.totalorder %s131, %s145
      %p147 = scmp.eq.s32.totalorder %s34, 0
      %p148 = por %p146, %p147
      %s150 = sadd.s32 %s149, 1
      %p153 = scmp.eq.s32.totalorder %s28, 1
      %p154 = scmp.ne.s32.totalorder %s149, %s151
      %p155 = scmp.eq.s32.totalorder %s28, 0
      %p156 = por %p154, %p155
      %p157 = scmp.ne.s32.totalorder %s149, %s151
      %p158 = scmp.eq.s32.totalorder %s33, 1
      %p159 = por %p157, %p158
      %p160 = scmp.ne.s32.totalorder %s151, %s152
      %p161 = scmp.eq.s32.totalorder %s33, 0
      %p162 = por %p160, %p161
      %p163 = scmp.ne.s32.totalorder %s151, %s152
      %p164 = scmp.eq.s32.totalorder %s34, 1
      %p165 = por %p163, %p164
      %p167 = scmp.ne.s32.totalorder %s152, %s166
      %p168 = scmp.eq.s32.totalorder %s34, 0
      %p169 = por %p167, %p168
      %s171 = sadd.s32 %s170, 1
      %p174 = scmp.eq.s32.totalorder %s28, 1
      %p175 = scmp.ne.s32.totalorder %s170, %s172
      %p176 = scmp.eq.s32.totalorder %s28, 0
      %p177 = por %p175, %p176
      %p178 = scmp.ne.s32.totalorder %s170, %s172
      %p179 = scmp.eq.s32.totalorder %s33, 1
      %p180 = por %p178, %p179
      %p181 = scmp.ne.s32.totalorder %s172, %s173
      %p182 = scmp.eq.s32.totalorder %s33, 0
      %p183 = por %p181, %p182
      %p184 = scmp.ne.s32.totalorder %s172, %s173
      %p185 = scmp.eq.s32.totalorder %s34, 1
      %p186 = por %p184, %p185
      %p188 = scmp.ne.s32.totalorder %s173, %s187
      %p189 = scmp.eq.s32.totalorder %s34, 0
      %p190 = por %p188, %p189
      %s192 = sadd.s32 %s191, 1
      %p195 = scmp.eq.s32.totalorder %s28, 1
      %p196 = scmp.ne.s32.totalorder %s191, %s193
      %p197 = scmp.eq.s32.totalorder %s28, 0
      %p198 = por %p196, %p197
      %p199 = scmp.ne.s32.totalorder %s191, %s193
      %p200 = scmp.eq.s32.totalorder %s33, 1
      %p201 = por %p199, %p200
      %p202 = scmp.ne.s32.totalorder %s193, %s194
      %p203 = scmp.eq.s32.totalorder %s33, 0
      %p204 = por %p202, %p203
      %p205 = scmp.ne.s32.totalorder %s193, %s194
      %p206 = scmp.eq.s32.totalorder %s34, 1
      %p207 = por %p205, %p206
      %p209 = scmp.ne.s32.totalorder %s194, %s208
      %p210 = scmp.eq.s32.totalorder %s34, 0
      %p211 = por %p209, %p210
      %s212 = ssub.s32 %s35, %s47
      %s213 = ssub.s32 %s36, %s43
      %s214 = sor.u32 %s212, %s213
      %p215 = scmp.eq.s32.totalorder %s214, 0
      %s217 = sadd.s32 %s216, 1
      %s218 = scalar_select %p215, %s216, %s217
      %p221 = pneg %p215
      %p222 = scmp.eq.s32.totalorder %s28, 1
      %p223 = por %p221, %p222
      %p224 = scmp.ne.s32.totalorder %s216, %s219
      %p225 = scmp.eq.s32.totalorder %s28, 0
      %p226 = por %p224, %p225
      %p227 = scmp.ne.s32.totalorder %s216, %s219
      %p228 = scmp.eq.s32.totalorder %s33, 1
      %p229 = por %p227, %p228
      %p230 = scmp.ne.s32.totalorder %s219, %s220
      %p231 = scmp.eq.s32.totalorder %s33, 0
      %p232 = por %p230, %p231
      %p233 = scmp.ne.s32.totalorder %s219, %s220
      %p234 = scmp.eq.s32.totalorder %s34, 1
      %p235 = por %p233, %p234
      %p237 = scmp.ne.s32.totalorder %s220, %s236
      %p238 = scmp.eq.s32.totalorder %s34, 0
      %p239 = por %p237, %p238
      %s240 = ssub.s32 %s35, %s47
      %s241 = ssub.s32 %s36, %s43
      %s242 = sor.u32 %s240, %s241
      %p243 = scmp.eq.s32.totalorder %s242, 0
      %s245 = sadd.s32 %s244, 1
      %s246 = scalar_select %p243, %s244, %s245
      %p249 = pneg %p243
      %p250 = scmp.eq.s32.totalorder %s28, 1
      %p251 = por %p249, %p250
      %p252 = scmp.ne.s32.totalorder %s244, %s247
      %p253 = scmp.eq.s32.totalorder %s28, 0
      %p254 = por %p252, %p253
      %p255 = scmp.ne.s32.totalorder %s244, %s247
      %p256 = scmp.eq.s32.totalorder %s33, 1
      %p257 = por %p255, %p256
      %p258 = scmp.ne.s32.totalorder %s247, %s248
      %p259 = scmp.eq.s32.totalorder %s33, 0
      %p260 = por %p258, %p259
      %p261 = scmp.ne.s32.totalorder %s247, %s248
      %p262 = scmp.eq.s32.totalorder %s34, 1
      %p263 = por %p261, %p262
      %p265 = scmp.ne.s32.totalorder %s248, %s264
      %p266 = scmp.eq.s32.totalorder %s34, 0
      %p267 = por %p265, %p266
      %p268 = scmp.le.s32.totalorder 1, %s28
      %p269 = scmp.lt.s32.totalorder %s28, 3
      %p270 = pnand %p268, %p269
      %p271 = pneg %p270
      // Predicated region
      $region9: #{tpu_custom_call.1} parent=5 // pred_check
        _
      $region10: #{tpu_custom_call.1} parent=5 // pred_check_branch
        %273 = sbr.rel (%p270) target = $region12
      $region11: #{tpu_custom_call.1} parent=5 // pred_region
        %s274 = ssub.s32 %s28, 1
        // Predicated region
        $region13: #{tpu_custom_call.1} parent=11 // pred_check
          %p275 = pneg %p141
        $region14: #{tpu_custom_call.1} parent=11 // pred_check_branch
          %277 = sbr.rel (%p275) target = $region16
        $region15: #{tpu_custom_call.1} parent=11 // pred_region
          %s279 = ssub.s32 512, 512
          %280 = vsyncadd [#allocation10], %s279
          %s281 = sshll.u32 [#allocation11], 4
          %s282 = int_to_ptr.vmem [resolvable:$true] %s281
          %287 = dma.hbm_to_vmem [thread:$0]  %s3, 512, %s282, [#allocation10], 128, 128, 8
        $region16: #{tpu_custom_call.1} parent=11 // pred_fallthru
          _
        // Predicated region
        $region17: #{tpu_custom_call.1} parent=11 // pred_check
          %p288 = pneg %p162
        $region18: #{tpu_custom_call.1} parent=11 // pred_check_branch
          %290 = sbr.rel (%p288) target = $region20
        $region19: #{tpu_custom_call.1} parent=11 // pred_region
          _
        $region20: #{tpu_custom_call.1} parent=11 // pred_fallthru
          _
        // Predicated region
        $region21: #{tpu_custom_call.1} parent=11 // pred_check
          %p291 = pneg %p183
        $region22: #{tpu_custom_call.1} parent=11 // pred_check_branch
          %293 = sbr.rel (%p291) target = $region24
        $region23: #{tpu_custom_call.1} parent=11 // pred_region
          %s295 = ssub.s32 512, 512
          %296 = vsyncadd [#allocation13], %s295
          %s297 = sshll.u32 [#allocation12], 4
          %s298 = int_to_ptr.vmem [resolvable:$true] %s297
          %303 = dma.hbm_to_vmem [thread:$0]  %s5, 512, %s298, [#allocation13], 128, 128, 8
        $region24: #{tpu_custom_call.1} parent=11 // pred_fallthru
          _
        // Predicated region
        $region25: #{tpu_custom_call.1} parent=11 // pred_check
          %p304 = pneg %p204
        $region26: #{tpu_custom_call.1} parent=11 // pred_check_branch
          %306 = sbr.rel (%p304) target = $region28
        $region27: #{tpu_custom_call.1} parent=11 // pred_region
          _
        $region28: #{tpu_custom_call.1} parent=11 // pred_fallthru
          _
      $region12: #{tpu_custom_call.1} parent=5 // pred_fallthru
        _
      %p307 = scmp.lt.s32.totalorder %s28, 2
      // Predicated region
      $region29: #{tpu_custom_call.1} parent=5 // pred_check
        %p308 = pneg %p307
      $region30: #{tpu_custom_call.1} parent=5 // pred_check_branch
        %310 = sbr.rel (%p308) target = $region32
      $region31: #{tpu_custom_call.1} parent=5 // pred_region
        // Predicated region
        $region33: #{tpu_custom_call.1} parent=31 // pred_check
          %p311 = pneg %p62
        $region34: #{tpu_custom_call.1} parent=31 // pred_check_branch
          %313 = sbr.rel (%p311) target = $region36
        $region35: #{tpu_custom_call.1} parent=31 // pred_region
          %s314 = sand.u32 %s52, 1
          %s315 = scalar_lea.sflag [#allocation7], %s314
          %s316 = sand.u32 %s52, 1
          %s317 = smul.addr %s316, 8
          %s318 = scalar_lea.vmem [#allocation6], %s317
          %s320 = ssub.s32 128, 128
          %321 = vsyncadd %s315, %s320
          %s322 = sadd.s32 %s36, %s35
          %s323 = smul.addr %s322, 128
          %s324 = scalar_lea.hbm %s0, %s323
          %s326 = sshll.u32 %s318, 4
          %s327 = int_to_ptr.vmem [resolvable:$true] %s326
          %329 = dma.hbm_to_vmem [thread:$0]  %s324, 128, %s327, %s315
        $region36: #{tpu_custom_call.1} parent=31 // pred_fallthru
          _
        // Predicated region
        $region37: #{tpu_custom_call.1} parent=31 // pred_check
          %p330 = pneg %p88
        $region38: #{tpu_custom_call.1} parent=31 // pred_check_branch
          %332 = sbr.rel (%p330) target = $region40
        $region39: #{tpu_custom_call.1} parent=31 // pred_region
          %s333 = sand.u32 %s28, 1
          %s334 = scalar_lea.sflag [#allocation10], %s333
          %s335 = sand.u32 %s78, 1
          %s336 = smul.addr %s335, 8
          %s337 = scalar_lea.vmem [#allocation9], %s336
          %s339 = ssub.s32 128, 128
          %340 = vsyncadd %s334, %s339
          %s341 = smul.addr %s35, 128
          %s342 = scalar_lea.hbm %s1, %s341
          %s344 = sshll.u32 %s337, 4
          %s345 = int_to_ptr.vmem [resolvable:$true] %s344
          %347 = dma.hbm_to_vmem [thread:$0]  %s342, 128, %s345, %s334
        $region40: #{tpu_custom_call.1} parent=31 // pred_fallthru
          _
        // Predicated region
        $region41: #{tpu_custom_call.1} parent=31 // pred_check
          %p348 = pneg %p114
        $region42: #{tpu_custom_call.1} parent=31 // pred_check_branch
          %350 = sbr.rel (%p348) target = $region44
        $region43: #{tpu_custom_call.1} parent=31 // pred_region
          %p351 = scmp.lt.s32.totalorder %s35, 1
          %s352 = scalar_select %p351, %s35, 1
          %s353 = scalar_lea.vmem %s2, %s352
        $region44: #{tpu_custom_call.1} parent=31 // pred_fallthru
          _
      $region32: #{tpu_custom_call.1} parent=5 // pred_fallthru
        _
      %p354 = scmp.le.s32.totalorder 1, %s28
      %p355 = scmp.lt.s32.totalorder %s28, 3
      %p356 = pnand %p354, %p355
      %p357 = pneg %p356
      // Predicated region
      $region45: #{tpu_custom_call.1} parent=5 // pred_check
        _
      $region46: #{tpu_custom_call.1} parent=5 // pred_check_branch
        %359 = sbr.rel (%p356) target = $region48
      $region47: #{tpu_custom_call.1} parent=5 // pred_region
        %s360 = ssub.s32 %s28, 1
        %s361 = sand.u32 %s55, 1
        %s362 = scalar_lea.sflag [#allocation7], %s361
        %s363 = sand.u32 %s55, 1
        %s364 = smul.addr %s363, 8
        %s365 = scalar_lea.vmem [#allocation6], %s364
        // Predicated region
        $region49: #{tpu_custom_call.1} parent=47 // pred_check
          %p366 = pneg %p68
        $region50: #{tpu_custom_call.1} parent=47 // pred_check_branch
          %368 = sbr.rel (%p366) target = $region52
        $region51: #{tpu_custom_call.1} parent=47 // pred_region
          %369 = dma.done %s362, 128
        $region52: #{tpu_custom_call.1} parent=47 // pred_fallthru
          _
        %s370 = sand.u32 %s33, 1
        %s371 = scalar_lea.sflag [#allocation10], %s370
        %s372 = sand.u32 %s81, 1
        %s373 = smul.addr %s372, 8
        %s374 = scalar_lea.vmem [#allocation9], %s373
        // Predicated region
        $region53: #{tpu_custom_call.1} parent=47 // pred_check
          %p375 = pneg %p94
        $region54: #{tpu_custom_call.1} parent=47 // pred_check_branch
          %377 = sbr.rel (%p375) target = $region56
        $region55: #{tpu_custom_call.1} parent=47 // pred_region
          %378 = dma.done %s371, 128
        $region56: #{tpu_custom_call.1} parent=47 // pred_fallthru
          _
        // Predicated region
        $region57: #{tpu_custom_call.1} parent=47 // pred_check
          %p379 = pneg %p141
        $region58: #{tpu_custom_call.1} parent=47 // pred_check_branch
          %381 = sbr.rel (%p379) target = $region60
        $region59: #{tpu_custom_call.1} parent=47 // pred_region
          %382 = dma.done [#allocation10], 512
        $region60: #{tpu_custom_call.1} parent=47 // pred_fallthru
          _
        // Predicated region
        $region61: #{tpu_custom_call.1} parent=47 // pred_check
          %p383 = pneg %p183
        $region62: #{tpu_custom_call.1} parent=47 // pred_check_branch
          %385 = sbr.rel (%p383) target = $region64
        $region63: #{tpu_custom_call.1} parent=47 // pred_region
          %386 = dma.done [#allocation13], 512
        $region64: #{tpu_custom_call.1} parent=47 // pred_fallthru
          _
        %s387 = sand.u32 %s55, 1
        %s388 = scalar_lea.sflag [#allocation7], %s387
        %s389 = sand.u32 %s55, 1
        %s390 = smul.addr %s389, 8
        %s391 = scalar_lea.vmem [#allocation6], %s390
        %p392 = pneg %p68
        %p393 = pneg %p65
        %s394 = sand.u32 %s33, 1
        %s395 = scalar_lea.sflag [#allocation10], %s394
        %s396 = sand.u32 %s81, 1
        %s397 = smul.addr %s396, 8
        %s398 = scalar_lea.vmem [#allocation9], %s397
        %p399 = pneg %p94
        %p400 = pneg %p91
        %p401 = scmp.lt.s32.totalorder %s37, 1
        %s402 = scalar_select %p401, %s37, 1
        %s403 = scalar_lea.vmem %s2, %s402
        %p404 = pneg %p120
        %p405 = pneg %p117
        %p406 = pneg %p141
        %p407 = pneg %p138
        %p408 = pneg %p162
        %p409 = pneg %p159
        %p410 = pneg %p183
        %p411 = pneg %p180
        %p412 = pneg %p204
        %p413 = pneg %p201
        %p414 = pneg %p232
        %p415 = pneg %p229
        %s416 = sand.u32 %s219, 1
        %s417 = scalar_lea.sflag [#allocation8], %s416
        %s418 = sand.u32 %s219, 1
        %s419 = smul.addr %s418, 8
        %s420 = scalar_lea.vmem [#allocation14], %s419
        %p421 = pneg %p260
        %p422 = pneg %p257
        %s423 = sand.u32 %s247, 1
        %s424 = scalar_lea.sflag [#allocation16], %s423
        %s425 = sand.u32 %s247, 1
        %s426 = smul.addr %s425, 8
        %s427 = scalar_lea.vmem [#allocation15], %s426
        %p428 = scmp.lt.s32.totalorder %s37, 1
        %s429 = scalar_select %p428, %s37, 1
        %s430 = scalar_lea.vmem %s2, %s429
        %p431 = scmp.eq.s32.totalorder %s38, 0
        // Predicated region
        $region65: #{tpu_custom_call.1} parent=47 // pred_check
          %p432 = pneg %p431
        $region66: #{tpu_custom_call.1} parent=47 // pred_check_branch
          %434 = sbr.rel (%p432) target = $region68
        $region67: #{tpu_custom_call.1} parent=47 // pred_region
          %v435 = vld [vmem:[%s374] sm:$0xff]
          %v436 = vld [vmem:[#allocation12] sm:$0xff]
          %v437 = vld [vmem:[#allocation12 + $0x8] sm:$0xff]
          %v438 = vld [vmem:[#allocation12 + $0x10] sm:$0xff]
          %v439 = vld [vmem:[#allocation12 + $0x18] sm:$0xff]
          %v440 = vld [vmem:[%s6] sm:$0x1]
          %v442 = vlaneseq
          %v443 = vshrl.u32 %v442, 7
          %v444 = vsub.s32 0, %v443
          %v445 = vrot.slane %v440, %v444
          %vm447 = vcmask 261120
          %v449 = vsel %vm447, %v435, 0
          %451 = vmatprep.subr.mxu0 0.0
          %452 = vmatpush1.msra.mxu0 0.0
          %453 = vmatprep.subr.mxu0 0.0
          %454 = vmatpush1.msra.mxu0 0.0
          %455 = vmatprep.subr.mxu0 0.0
          %456 = vmatpush1.msra.mxu0 0.0
          %457 = vmatprep.subr.mxu0 0.0
          %458 = vmatpush1.msra.mxu0 0.0
          %459 = vmatprep.subr.mxu0 0.0
          %460 = vmatpush1.msra.mxu0 0.0
          %461 = vmatprep.subr.mxu0 0.0
          %462 = vmatpush1.msra.mxu0 0.0
          %463 = vmatprep.subr.mxu0 0.0
          %464 = vmatpush1.msra.mxu0 0.0
          %465 = vmatprep.subr.mxu0 0.0
          %466 = vmatpush1.msra.mxu0 0.0
          %467 = vmatprep.subr.mxu0 0.0
          %468 = vmatpush1.msra.mxu0 0.0
          %469 = vmatprep.subr.mxu0 0.0
          %470 = vmatpush1.msra.mxu0 0.0
          %471 = vmatprep.subr.mxu0 0.0
          %472 = vmatpush1.msra.mxu0 0.0
          %473 = vmatprep.subr.mxu0 0.0
          %474 = vmatpush1.msra.mxu0 0.0
          %475 = vmatprep.subr.mxu0 0.0
          %476 = vmatpush1.msra.mxu0 %v439
          %477 = vmatprep.subr.mxu0 0.0
          %478 = vmatpush1.msra.mxu0 %v438
          %479 = vmatprep.subr.mxu0 0.0
          %480 = vmatpush1.msra.mxu0 %v437
          %481 = vmatprep.subr.mxu0 0.0
          %482 = vmatpush1.msra.mxu0 %v436
          %483 = vmatprep.subr.mxu0 0.0
          %484 = vmatpush2.msra.mxu0 0.0
          %485 = vmatprep.subr.mxu0 0.0
          %486 = vmatpush2.msra.mxu0 0.0
          %487 = vmatprep.subr.mxu0 0.0
          %488 = vmatpush2.msra.mxu0 0.0
          %489 = vmatprep.subr.mxu0 0.0
          %490 = vmatpush2.msra.mxu0 0.0
          %491 = vmatprep.subr.mxu0 0.0
          %492 = vmatpush2.msra.mxu0 0.0
          %493 = vmatprep.subr.mxu0 0.0
          %494 = vmatpush2.msra.mxu0 0.0
          %495 = vmatprep.subr.mxu0 0.0
          %496 = vmatpush2.msra.mxu0 0.0
          %497 = vmatprep.subr.mxu0 0.0
          %498 = vmatpush2.msra.mxu0 0.0
          %499 = vmatprep.subr.mxu0 0.0
          %500 = vmatpush2.msra.mxu0 0.0
          %501 = vmatprep.subr.mxu0 0.0
          %502 = vmatpush2.msra.mxu0 0.0
          %503 = vmatprep.subr.mxu0 0.0
          %504 = vmatpush2.msra.mxu0 0.0
          %505 = vmatprep.subr.mxu0 0.0
          %506 = vmatpush2.msra.mxu0 0.0
          %507 = vmatprep.subr.mxu0 0.0
          %508 = vmatpush2.msra.mxu0 0.0
          %509 = vmatprep.subr.mxu0 0.0
          %510 = vmatpush2.msra.mxu0 0.0
          %511 = vmatprep.subr.mxu0 0.0
          %512 = vmatpush2.msra.mxu0 0.0
          %513 = vmatprep.subr.mxu0 0.0
          %514 = vmatpush2.msra.mxu0 0.0
          %515 = vmatprep.mubr.f32.mxu0 0.0
          %516 = vmatmul.mubr.f32.gmra.mxu0 %v449
          %v517 = vpop.f32.mrf.mxu0
          %v518 = vadd.f32 %v445, %v517
          %v519 = vpop.f32.mrf.mxu0
          %520 = vdwg.mxu0
          %521 = vxpose.xlu0.b32.start [1/16] %v518, 128
          %522 = vxpose.xlu0.b32.cont [2/16] 0.0, 128
          %523 = vxpose.xlu0.b32.cont [3/16] 0.0, 128
          %524 = vxpose.xlu0.b32.cont [4/16] 0.0, 128
          %525 = vxpose.xlu0.b32.cont [5/16] 0.0, 128
          %526 = vxpose.xlu0.b32.cont [6/16] 0.0, 128
          %527 = vxpose.xlu0.b32.cont [7/16] 0.0, 128
          %528 = vxpose.xlu0.b32.cont [8/16] 0.0, 128
          %529 = vxpose.xlu0.b32.cont [9/16] 0.0, 128
          %530 = vxpose.xlu0.b32.cont [10/16] 0.0, 128
          %531 = vxpose.xlu0.b32.cont [11/16] 0.0, 128
          %532 = vxpose.xlu0.b32.cont [12/16] 0.0, 128
          %533 = vxpose.xlu0.b32.cont [13/16] 0.0, 128
          %534 = vxpose.xlu0.b32.cont [14/16] 0.0, 128
          %535 = vxpose.xlu0.b32.cont [15/16] 0.0, 128
          %536 = vxpose.xlu0.b32.end [16/16] 0.0, 128
          %v537 = vpop.trf.xlu0
          %v538 = vpop.trf.xlu0
          %v539 = vpop.trf.xlu0
          %v540 = vpop.trf.xlu0
          %v541 = vpop.trf.xlu0
          %v542 = vpop.trf.xlu0
          %v543 = vpop.trf.xlu0
          %v544 = vpop.trf.xlu0
          %v545 = vpop.trf.xlu0
          %v546 = vpop.trf.xlu0
          %v547 = vpop.trf.xlu0
          %v548 = vpop.trf.xlu0
          %v549 = vpop.trf.xlu0
          %v550 = vpop.trf.xlu0
          %v551 = vpop.trf.xlu0
          %v552 = vpop.trf.xlu0
          %vm553 = vcmask 64512
          %554 = vst.msk [vmem:[#allocation2] sm:$0xff] %vm553, %v537
          %555 = vst.msk [vmem:[#allocation2 + $0x8] sm:$0xff] %vm553, %v538
          %556 = vst.msk [vmem:[#allocation2 + $0x10] sm:$0xff] %vm553, %v539
          %557 = vst.msk [vmem:[#allocation2 + $0x18] sm:$0xff] %vm553, %v540
          %559 = vrot.lane.b32.xlu0 %v518, 96
          %v560 = vpop.permute.xlu0 %559
          %562 = vst.msk [vmem:[#allocation3] sm:$0xff] %vm553, %v560
          %563 = vrot.lane.b32.xlu0 %v518, 88
          %v564 = vpop.permute.xlu0 %563
          %s566 = scalar_lea.vmem [#allocation3], 8
          %567 = vst.msk [vmem:[%s566] sm:$0xff] %vm553, %v564
          %568 = vrot.lane.b32.xlu0 %v518, 80
          %v569 = vpop.permute.xlu0 %568
          %s571 = scalar_lea.vmem [#allocation3], 16
          %572 = vst.msk [vmem:[%s571] sm:$0xff] %vm553, %v569
          %573 = vrot.lane.b32.xlu0 %v518, 72
          %v574 = vpop.permute.xlu0 %573
          %s576 = scalar_lea.vmem [#allocation3], 24
          %577 = vst.msk [vmem:[%s576] sm:$0xff] %vm553, %v574
        $region68: #{tpu_custom_call.1} parent=47 // pred_fallthru
          _
        %v578 = vld [vmem:[%s365] sm:$0xff]
        %v579 = vld [vmem:[#allocation11] sm:$0xff]
        %v580 = vld [vmem:[#allocation11 + $0x8] sm:$0xff]
        %v581 = vld [vmem:[#allocation11 + $0x10] sm:$0xff]
        %v582 = vld [vmem:[#allocation11 + $0x18] sm:$0xff]
        %v583 = vld [vmem:[%s4] sm:$0x1]
        %v585 = vlaneseq
        %v586 = vshrl.u32 %v585, 7
        %v587 = vsub.s32 0, %v586
        %v588 = vrot.slane %v583, %v587
        %vm590 = vcmask 261120
        %v592 = vsel %vm590, %v578, 0
        %594 = vmatprep.subr.mxu0 0.0
        %595 = vmatpush1.msra.mxu0 0.0
        %596 = vmatprep.subr.mxu0 0.0
        %597 = vmatpush1.msra.mxu0 0.0
        %598 = vmatprep.subr.mxu0 0.0
        %599 = vmatpush1.msra.mxu0 0.0
        %600 = vmatprep.subr.mxu0 0.0
        %601 = vmatpush1.msra.mxu0 0.0
        %602 = vmatprep.subr.mxu0 0.0
        %603 = vmatpush1.msra.mxu0 0.0
        %604 = vmatprep.subr.mxu0 0.0
        %605 = vmatpush1.msra.mxu0 0.0
        %606 = vmatprep.subr.mxu0 0.0
        %607 = vmatpush1.msra.mxu0 0.0
        %608 = vmatprep.subr.mxu0 0.0
        %609 = vmatpush1.msra.mxu0 0.0
        %610 = vmatprep.subr.mxu0 0.0
        %611 = vmatpush1.msra.mxu0 0.0
        %612 = vmatprep.subr.mxu0 0.0
        %613 = vmatpush1.msra.mxu0 0.0
        %614 = vmatprep.subr.mxu0 0.0
        %615 = vmatpush1.msra.mxu0 0.0
        %616 = vmatprep.subr.mxu0 0.0
        %617 = vmatpush1.msra.mxu0 0.0
        %618 = vmatprep.subr.mxu0 0.0
        %619 = vmatpush1.msra.mxu0 %v582
        %620 = vmatprep.subr.mxu0 0.0
        %621 = vmatpush1.msra.mxu0 %v581
        %622 = vmatprep.subr.mxu0 0.0
        %623 = vmatpush1.msra.mxu0 %v580
        %624 = vmatprep.subr.mxu0 0.0
        %625 = vmatpush1.msra.mxu0 %v579
        %626 = vmatprep.subr.mxu0 0.0
        %627 = vmatpush2.msra.mxu0 0.0
        %628 = vmatprep.subr.mxu0 0.0
        %629 = vmatpush2.msra.mxu0 0.0
        %630 = vmatprep.subr.mxu0 0.0
        %631 = vmatpush2.msra.mxu0 0.0
        %632 = vmatprep.subr.mxu0 0.0
        %633 = vmatpush2.msra.mxu0 0.0
        %634 = vmatprep.subr.mxu0 0.0
        %635 = vmatpush2.msra.mxu0 0.0
        %636 = vmatprep.subr.mxu0 0.0
        %637 = vmatpush2.msra.mxu0 0.0
        %638 = vmatprep.subr.mxu0 0.0
        %639 = vmatpush2.msra.mxu0 0.0
        %640 = vmatprep.subr.mxu0 0.0
        %641 = vmatpush2.msra.mxu0 0.0
        %642 = vmatprep.subr.mxu0 0.0
        %643 = vmatpush2.msra.mxu0 0.0
        %644 = vmatprep.subr.mxu0 0.0
        %645 = vmatpush2.msra.mxu0 0.0
        %646 = vmatprep.subr.mxu0 0.0
        %647 = vmatpush2.msra.mxu0 0.0
        %648 = vmatprep.subr.mxu0 0.0
        %649 = vmatpush2.msra.mxu0 0.0
        %650 = vmatprep.subr.mxu0 0.0
        %651 = vmatpush2.msra.mxu0 0.0
        %652 = vmatprep.subr.mxu0 0.0
        %653 = vmatpush2.msra.mxu0 0.0
        %654 = vmatprep.subr.mxu0 0.0
        %655 = vmatpush2.msra.mxu0 0.0
        %656 = vmatprep.subr.mxu0 0.0
        %657 = vmatpush2.msra.mxu0 0.0
        %658 = vmatprep.mubr.f32.mxu0 0.0
        %659 = vmatmul.mubr.f32.gmra.mxu0 %v592
        %v660 = vpop.f32.mrf.mxu0
        %v661 = vadd.f32 %v588, %v660
        %v662 = vpop.f32.mrf.mxu0
        %663 = vdwg.mxu0
        %vm664 = vcmask 64512
        %665 = vst.msk [vmem:[#allocation4] sm:$0xff] %vm664, %v661
        %667 = vrot.lane.b32.xlu0 %v661, 120
        %v668 = vpop.permute.xlu0 %667
        %s670 = scalar_lea.vmem [#allocation4], 8
        %671 = vst.msk [vmem:[%s670] sm:$0xff] %vm664, %v668
        %672 = vrot.lane.b32.xlu0 %v661, 112
        %v673 = vpop.permute.xlu0 %672
        %s675 = scalar_lea.vmem [#allocation4], 16
        %676 = vst.msk [vmem:[%s675] sm:$0xff] %vm664, %v673
        %677 = vrot.lane.b32.xlu0 %v661, 104
        %v678 = vpop.permute.xlu0 %677
        %s680 = scalar_lea.vmem [#allocation4], 24
        %681 = vst.msk [vmem:[%s680] sm:$0xff] %vm664, %v678
        %v682 = vld [vmem:[%s430] sm:$0x1]
        %v684 = vlaneseq
        %v685 = vshrl.u32 %v684, 7
        %v686 = vsub.s32 0, %v685
        %v687 = vrot.slane %v682, %v686
        %v689 = vld [vmem:[#allocation2] sm:$0xff]
        %v690 = vld [vmem:[#allocation2 + $0x8] sm:$0xff]
        %v691 = vld [vmem:[#allocation2 + $0x10] sm:$0xff]
        %v692 = vld [vmem:[#allocation2 + $0x18] sm:$0xff]
        %v693 = vsel %vm590, %v661, 0
        %695 = vmatprep.subr.mxu0 0.0
        %696 = vmatpush1.msra.mxu0 0.0
        %697 = vmatprep.subr.mxu0 0.0
        %698 = vmatpush1.msra.mxu0 0.0
        %699 = vmatprep.subr.mxu0 0.0
        %700 = vmatpush1.msra.mxu0 0.0
        %701 = vmatprep.subr.mxu0 0.0
        %702 = vmatpush1.msra.mxu0 0.0
        %703 = vmatprep.subr.mxu0 0.0
        %704 = vmatpush1.msra.mxu0 0.0
        %705 = vmatprep.subr.mxu0 0.0
        %706 = vmatpush1.msra.mxu0 0.0
        %707 = vmatprep.subr.mxu0 0.0
        %708 = vmatpush1.msra.mxu0 0.0
        %709 = vmatprep.subr.mxu0 0.0
        %710 = vmatpush1.msra.mxu0 0.0
        %711 = vmatprep.subr.mxu0 0.0
        %712 = vmatpush1.msra.mxu0 0.0
        %713 = vmatprep.subr.mxu0 0.0
        %714 = vmatpush1.msra.mxu0 0.0
        %715 = vmatprep.subr.mxu0 0.0
        %716 = vmatpush1.msra.mxu0 0.0
        %717 = vmatprep.subr.mxu0 0.0
        %718 = vmatpush1.msra.mxu0 0.0
        %719 = vmatprep.subr.mxu0 0.0
        %720 = vmatpush1.msra.mxu0 %v692
        %721 = vmatprep.subr.mxu0 0.0
        %722 = vmatpush1.msra.mxu0 %v691
        %723 = vmatprep.subr.mxu0 0.0
        %724 = vmatpush1.msra.mxu0 %v690
        %725 = vmatprep.subr.mxu0 0.0
        %726 = vmatpush1.msra.mxu0 %v689
        %727 = vmatprep.subr.mxu0 0.0
        %728 = vmatpush2.msra.mxu0 0.0
        %729 = vmatprep.subr.mxu0 0.0
        %730 = vmatpush2.msra.mxu0 0.0
        %731 = vmatprep.subr.mxu0 0.0
        %732 = vmatpush2.msra.mxu0 0.0
        %733 = vmatprep.subr.mxu0 0.0
        %734 = vmatpush2.msra.mxu0 0.0
        %735 = vmatprep.subr.mxu0 0.0
        %736 = vmatpush2.msra.mxu0 0.0
        %737 = vmatprep.subr.mxu0 0.0
        %738 = vmatpush2.msra.mxu0 0.0
        %739 = vmatprep.subr.mxu0 0.0
        %740 = vmatpush2.msra.mxu0 0.0
        %741 = vmatprep.subr.mxu0 0.0
        %742 = vmatpush2.msra.mxu0 0.0
        %743 = vmatprep.subr.mxu0 0.0
        %744 = vmatpush2.msra.mxu0 0.0
        %745 = vmatprep.subr.mxu0 0.0
        %746 = vmatpush2.msra.mxu0 0.0
        %747 = vmatprep.subr.mxu0 0.0
        %748 = vmatpush2.msra.mxu0 0.0
        %749 = vmatprep.subr.mxu0 0.0
        %750 = vmatpush2.msra.mxu0 0.0
        %751 = vmatprep.subr.mxu0 0.0
        %752 = vmatpush2.msra.mxu0 0.0
        %753 = vmatprep.subr.mxu0 0.0
        %754 = vmatpush2.msra.mxu0 0.0
        %755 = vmatprep.subr.mxu0 0.0
        %756 = vmatpush2.msra.mxu0 0.0
        %757 = vmatprep.subr.mxu0 0.0
        %758 = vmatpush2.msra.mxu0 0.0
        %759 = vmatprep.mubr.f32.mxu0 0.0
        %760 = vmatmul.mubr.f32.gmra.mxu0 %v693
        %v761 = vpop.f32.mrf.mxu0
        %v762 = vadd.f32 0.0, %v761
        %v763 = vpop.f32.mrf.mxu0
        %764 = vdwg.mxu0
        %v765 = vmul.f32 %v762, 0.25
        %v766 = vadd.f32 %v765, %v687
        %767 = vst.msk [vmem:[%s427] sm:$0xff] %vm664, %v766
        %v768 = vld [vmem:[#allocation4] sm:$0xff]
        %v769 = vld [vmem:[#allocation2] sm:$0xff]
        %v770 = vld [vmem:[#allocation3] sm:$0xff]
        %v772 = vsel %vm664, %v768, 0
        %774 = vmatprep.subr.mxu0 0.0
        %775 = vmatpush1.msra.mxu0 0.0
        %776 = vmatprep.subr.mxu0 0.0
        %777 = vmatpush1.msra.mxu0 0.0
        %778 = vmatprep.subr.mxu0 0.0
        %779 = vmatpush1.msra.mxu0 0.0
        %780 = vmatprep.subr.mxu0 0.0
        %781 = vmatpush1.msra.mxu0 0.0
        %782 = vmatprep.subr.mxu0 0.0
        %783 = vmatpush1.msra.mxu0 0.0
        %784 = vmatprep.subr.mxu0 0.0
        %785 = vmatpush1.msra.mxu0 0.0
        %786 = vmatprep.subr.mxu0 0.0
        %787 = vmatpush1.msra.mxu0 0.0
        %788 = vmatprep.subr.mxu0 0.0
        %789 = vmatpush1.msra.mxu0 0.0
        %790 = vmatprep.subr.mxu0 0.0
        %791 = vmatpush1.msra.mxu0 0.0
        %792 = vmatprep.subr.mxu0 0.0
        %793 = vmatpush1.msra.mxu0 0.0
        %794 = vmatprep.subr.mxu0 0.0
        %795 = vmatpush1.msra.mxu0 0.0
        %796 = vmatprep.subr.mxu0 0.0
        %797 = vmatpush1.msra.mxu0 0.0
        %798 = vmatprep.subr.mxu0 0.0
        %799 = vmatpush1.msra.mxu0 0.0
        %800 = vmatprep.subr.mxu0 0.0
        %801 = vmatpush1.msra.mxu0 0.0
        %802 = vmatprep.subr.mxu0 0.0
        %803 = vmatpush1.msra.mxu0 0.0
        %804 = vmatprep.subr.mxu0 0.0
        %805 = vmatpush1.msra.mxu0 %v769
        %806 = vmatprep.subr.mxu0 0.0
        %807 = vmatpush2.msra.mxu0 0.0
        %808 = vmatprep.subr.mxu0 0.0
        %809 = vmatpush2.msra.mxu0 0.0
        %810 = vmatprep.subr.mxu0 0.0
        %811 = vmatpush2.msra.mxu0 0.0
        %812 = vmatprep.subr.mxu0 0.0
        %813 = vmatpush2.msra.mxu0 0.0
        %814 = vmatprep.subr.mxu0 0.0
        %815 = vmatpush2.msra.mxu0 0.0
        %816 = vmatprep.subr.mxu0 0.0
        %817 = vmatpush2.msra.mxu0 0.0
        %818 = vmatprep.subr.mxu0 0.0
        %819 = vmatpush2.msra.mxu0 0.0
        %820 = vmatprep.subr.mxu0 0.0
        %821 = vmatpush2.msra.mxu0 0.0
        %822 = vmatprep.subr.mxu0 0.0
        %823 = vmatpush2.msra.mxu0 0.0
        %824 = vmatprep.subr.mxu0 0.0
        %825 = vmatpush2.msra.mxu0 0.0
        %826 = vmatprep.subr.mxu0 0.0
        %827 = vmatpush2.msra.mxu0 0.0
        %828 = vmatprep.subr.mxu0 0.0
        %829 = vmatpush2.msra.mxu0 0.0
        %830 = vmatprep.subr.mxu0 0.0
        %831 = vmatpush2.msra.mxu0 0.0
        %832 = vmatprep.subr.mxu0 0.0
        %833 = vmatpush2.msra.mxu0 0.0
        %834 = vmatprep.subr.mxu0 0.0
        %835 = vmatpush2.msra.mxu0 0.0
        %836 = vmatprep.subr.mxu0 0.0
        %837 = vmatpush2.msra.mxu0 0.0
        %838 = vmatprep.mubr.f32.mxu0 0.0
        %839 = vmatmul.mubr.f32.gmra.mxu0 %v772
        %v840 = vpop.f32.mrf.mxu0
        %v841 = vadd.f32 %v687, %v840
        %v842 = vpop.f32.mrf.mxu0
        %843 = vdwg.mxu0
        %v844 = vsel %vm664, %v841, -inf
        %845 = vmax.xlane.f32.xlu0 %v844
        %v846 = vpop.xlane.xlu0 %845
        %v847 = vsub.f32 %v841, %v846
        %v848 = vmul.f32 %v847, 1.442695
        %v849 = vpow.pop %v848
        %v850 = vsel %vm664, %v849, 0.0
        %851 = vadd.xlane.f32.xlu0 %v850
        %v852 = vpop.xlane.xlu0 %851
        %v853 = vrcp.pop %v852
        %v854 = vmul.f32 %v849, %v853
        %v856 = vsel %vm664, %v854, 0
        %858 = vmatprep.subr.mxu0 0.0
        %859 = vmatpush1.msra.mxu0 0.0
        %860 = vmatprep.subr.mxu0 0.0
        %861 = vmatpush1.msra.mxu0 0.0
        %862 = vmatprep.subr.mxu0 0.0
        %863 = vmatpush1.msra.mxu0 0.0
        %864 = vmatprep.subr.mxu0 0.0
        %865 = vmatpush1.msra.mxu0 0.0
        %866 = vmatprep.subr.mxu0 0.0
        %867 = vmatpush1.msra.mxu0 0.0
        %868 = vmatprep.subr.mxu0 0.0
        %869 = vmatpush1.msra.mxu0 0.0
        %870 = vmatprep.subr.mxu0 0.0
        %871 = vmatpush1.msra.mxu0 0.0
        %872 = vmatprep.subr.mxu0 0.0
        %873 = vmatpush1.msra.mxu0 0.0
        %874 = vmatprep.subr.mxu0 0.0
        %875 = vmatpush1.msra.mxu0 0.0
        %876 = vmatprep.subr.mxu0 0.0
        %877 = vmatpush1.msra.mxu0 0.0
        %878 = vmatprep.subr.mxu0 0.0
        %879 = vmatpush1.msra.mxu0 0.0
        %880 = vmatprep.subr.mxu0 0.0
        %881 = vmatpush1.msra.mxu0 0.0
        %882 = vmatprep.subr.mxu0 0.0
        %883 = vmatpush1.msra.mxu0 0.0
        %884 = vmatprep.subr.mxu0 0.0
        %885 = vmatpush1.msra.mxu0 0.0
        %886 = vmatprep.subr.mxu0 0.0
        %887 = vmatpush1.msra.mxu0 0.0
        %888 = vmatprep.subr.mxu0 0.0
        %889 = vmatpush1.msra.mxu0 %v770
        %890 = vmatprep.subr.mxu0 0.0
        %891 = vmatpush2.msra.mxu0 0.0
        %892 = vmatprep.subr.mxu0 0.0
        %893 = vmatpush2.msra.mxu0 0.0
        %894 = vmatprep.subr.mxu0 0.0
        %895 = vmatpush2.msra.mxu0 0.0
        %896 = vmatprep.subr.mxu0 0.0
        %897 = vmatpush2.msra.mxu0 0.0
        %898 = vmatprep.subr.mxu0 0.0
        %899 = vmatpush2.msra.mxu0 0.0
        %900 = vmatprep.subr.mxu0 0.0
        %901 = vmatpush2.msra.mxu0 0.0
        %902 = vmatprep.subr.mxu0 0.0
        %903 = vmatpush2.msra.mxu0 0.0
        %904 = vmatprep.subr.mxu0 0.0
        %905 = vmatpush2.msra.mxu0 0.0
        %906 = vmatprep.subr.mxu0 0.0
        %907 = vmatpush2.msra.mxu0 0.0
        %908 = vmatprep.subr.mxu0 0.0
        %909 = vmatpush2.msra.mxu0 0.0
        %910 = vmatprep.subr.mxu0 0.0
        %911 = vmatpush2.msra.mxu0 0.0
        %912 = vmatprep.subr.mxu0 0.0
        %913 = vmatpush2.msra.mxu0 0.0
        %914 = vmatprep.subr.mxu0 0.0
        %915 = vmatpush2.msra.mxu0 0.0
        %916 = vmatprep.subr.mxu0 0.0
        %917 = vmatpush2.msra.mxu0 0.0
        %918 = vmatprep.subr.mxu0 0.0
        %919 = vmatpush2.msra.mxu0 0.0
        %920 = vmatprep.subr.mxu0 0.0
        %921 = vmatpush2.msra.mxu0 0.0
        %922 = vmatprep.mubr.f32.mxu0 0.0
        %923 = vmatmul.mubr.f32.gmra.mxu0 %v856
        %v924 = vpop.f32.mrf.mxu0
        %v925 = vadd.f32 0.0, %v924
        %v926 = vpop.f32.mrf.mxu0
        %927 = vdwg.mxu0
        %v928 = vld [vmem:[%s670] sm:$0xff]
        %v929 = vld [vmem:[#allocation2 + $0x8] sm:$0xff]
        %s930 = scalar_lea.vmem [#allocation3], 8
        %v931 = vld [vmem:[%s930] sm:$0xff]
        %v933 = vsel %vm664, %v928, 0
        %935 = vmatprep.subr.mxu0 0.0
        %936 = vmatpush1.msra.mxu0 0.0
        %937 = vmatprep.subr.mxu0 0.0
        %938 = vmatpush1.msra.mxu0 0.0
        %939 = vmatprep.subr.mxu0 0.0
        %940 = vmatpush1.msra.mxu0 0.0
        %941 = vmatprep.subr.mxu0 0.0
        %942 = vmatpush1.msra.mxu0 0.0
        %943 = vmatprep.subr.mxu0 0.0
        %944 = vmatpush1.msra.mxu0 0.0
        %945 = vmatprep.subr.mxu0 0.0
        %946 = vmatpush1.msra.mxu0 0.0
        %947 = vmatprep.subr.mxu0 0.0
        %948 = vmatpush1.msra.mxu0 0.0
        %949 = vmatprep.subr.mxu0 0.0
        %950 = vmatpush1.msra.mxu0 0.0
        %951 = vmatprep.subr.mxu0 0.0
        %952 = vmatpush1.msra.mxu0 0.0
        %953 = vmatprep.subr.mxu0 0.0
        %954 = vmatpush1.msra.mxu0 0.0
        %955 = vmatprep.subr.mxu0 0.0
        %956 = vmatpush1.msra.mxu0 0.0
        %957 = vmatprep.subr.mxu0 0.0
        %958 = vmatpush1.msra.mxu0 0.0
        %959 = vmatprep.subr.mxu0 0.0
        %960 = vmatpush1.msra.mxu0 0.0
        %961 = vmatprep.subr.mxu0 0.0
        %962 = vmatpush1.msra.mxu0 0.0
        %963 = vmatprep.subr.mxu0 0.0
        %964 = vmatpush1.msra.mxu0 0.0
        %965 = vmatprep.subr.mxu0 0.0
        %966 = vmatpush1.msra.mxu0 %v929
        %967 = vmatprep.subr.mxu0 0.0
        %968 = vmatpush2.msra.mxu0 0.0
        %969 = vmatprep.subr.mxu0 0.0
        %970 = vmatpush2.msra.mxu0 0.0
        %971 = vmatprep.subr.mxu0 0.0
        %972 = vmatpush2.msra.mxu0 0.0
        %973 = vmatprep.subr.mxu0 0.0
        %974 = vmatpush2.msra.mxu0 0.0
        %975 = vmatprep.subr.mxu0 0.0
        %976 = vmatpush2.msra.mxu0 0.0
        %977 = vmatprep.subr.mxu0 0.0
        %978 = vmatpush2.msra.mxu0 0.0
        %979 = vmatprep.subr.mxu0 0.0
        %980 = vmatpush2.msra.mxu0 0.0
        %981 = vmatprep.subr.mxu0 0.0
        %982 = vmatpush2.msra.mxu0 0.0
        %983 = vmatprep.subr.mxu0 0.0
        %984 = vmatpush2.msra.mxu0 0.0
        %985 = vmatprep.subr.mxu0 0.0
        %986 = vmatpush2.msra.mxu0 0.0
        %987 = vmatprep.subr.mxu0 0.0
        %988 = vmatpush2.msra.mxu0 0.0
        %989 = vmatprep.subr.mxu0 0.0
        %990 = vmatpush2.msra.mxu0 0.0
        %991 = vmatprep.subr.mxu0 0.0
        %992 = vmatpush2.msra.mxu0 0.0
        %993 = vmatprep.subr.mxu0 0.0
        %994 = vmatpush2.msra.mxu0 0.0
        %995 = vmatprep.subr.mxu0 0.0
        %996 = vmatpush2.msra.mxu0 0.0
        %997 = vmatprep.subr.mxu0 0.0
        %998 = vmatpush2.msra.mxu0 0.0
        %999 = vmatprep.mubr.f32.mxu0 0.0
        %1000 = vmatmul.mubr.f32.gmra.mxu0 %v933
        %v1001 = vpop.f32.mrf.mxu0
        %v1002 = vadd.f32 %v687, %v1001
        %v1003 = vpop.f32.mrf.mxu0
        %1004 = vdwg.mxu0
        %v1005 = vsel %vm664, %v1002, -inf
        %1006 = vmax.xlane.f32.xlu0 %v1005
        %v1007 = vpop.xlane.xlu0 %1006
        %v1008 = vsub.f32 %v1002, %v1007
        %v1009 = vmul.f32 %v1008, 1.442695
        %v1010 = vpow.pop %v1009
        %v1011 = vsel %vm664, %v1010, 0.0
        %1012 = vadd.xlane.f32.xlu0 %v1011
        %v1013 = vpop.xlane.xlu0 %1012
        %v1014 = vrcp.pop %v1013
        %v1015 = vmul.f32 %v1010, %v1014
        %v1017 = vsel %vm664, %v1015, 0
        %1019 = vmatprep.subr.mxu0 0.0
        %1020 = vmatpush1.msra.mxu0 0.0
        %1021 = vmatprep.subr.mxu0 0.0
        %1022 = vmatpush1.msra.mxu0 0.0
        %1023 = vmatprep.subr.mxu0 0.0
        %1024 = vmatpush1.msra.mxu0 0.0
        %1025 = vmatprep.subr.mxu0 0.0
        %1026 = vmatpush1.msra.mxu0 0.0
        %1027 = vmatprep.subr.mxu0 0.0
        %1028 = vmatpush1.msra.mxu0 0.0
        %1029 = vmatprep.subr.mxu0 0.0
        %1030 = vmatpush1.msra.mxu0 0.0
        %1031 = vmatprep.subr.mxu0 0.0
        %1032 = vmatpush1.msra.mxu0 0.0
        %1033 = vmatprep.subr.mxu0 0.0
        %1034 = vmatpush1.msra.mxu0 0.0
        %1035 = vmatprep.subr.mxu0 0.0
        %1036 = vmatpush1.msra.mxu0 0.0
        %1037 = vmatprep.subr.mxu0 0.0
        %1038 = vmatpush1.msra.mxu0 0.0
        %1039 = vmatprep.subr.mxu0 0.0
        %1040 = vmatpush1.msra.mxu0 0.0
        %1041 = vmatprep.subr.mxu0 0.0
        %1042 = vmatpush1.msra.mxu0 0.0
        %1043 = vmatprep.subr.mxu0 0.0
        %1044 = vmatpush1.msra.mxu0 0.0
        %1045 = vmatprep.subr.mxu0 0.0
        %1046 = vmatpush1.msra.mxu0 0.0
        %1047 = vmatprep.subr.mxu0 0.0
        %1048 = vmatpush1.msra.mxu0 0.0
        %1049 = vmatprep.subr.mxu0 0.0
        %1050 = vmatpush1.msra.mxu0 %v931
        %1051 = vmatprep.subr.mxu0 0.0
        %1052 = vmatpush2.msra.mxu0 0.0
        %1053 = vmatprep.subr.mxu0 0.0
        %1054 = vmatpush2.msra.mxu0 0.0
        %1055 = vmatprep.subr.mxu0 0.0
        %1056 = vmatpush2.msra.mxu0 0.0
        %1057 = vmatprep.subr.mxu0 0.0
        %1058 = vmatpush2.msra.mxu0 0.0
        %1059 = vmatprep.subr.mxu0 0.0
        %1060 = vmatpush2.msra.mxu0 0.0
        %1061 = vmatprep.subr.mxu0 0.0
        %1062 = vmatpush2.msra.mxu0 0.0
        %1063 = vmatprep.subr.mxu0 0.0
        %1064 = vmatpush2.msra.mxu0 0.0
        %1065 = vmatprep.subr.mxu0 0.0
        %1066 = vmatpush2.msra.mxu0 0.0
        %1067 = vmatprep.subr.mxu0 0.0
        %1068 = vmatpush2.msra.mxu0 0.0
        %1069 = vmatprep.subr.mxu0 0.0
        %1070 = vmatpush2.msra.mxu0 0.0
        %1071 = vmatprep.subr.mxu0 0.0
        %1072 = vmatpush2.msra.mxu0 0.0
        %1073 = vmatprep.subr.mxu0 0.0
        %1074 = vmatpush2.msra.mxu0 0.0
        %1075 = vmatprep.subr.mxu0 0.0
        %1076 = vmatpush2.msra.mxu0 0.0
        %1077 = vmatprep.subr.mxu0 0.0
        %1078 = vmatpush2.msra.mxu0 0.0
        %1079 = vmatprep.subr.mxu0 0.0
        %1080 = vmatpush2.msra.mxu0 0.0
        %1081 = vmatprep.subr.mxu0 0.0
        %1082 = vmatpush2.msra.mxu0 0.0
        %1083 = vmatprep.mubr.f32.mxu0 0.0
        %1084 = vmatmul.mubr.f32.gmra.mxu0 %v1017
        %v1085 = vpop.f32.mrf.mxu0
        %v1086 = vadd.f32 0.0, %v1085
        %v1087 = vpop.f32.mrf.mxu0
        %1088 = vdwg.mxu0
        %v1089 = vld [vmem:[%s675] sm:$0xff]
        %v1090 = vld [vmem:[#allocation2 + $0x10] sm:$0xff]
        %s1091 = scalar_lea.vmem [#allocation3], 16
        %v1092 = vld [vmem:[%s1091] sm:$0xff]
        %v1094 = vsel %vm664, %v1089, 0
        %1096 = vmatprep.subr.mxu0 0.0
        %1097 = vmatpush1.msra.mxu0 0.0
        %1098 = vmatprep.subr.mxu0 0.0
        %1099 = vmatpush1.msra.mxu0 0.0
        %1100 = vmatprep.subr.mxu0 0.0
        %1101 = vmatpush1.msra.mxu0 0.0
        %1102 = vmatprep.subr.mxu0 0.0
        %1103 = vmatpush1.msra.mxu0 0.0
        %1104 = vmatprep.subr.mxu0 0.0
        %1105 = vmatpush1.msra.mxu0 0.0
        %1106 = vmatprep.subr.mxu0 0.0
        %1107 = vmatpush1.msra.mxu0 0.0
        %1108 = vmatprep.subr.mxu0 0.0
        %1109 = vmatpush1.msra.mxu0 0.0
        %1110 = vmatprep.subr.mxu0 0.0
        %1111 = vmatpush1.msra.mxu0 0.0
        %1112 = vmatprep.subr.mxu0 0.0
        %1113 = vmatpush1.msra.mxu0 0.0
        %1114 = vmatprep.subr.mxu0 0.0
        %1115 = vmatpush1.msra.mxu0 0.0
        %1116 = vmatprep.subr.mxu0 0.0
        %1117 = vmatpush1.msra.mxu0 0.0
        %1118 = vmatprep.subr.mxu0 0.0
        %1119 = vmatpush1.msra.mxu0 0.0
        %1120 = vmatprep.subr.mxu0 0.0
        %1121 = vmatpush1.msra.mxu0 0.0
        %1122 = vmatprep.subr.mxu0 0.0
        %1123 = vmatpush1.msra.mxu0 0.0
        %1124 = vmatprep.subr.mxu0 0.0
        %1125 = vmatpush1.msra.mxu0 0.0
        %1126 = vmatprep.subr.mxu0 0.0
        %1127 = vmatpush1.msra.mxu0 %v1090
        %1128 = vmatprep.subr.mxu0 0.0
        %1129 = vmatpush2.msra.mxu0 0.0
        %1130 = vmatprep.subr.mxu0 0.0
        %1131 = vmatpush2.msra.mxu0 0.0
        %1132 = vmatprep.subr.mxu0 0.0
        %1133 = vmatpush2.msra.mxu0 0.0
        %1134 = vmatprep.subr.mxu0 0.0
        %1135 = vmatpush2.msra.mxu0 0.0
        %1136 = vmatprep.subr.mxu0 0.0
        %1137 = vmatpush2.msra.mxu0 0.0
        %1138 = vmatprep.subr.mxu0 0.0
        %1139 = vmatpush2.msra.mxu0 0.0
        %1140 = vmatprep.subr.mxu0 0.0
        %1141 = vmatpush2.msra.mxu0 0.0
        %1142 = vmatprep.subr.mxu0 0.0
        %1143 = vmatpush2.msra.mxu0 0.0
        %1144 = vmatprep.subr.mxu0 0.0
        %1145 = vmatpush2.msra.mxu0 0.0
        %1146 = vmatprep.subr.mxu0 0.0
        %1147 = vmatpush2.msra.mxu0 0.0
        %1148 = vmatprep.subr.mxu0 0.0
        %1149 = vmatpush2.msra.mxu0 0.0
        %1150 = vmatprep.subr.mxu0 0.0
        %1151 = vmatpush2.msra.mxu0 0.0
        %1152 = vmatprep.subr.mxu0 0.0
        %1153 = vmatpush2.msra.mxu0 0.0
        %1154 = vmatprep.subr.mxu0 0.0
        %1155 = vmatpush2.msra.mxu0 0.0
        %1156 = vmatprep.subr.mxu0 0.0
        %1157 = vmatpush2.msra.mxu0 0.0
        %1158 = vmatprep.subr.mxu0 0.0
        %1159 = vmatpush2.msra.mxu0 0.0
        %1160 = vmatprep.mubr.f32.mxu0 0.0
        %1161 = vmatmul.mubr.f32.gmra.mxu0 %v1094
        %v1162 = vpop.f32.mrf.mxu0
        %v1163 = vadd.f32 %v687, %v1162
        %v1164 = vpop.f32.mrf.mxu0
        %1165 = vdwg.mxu0
        %v1166 = vsel %vm664, %v1163, -inf
        %1167 = vmax.xlane.f32.xlu0 %v1166
        %v1168 = vpop.xlane.xlu0 %1167
        %v1169 = vsub.f32 %v1163, %v1168
        %v1170 = vmul.f32 %v1169, 1.442695
        %v1171 = vpow.pop %v1170
        %v1172 = vsel %vm664, %v1171, 0.0
        %1173 = vadd.xlane.f32.xlu0 %v1172
        %v1174 = vpop.xlane.xlu0 %1173
        %v1175 = vrcp.pop %v1174
        %v1176 = vmul.f32 %v1171, %v1175
        %v1178 = vsel %vm664, %v1176, 0
        %1180 = vmatprep.subr.mxu0 0.0
        %1181 = vmatpush1.msra.mxu0 0.0
        %1182 = vmatprep.subr.mxu0 0.0
        %1183 = vmatpush1.msra.mxu0 0.0
        %1184 = vmatprep.subr.mxu0 0.0
        %1185 = vmatpush1.msra.mxu0 0.0
        %1186 = vmatprep.subr.mxu0 0.0
        %1187 = vmatpush1.msra.mxu0 0.0
        %1188 = vmatprep.subr.mxu0 0.0
        %1189 = vmatpush1.msra.mxu0 0.0
        %1190 = vmatprep.subr.mxu0 0.0
        %1191 = vmatpush1.msra.mxu0 0.0
        %1192 = vmatprep.subr.mxu0 0.0
        %1193 = vmatpush1.msra.mxu0 0.0
        %1194 = vmatprep.subr.mxu0 0.0
        %1195 = vmatpush1.msra.mxu0 0.0
        %1196 = vmatprep.subr.mxu0 0.0
        %1197 = vmatpush1.msra.mxu0 0.0
        %1198 = vmatprep.subr.mxu0 0.0
        %1199 = vmatpush1.msra.mxu0 0.0
        %1200 = vmatprep.subr.mxu0 0.0
        %1201 = vmatpush1.msra.mxu0 0.0
        %1202 = vmatprep.subr.mxu0 0.0
        %1203 = vmatpush1.msra.mxu0 0.0
        %1204 = vmatprep.subr.mxu0 0.0
        %1205 = vmatpush1.msra.mxu0 0.0
        %1206 = vmatprep.subr.mxu0 0.0
        %1207 = vmatpush1.msra.mxu0 0.0
        %1208 = vmatprep.subr.mxu0 0.0
        %1209 = vmatpush1.msra.mxu0 0.0
        %1210 = vmatprep.subr.mxu0 0.0
        %1211 = vmatpush1.msra.mxu0 %v1092
        %1212 = vmatprep.subr.mxu0 0.0
        %1213 = vmatpush2.msra.mxu0 0.0
        %1214 = vmatprep.subr.mxu0 0.0
        %1215 = vmatpush2.msra.mxu0 0.0
        %1216 = vmatprep.subr.mxu0 0.0
        %1217 = vmatpush2.msra.mxu0 0.0
        %1218 = vmatprep.subr.mxu0 0.0
        %1219 = vmatpush2.msra.mxu0 0.0
        %1220 = vmatprep.subr.mxu0 0.0
        %1221 = vmatpush2.msra.mxu0 0.0
        %1222 = vmatprep.subr.mxu0 0.0
        %1223 = vmatpush2.msra.mxu0 0.0
        %1224 = vmatprep.subr.mxu0 0.0
        %1225 = vmatpush2.msra.mxu0 0.0
        %1226 = vmatprep.subr.mxu0 0.0
        %1227 = vmatpush2.msra.mxu0 0.0
        %1228 = vmatprep.subr.mxu0 0.0
        %1229 = vmatpush2.msra.mxu0 0.0
        %1230 = vmatprep.subr.mxu0 0.0
        %1231 = vmatpush2.msra.mxu0 0.0
        %1232 = vmatprep.subr.mxu0 0.0
        %1233 = vmatpush2.msra.mxu0 0.0
        %1234 = vmatprep.subr.mxu0 0.0
        %1235 = vmatpush2.msra.mxu0 0.0
        %1236 = vmatprep.subr.mxu0 0.0
        %1237 = vmatpush2.msra.mxu0 0.0
        %1238 = vmatprep.subr.mxu0 0.0
        %1239 = vmatpush2.msra.mxu0 0.0
        %1240 = vmatprep.subr.mxu0 0.0
        %1241 = vmatpush2.msra.mxu0 0.0
        %1242 = vmatprep.subr.mxu0 0.0
        %1243 = vmatpush2.msra.mxu0 0.0
        %1244 = vmatprep.mubr.f32.mxu0 0.0
        %1245 = vmatmul.mubr.f32.gmra.mxu0 %v1178
        %v1246 = vpop.f32.mrf.mxu0
        %v1247 = vadd.f32 0.0, %v1246
        %v1248 = vpop.f32.mrf.mxu0
        %1249 = vdwg.mxu0
        %v1250 = vld [vmem:[%s680] sm:$0xff]
        %v1251 = vld [vmem:[#allocation2 + $0x18] sm:$0xff]
        %s1252 = scalar_lea.vmem [#allocation3], 24
        %v1253 = vld [vmem:[%s1252] sm:$0xff]
        %v1255 = vsel %vm664, %v1250, 0
        %1257 = vmatprep.subr.mxu0 0.0
        %1258 = vmatpush1.msra.mxu0 0.0
        %1259 = vmatprep.subr.mxu0 0.0
        %1260 = vmatpush1.msra.mxu0 0.0
        %1261 = vmatprep.subr.mxu0 0.0
        %1262 = vmatpush1.msra.mxu0 0.0
        %1263 = vmatprep.subr.mxu0 0.0
        %1264 = vmatpush1.msra.mxu0 0.0
        %1265 = vmatprep.subr.mxu0 0.0
        %1266 = vmatpush1.msra.mxu0 0.0
        %1267 = vmatprep.subr.mxu0 0.0
        %1268 = vmatpush1.msra.mxu0 0.0
        %1269 = vmatprep.subr.mxu0 0.0
        %1270 = vmatpush1.msra.mxu0 0.0
        %1271 = vmatprep.subr.mxu0 0.0
        %1272 = vmatpush1.msra.mxu0 0.0
        %1273 = vmatprep.subr.mxu0 0.0
        %1274 = vmatpush1.msra.mxu0 0.0
        %1275 = vmatprep.subr.mxu0 0.0
        %1276 = vmatpush1.msra.mxu0 0.0
        %1277 = vmatprep.subr.mxu0 0.0
        %1278 = vmatpush1.msra.mxu0 0.0
        %1279 = vmatprep.subr.mxu0 0.0
        %1280 = vmatpush1.msra.mxu0 0.0
        %1281 = vmatprep.subr.mxu0 0.0
        %1282 = vmatpush1.msra.mxu0 0.0
        %1283 = vmatprep.subr.mxu0 0.0
        %1284 = vmatpush1.msra.mxu0 0.0
        %1285 = vmatprep.subr.mxu0 0.0
        %1286 = vmatpush1.msra.mxu0 0.0
        %1287 = vmatprep.subr.mxu0 0.0
        %1288 = vmatpush1.msra.mxu0 %v1251
        %1289 = vmatprep.subr.mxu0 0.0
        %1290 = vmatpush2.msra.mxu0 0.0
        %1291 = vmatprep.subr.mxu0 0.0
        %1292 = vmatpush2.msra.mxu0 0.0
        %1293 = vmatprep.subr.mxu0 0.0
        %1294 = vmatpush2.msra.mxu0 0.0
        %1295 = vmatprep.subr.mxu0 0.0
        %1296 = vmatpush2.msra.mxu0 0.0
        %1297 = vmatprep.subr.mxu0 0.0
        %1298 = vmatpush2.msra.mxu0 0.0
        %1299 = vmatprep.subr.mxu0 0.0
        %1300 = vmatpush2.msra.mxu0 0.0
        %1301 = vmatprep.subr.mxu0 0.0
        %1302 = vmatpush2.msra.mxu0 0.0
        %1303 = vmatprep.subr.mxu0 0.0
        %1304 = vmatpush2.msra.mxu0 0.0
        %1305 = vmatprep.subr.mxu0 0.0
        %1306 = vmatpush2.msra.mxu0 0.0
        %1307 = vmatprep.subr.mxu0 0.0
        %1308 = vmatpush2.msra.mxu0 0.0
        %1309 = vmatprep.subr.mxu0 0.0
        %1310 = vmatpush2.msra.mxu0 0.0
        %1311 = vmatprep.subr.mxu0 0.0
        %1312 = vmatpush2.msra.mxu0 0.0
        %1313 = vmatprep.subr.mxu0 0.0
        %1314 = vmatpush2.msra.mxu0 0.0
        %1315 = vmatprep.subr.mxu0 0.0
        %1316 = vmatpush2.msra.mxu0 0.0
        %1317 = vmatprep.subr.mxu0 0.0
        %1318 = vmatpush2.msra.mxu0 0.0
        %1319 = vmatprep.subr.mxu0 0.0
        %1320 = vmatpush2.msra.mxu0 0.0
        %1321 = vmatprep.mubr.f32.mxu0 0.0
        %1322 = vmatmul.mubr.f32.gmra.mxu0 %v1255
        %v1323 = vpop.f32.mrf.mxu0
        %v1324 = vadd.f32 %v687, %v1323
        %v1325 = vpop.f32.mrf.mxu0
        %1326 = vdwg.mxu0
        %v1327 = vsel %vm664, %v1324, -inf
        %1328 = vmax.xlane.f32.xlu0 %v1327
        %v1329 = vpop.xlane.xlu0 %1328
        %v1330 = vsub.f32 %v1324, %v1329
        %v1331 = vmul.f32 %v1330, 1.442695
        %v1332 = vpow.pop %v1331
        %v1333 = vsel %vm664, %v1332, 0.0
        %1334 = vadd.xlane.f32.xlu0 %v1333
        %v1335 = vpop.xlane.xlu0 %1334
        %v1336 = vrcp.pop %v1335
        %v1337 = vmul.f32 %v1332, %v1336
        %v1339 = vsel %vm664, %v1337, 0
        %1341 = vmatprep.subr.mxu0 0.0
        %1342 = vmatpush1.msra.mxu0 0.0
        %1343 = vmatprep.subr.mxu0 0.0
        %1344 = vmatpush1.msra.mxu0 0.0
        %1345 = vmatprep.subr.mxu0 0.0
        %1346 = vmatpush1.msra.mxu0 0.0
        %1347 = vmatprep.subr.mxu0 0.0
        %1348 = vmatpush1.msra.mxu0 0.0
        %1349 = vmatprep.subr.mxu0 0.0
        %1350 = vmatpush1.msra.mxu0 0.0
        %1351 = vmatprep.subr.mxu0 0.0
        %1352 = vmatpush1.msra.mxu0 0.0
        %1353 = vmatprep.subr.mxu0 0.0
        %1354 = vmatpush1.msra.mxu0 0.0
        %1355 = vmatprep.subr.mxu0 0.0
        %1356 = vmatpush1.msra.mxu0 0.0
        %1357 = vmatprep.subr.mxu0 0.0
        %1358 = vmatpush1.msra.mxu0 0.0
        %1359 = vmatprep.subr.mxu0 0.0
        %1360 = vmatpush1.msra.mxu0 0.0
        %1361 = vmatprep.subr.mxu0 0.0
        %1362 = vmatpush1.msra.mxu0 0.0
        %1363 = vmatprep.subr.mxu0 0.0
        %1364 = vmatpush1.msra.mxu0 0.0
        %1365 = vmatprep.subr.mxu0 0.0
        %1366 = vmatpush1.msra.mxu0 0.0
        %1367 = vmatprep.subr.mxu0 0.0
        %1368 = vmatpush1.msra.mxu0 0.0
        %1369 = vmatprep.subr.mxu0 0.0
        %1370 = vmatpush1.msra.mxu0 0.0
        %1371 = vmatprep.subr.mxu0 0.0
        %1372 = vmatpush1.msra.mxu0 %v1253
        %1373 = vmatprep.subr.mxu0 0.0
        %1374 = vmatpush2.msra.mxu0 0.0
        %1375 = vmatprep.subr.mxu0 0.0
        %1376 = vmatpush2.msra.mxu0 0.0
        %1377 = vmatprep.subr.mxu0 0.0
        %1378 = vmatpush2.msra.mxu0 0.0
        %1379 = vmatprep.subr.mxu0 0.0
        %1380 = vmatpush2.msra.mxu0 0.0
        %1381 = vmatprep.subr.mxu0 0.0
        %1382 = vmatpush2.msra.mxu0 0.0
        %1383 = vmatprep.subr.mxu0 0.0
        %1384 = vmatpush2.msra.mxu0 0.0
        %1385 = vmatprep.subr.mxu0 0.0
        %1386 = vmatpush2.msra.mxu0 0.0
        %1387 = vmatprep.subr.mxu0 0.0
        %1388 = vmatpush2.msra.mxu0 0.0
        %1389 = vmatprep.subr.mxu0 0.0
        %1390 = vmatpush2.msra.mxu0 0.0
        %1391 = vmatprep.subr.mxu0 0.0
        %1392 = vmatpush2.msra.mxu0 0.0
        %1393 = vmatprep.subr.mxu0 0.0
        %1394 = vmatpush2.msra.mxu0 0.0
        %1395 = vmatprep.subr.mxu0 0.0
        %1396 = vmatpush2.msra.mxu0 0.0
        %1397 = vmatprep.subr.mxu0 0.0
        %1398 = vmatpush2.msra.mxu0 0.0
        %1399 = vmatprep.subr.mxu0 0.0
        %1400 = vmatpush2.msra.mxu0 0.0
        %1401 = vmatprep.subr.mxu0 0.0
        %1402 = vmatpush2.msra.mxu0 0.0
        %1403 = vmatprep.subr.mxu0 0.0
        %1404 = vmatpush2.msra.mxu0 0.0
        %1405 = vmatprep.mubr.f32.mxu0 0.0
        %1406 = vmatmul.mubr.f32.gmra.mxu0 %v1339
        %v1407 = vpop.f32.mrf.mxu0
        %v1408 = vadd.f32 0.0, %v1407
        %v1409 = vpop.f32.mrf.mxu0
        %1410 = vdwg.mxu0
        %1412 = vrot.lane.b32.xlu0 %v1086, 8
        %v1413 = vpop.permute.xlu0 %1412
        %1416 = vrot.lane.b32.xlu0 %v1247, 16
        %v1417 = vpop.permute.xlu0 %1416
        %1420 = vrot.lane.b32.xlu0 %v1408, 24
        %v1421 = vpop.permute.xlu0 %1420
        %v1423 = vsel %vm664, %v925, %v1413
        %vm1424 = vcmask 130048
        %v1425 = vsel %vm1424, %v1423, %v1417
        %vm1426 = vcmask 195584
        %v1427 = vsel %vm1426, %v1425, %v1421
        %1428 = vst.msk [vmem:[#allocation5] sm:$0xff] %vm590, %v1427
        %v1429 = vld [vmem:[#allocation5] sm:$0xff]
        %1430 = vst.msk [vmem:[%s420] sm:$0xff] %vm590, %v1429
        %s1431 = sand.u32 %s219, 1
        %s1432 = scalar_lea.sflag [#allocation8], %s1431
        %s1433 = sand.u32 %s219, 1
        %s1434 = smul.addr %s1433, 8
        %s1435 = scalar_lea.vmem [#allocation14], %s1434
        %s1436 = sand.u32 %s247, 1
        %s1437 = scalar_lea.sflag [#allocation16], %s1436
        %s1438 = sand.u32 %s247, 1
        %s1439 = smul.addr %s1438, 8
        %s1440 = scalar_lea.vmem [#allocation15], %s1439
        // Predicated region
        $region69: #{tpu_custom_call.1} parent=47 // pred_check
          %p1441 = pneg %p229
        $region70: #{tpu_custom_call.1} parent=47 // pred_check_branch
          %1443 = sbr.rel (%p1441) target = $region72
        $region71: #{tpu_custom_call.1} parent=47 // pred_region
          %s1445 = ssub.s32 128, 128
          %1446 = vsyncadd %s1432, %s1445
          %s1447 = sadd.s32 %s38, %s37
          %s1448 = smul.addr %s1447, 128
          %s1449 = scalar_lea.hbm %s7, %s1448
          %s1451 = sshll.u32 %s1435, 4
          %s1452 = int_to_ptr.vmem [resolvable:$true] %s1451
          %1454 = dma.vmem_to_hbm [thread:$0]  %s1452, 128, %s1449, %s1432
        $region72: #{tpu_custom_call.1} parent=47 // pred_fallthru
          _
        // Predicated region
        $region73: #{tpu_custom_call.1} parent=47 // pred_check
          %p1455 = pneg %p257
        $region74: #{tpu_custom_call.1} parent=47 // pred_check_branch
          %1457 = sbr.rel (%p1455) target = $region76
        $region75: #{tpu_custom_call.1} parent=47 // pred_region
          %s1459 = ssub.s32 128, 128
          %1460 = vsyncadd %s1437, %s1459
          %s1461 = sadd.s32 %s38, %s37
          %s1462 = smul.addr %s1461, 128
          %s1463 = scalar_lea.hbm %s8, %s1462
          %s1465 = sshll.u32 %s1440, 4
          %s1466 = int_to_ptr.vmem [resolvable:$true] %s1465
          %1468 = dma.vmem_to_hbm [thread:$0]  %s1466, 128, %s1463, %s1437
        $region76: #{tpu_custom_call.1} parent=47 // pred_fallthru
          _
      $region48: #{tpu_custom_call.1} parent=5 // pred_fallthru
        _
      %p1469 = scmp.le.s32.totalorder 2, %s28
      // Predicated region
      $region77: #{tpu_custom_call.1} parent=5 // pred_check
        %p1470 = pneg %p1469
      $region78: #{tpu_custom_call.1} parent=5 // pred_check_branch
        %1472 = sbr.rel (%p1470) target = $region80
      $region79: #{tpu_custom_call.1} parent=5 // pred_region
        %s1473 = ssub.s32 %s28, 2
        // Predicated region
        $region81: #{tpu_custom_call.1} parent=79 // pred_check
          %p1474 = pneg %p235
        $region82: #{tpu_custom_call.1} parent=79 // pred_check_branch
          %1476 = sbr.rel (%p1474) target = $region84
        $region83: #{tpu_custom_call.1} parent=79 // pred_region
          %s1477 = sand.u32 %s220, 1
          %s1478 = scalar_lea.sflag [#allocation8], %s1477
          %s1479 = sand.u32 %s220, 1
          %s1480 = smul.addr %s1479, 8
          %s1481 = scalar_lea.vmem [#allocation14], %s1480
          %1482 = dma.done %s1478, 128
        $region84: #{tpu_custom_call.1} parent=79 // pred_fallthru
          _
        // Predicated region
        $region85: #{tpu_custom_call.1} parent=79 // pred_check
          %p1483 = pneg %p263
        $region86: #{tpu_custom_call.1} parent=79 // pred_check_branch
          %1485 = sbr.rel (%p1483) target = $region88
        $region87: #{tpu_custom_call.1} parent=79 // pred_region
          %s1486 = sand.u32 %s248, 1
          %s1487 = scalar_lea.sflag [#allocation16], %s1486
          %s1488 = sand.u32 %s248, 1
          %s1489 = smul.addr %s1488, 8
          %s1490 = scalar_lea.vmem [#allocation15], %s1489
          %1491 = dma.done %s1487, 128
        $region88: #{tpu_custom_call.1} parent=79 // pred_fallthru
          _
      $region80: #{tpu_custom_call.1} parent=5 // pred_fallthru
        _
    $region6: #{tpu_custom_call.1} parent=1 // loop_footer
      %s32 = sadd.s32 1, %s28
    $region7: #{tpu_custom_call.1} parent=1 // loop_footer_branch
      %27 = sbr.rel target = $region3
    $region8: #{tpu_custom_call.1} parent=1 // loop_exit
      _
    %1492 = vsyncpa [#allocation7], 1
    %s1493 = scalar_lea.sflag [#allocation7], 1
    %1494 = vsyncpa %s1493, 1
    %1495 = vsyncpa [#allocation10], 1
    %s1496 = scalar_lea.sflag [#allocation10], 1
    %1497 = vsyncpa %s1496, 1
    %1498 = vsyncpa [#allocation13], 1
    %1499 = vsyncpa [#allocation8], 1
    %s1500 = scalar_lea.sflag [#allocation8], 1
    %1501 = vsyncpa %s1500, 1
    %1502 = vsyncpa [#allocation16], 1
    %s1503 = scalar_lea.sflag [#allocation16], 1
    %1504 = vsyncpa %s1503, 1

// kernel: tpu_custom_call.1
$region0: #{tpu_custom_call.1}
  #allocation0 [shape = 'u32[]', space=smem, size = 0x4, offset = 0x4, fixed_abs, tag = 'smem constant byte address 0x4 - core index']
  #allocation1 [shape = 'u32[144,128]{1,0:T(1,128)}', space=vmem, size = 0x12000, scoped, tag = 'internal scratch']
  #allocation2 [shape = 'f32[32,8]{1,0:T(8,128)}', space=vmem, size = 0x4000, scoped, tag = 'scratch operand']
  #allocation3 [shape = 'f32[4,8,8]{2,1,0:T(8,128)}', space=vmem, size = 0x4000, scoped, tag = 'scratch operand']
  #allocation4 [shape = 'f32[4,8,8]{2,1,0:T(8,128)}', space=vmem, size = 0x4000, scoped, tag = 'scratch operand']
  #allocation5 [shape = 'f32[1,8,32]{2,1,0:T(8,128)}', space=vmem, size = 0x1000, scoped, tag = 'scratch operand']
  %s0 = inlined_call_operand.hbm [shape: f32[2,8,32], index: 0, kind: input, shape index: {}]
  %s1 = inlined_call_operand.hbm [shape: f32[2,8,32], index: 1, kind: input, shape index: {}]
  %s2 = inlined_call_operand.vmem [shape: f32[2,1,8], index: 2, kind: input, shape index: {}]
  %s3 = inlined_call_operand.hbm [shape: f32[32,32], index: 3, kind: input, shape index: {}]
  %s4 = inlined_call_operand.vmem [shape: f32[1,32], index: 4, kind: input, shape index: {}]
  %s5 = inlined_call_operand.hbm [shape: f32[32,64], index: 5, kind: input, shape index: {}]
  %s6 = inlined_call_operand.vmem [shape: f32[1,64], index: 6, kind: input, shape index: {}]
  %s7 = inlined_call_operand.hbm [shape: f32[2,8,32], index: 7, kind: output, shape index: {0}]
  %s8 = inlined_call_operand.hbm [shape: f32[2,8,8], index: 8, kind: output, shape index: {1}]
  %9 = xla_tuple %s7, %s8
  %s10 = sld [smem:[#allocation0]]
  $region89: #{tpu_custom_call.1} parent=0
    _
  %s12 = ssub.s32 1, %s10
  %s13 = scalar_select 0, %s12, %s10
  $region1: #{tpu_custom_call.1} parent=0
    #allocation6 [shape = 'u8[8192]{0}', space=vmem, size = 0x2000, scoped, tag = 'input window, operand 0']
    #allocation7 [shape = 's32[2]{0}', space=sflag, size = 0x8, scoped, tag = 'scoped memory for tpu_custom_call.1']
    #allocation8 [shape = 's32[2]{0}', space=sflag, size = 0x8, scoped, tag = 'scoped memory for tpu_custom_call.1']
    #allocation9 [shape = 'u8[8192]{0}', space=vmem, size = 0x2000, scoped, tag = 'input window, operand 1']
    #allocation10 [shape = 's32[2]{0}', space=sflag, size = 0x8, scoped, tag = 'scoped memory for tpu_custom_call.1']
    #allocation11 [shape = 'u8[16384]{0}', space=vmem, size = 0x4000, scoped, tag = 'input window, operand 3, single buffered']
    #allocation12 [shape = 'u8[16384]{0}', space=vmem, size = 0x4000, scoped, tag = 'input window, operand 5, single buffered']
    #allocation13 [shape = 's32[1]{0}', space=sflag, size = 0x4, scoped, tag = 'scoped memory for tpu_custom_call.1']
    #allocation14 [shape = 'u8[8192]{0}', space=vmem, size = 0x2000, scoped, tag = 'output window, operand 0']
    #allocation15 [shape = 'u8[8192]{0}', space=vmem, size = 0x2000, scoped, tag = 'output window, operand 1']
    #allocation16 [shape = 's32[2]{0}', space=sflag, size = 0x8, scoped, tag = 'scoped memory for tpu_custom_call.1']
    %14 = vsyncpa [#allocation7], 0
    %s15 = scalar_lea.sflag [#allocation7], 1
    %16 = vsyncpa %s15, 0
    %17 = vsyncpa [#allocation10], 0
    %s18 = scalar_lea.sflag [#allocation10], 1
    %19 = vsyncpa %s18, 0
    %20 = vsyncpa [#allocation13], 0
    %21 = vsyncpa [#allocation8], 0
    %s22 = scalar_lea.sflag [#allocation8], 1
    %23 = vsyncpa %s22, 0
    %24 = vsyncpa [#allocation16], 0
    %s25 = scalar_lea.sflag [#allocation16], 1
    %26 = vsyncpa %s25, 0
    loop: start=0, step=1, limit=4
    $region2: #{tpu_custom_call.1} parent=1 // loop_pre_header
      _
    $region3: #{tpu_custom_call.1} parent=1 // loop_header
      %s28 = sphi 0, %s32
      %p29 = scmp.ge.s32.totalorder %s28, 4
      %s35 = sphi 0, %s47
      %s36 = sphi 0, %s43
      %s37 = sphi 0, %s35
      %s38 = sphi 0, %s36
      %s39 = sphi 0, %s37
      %s40 = sphi 0, %s38
      %s52 = sphi 0, %s54
      %s55 = sphi 0, %s52
      %s56 = sphi 0, %s55
      %s72 = sphi 0, %s56
      %s78 = sphi 0, %s80
      %s81 = sphi 0, %s78
      %s82 = sphi 0, %s81
      %s98 = sphi 0, %s82
      %s104 = sphi 0, %s106
      %s107 = sphi 0, %s104
      %s108 = sphi 0, %s107
      %s124 = sphi 0, %s108
      %s128 = sphi 0, %s128
      %s130 = sphi 0, %s128
      %s131 = sphi 0, %s130
      %s145 = sphi 0, %s131
      %s149 = sphi 0, %s149
      %s151 = sphi 0, %s149
      %s152 = sphi 0, %s151
      %s166 = sphi 0, %s152
      %s170 = sphi 0, %s170
      %s172 = sphi 0, %s170
      %s173 = sphi 0, %s172
      %s187 = sphi 0, %s173
      %s191 = sphi 0, %s191
      %s193 = sphi 0, %s191
      %s194 = sphi 0, %s193
      %s208 = sphi 0, %s194
      %s216 = sphi 0, %s218
      %s219 = sphi 0, %s216
      %s220 = sphi 0, %s219
      %s236 = sphi 0, %s220
      %s244 = sphi 0, %s246
      %s247 = sphi 0, %s244
      %s248 = sphi 0, %s247
      %s264 = sphi 0, %s248
    $region4: #{tpu_custom_call.1} parent=1 // loop_header_branch
      %31 = sbr.rel (%p29) target = $region8
    $region5: #{tpu_custom_call.1} parent=1 // loop_body
      %s33 = ssub.s32 %s28, 1
      %s34 = ssub.s32 %s28, 2
      %s41 = sadd.s32 1, %s36
      %p42 = scmp.ge.s32.totalorder %s41, 1
      %s43 = scalar_select %p42, 0, %s41
      %s44 = sadd.s32 1, %s35
      %s45 = scalar_select %p42, %s44, %s35
      %p46 = scmp.ge.s32.totalorder %s45, 2
      %s47 = scalar_select %p46, 0, %s45
      %s48 = ssub.s32 %s35, %s47
      %s49 = ssub.s32 %s36, %s43
      %s50 = sor.u32 %s48, %s49
      %p51 = scmp.eq.s32.totalorder %s50, 0
      %s53 = sadd.s32 %s52, 1
      %s54 = scalar_select %p51, %s52, %s53
      %p57 = pneg %p51
      %p58 = scmp.eq.s32.totalorder %s28, 1
      %p59 = por %p57, %p58
      %p60 = scmp.ne.s32.totalorder %s52, %s55
      %p61 = scmp.eq.s32.totalorder %s28, 0
      %p62 = por %p60, %p61
      %p63 = scmp.ne.s32.totalorder %s52, %s55
      %p64 = scmp.eq.s32.totalorder %s33, 1
      %p65 = por %p63, %p64
      %p66 = scmp.ne.s32.totalorder %s55, %s56
      %p67 = scmp.eq.s32.totalorder %s33, 0
      %p68 = por %p66, %p67
      %p69 = scmp.ne.s32.totalorder %s55, %s56
      %p70 = scmp.eq.s32.totalorder %s34, 1
      %p71 = por %p69, %p70
      %p73 = scmp.ne.s32.totalorder %s56, %s72
      %p74 = scmp.eq.s32.totalorder %s34, 0
      %p75 = por %p73, %p74
      %s76 = ssub.s32 %s35, %s47
      %p77 = scmp.eq.s32.totalorder %s76, 0
      %s79 = sadd.s32 %s78, 1
      %s80 = scalar_select %p77, %s78, %s79
      %p83 = pneg %p77
      %p84 = scmp.eq.s32.totalorder %s28, 1
      %p85 = por %p83, %p84
      %p86 = scmp.ne.s32.totalorder %s78, %s81
      %p87 = scmp.eq.s32.totalorder %s28, 0
      %p88 = por %p86, %p87
      %p89 = scmp.ne.s32.totalorder %s78, %s81
      %p90 = scmp.eq.s32.totalorder %s33, 1
      %p91 = por %p89, %p90
      %p92 = scmp.ne.s32.totalorder %s81, %s82
      %p93 = scmp.eq.s32.totalorder %s33, 0
      %p94 = por %p92, %p93
      %p95 = scmp.ne.s32.totalorder %s81, %s82
      %p96 = scmp.eq.s32.totalorder %s34, 1
      %p97 = por %p95, %p96
      %p99 = scmp.ne.s32.totalorder %s82, %s98
      %p100 = scmp.eq.s32.totalorder %s34, 0
      %p101 = por %p99, %p100
      %s102 = ssub.s32 %s35, %s47
      %p103 = scmp.eq.s32.totalorder %s102, 0
      %s105 = sadd.s32 %s104, 1
      %s106 = scalar_select %p103, %s104, %s105
      %p109 = pneg %p103
      %p110 = scmp.eq.s32.totalorder %s28, 1
      %p111 = por %p109, %p110
      %p112 = scmp.ne.s32.totalorder %s104, %s107
      %p113 = scmp.eq.s32.totalorder %s28, 0
      %p114 = por %p112, %p113
      %p115 = scmp.ne.s32.totalorder %s104, %s107
      %p116 = scmp.eq.s32.totalorder %s33, 1
      %p117 = por %p115, %p116
      %p118 = scmp.ne.s32.totalorder %s107, %s108
      %p119 = scmp.eq.s32.totalorder %s33, 0
      %p120 = por %p118, %p119
      %p121 = scmp.ne.s32.totalorder %s107, %s108
      %p122 = scmp.eq.s32.totalorder %s34, 1
      %p123 = por %p121, %p122
      %p125 = scmp.ne.s32.totalorder %s108, %s124
      %p126 = scmp.eq.s32.totalorder %s34, 0
      %p127 = por %p125, %p126
      %s129 = sadd.s32 %s128, 1
      %p132 = scmp.eq.s32.totalorder %s28, 1
      %p133 = scmp.ne.s32.totalorder %s128, %s130
      %p134 = scmp.eq.s32.totalorder %s28, 0
      %p135 = por %p133, %p134
      %p136 = scmp.ne.s32.totalorder %s128, %s130
      %p137 = scmp.eq.s32.totalorder %s33, 1
      %p138 = por %p136, %p137
      %p139 = scmp.ne.s32.totalorder %s130, %s131
      %p140 = scmp.eq.s32.totalorder %s33, 0
      %p141 = por %p139, %p140
      %p142 = scmp.ne.s32.totalorder %s130, %s131
      %p143 = scmp.eq.s32.totalorder %s34, 1
      %p144 = por %p142, %p143
      %p146 = scmp.ne.s32.totalorder %s131, %s145
      %p147 = scmp.eq.s32.totalorder %s34, 0
      %p148 = por %p146, %p147
      %s150 = sadd.s32 %s149, 1
      %p153 = scmp.eq.s32.totalorder %s28, 1
      %p154 = scmp.ne.s32.totalorder %s149, %s151
      %p155 = scmp.eq.s32.totalorder %s28, 0
      %p156 = por %p154, %p155
      %p157 = scmp.ne.s32.totalorder %s149, %s151
      %p158 = scmp.eq.s32.totalorder %s33, 1
      %p159 = por %p157, %p158
      %p160 = scmp.ne.s32.totalorder %s151, %s152
      %p161 = scmp.eq.s32.totalorder %s33, 0
      %p162 = por %p160, %p161
      %p163 = scmp.ne.s32.totalorder %s151, %s152
      %p164 = scmp.eq.s32.totalorder %s34, 1
      %p165 = por %p163, %p164
      %p167 = scmp.ne.s32.totalorder %s152, %s166
      %p168 = scmp.eq.s32.totalorder %s34, 0
      %p169 = por %p167, %p168
      %s171 = sadd.s32 %s170, 1
      %p174 = scmp.eq.s32.totalorder %s28, 1
      %p175 = scmp.ne.s32.totalorder %s170, %s172
      %p176 = scmp.eq.s32.totalorder %s28, 0
      %p177 = por %p175, %p176
      %p178 = scmp.ne.s32.totalorder %s170, %s172
      %p179 = scmp.eq.s32.totalorder %s33, 1
      %p180 = por %p178, %p179
      %p181 = scmp.ne.s32.totalorder %s172, %s173
      %p182 = scmp.eq.s32.totalorder %s33, 0
      %p183 = por %p181, %p182
      %p184 = scmp.ne.s32.totalorder %s172, %s173
      %p185 = scmp.eq.s32.totalorder %s34, 1
      %p186 = por %p184, %p185
      %p188 = scmp.ne.s32.totalorder %s173, %s187
      %p189 = scmp.eq.s32.totalorder %s34, 0
      %p190 = por %p188, %p189
      %s192 = sadd.s32 %s191, 1
      %p195 = scmp.eq.s32.totalorder %s28, 1
      %p196 = scmp.ne.s32.totalorder %s191, %s193
      %p197 = scmp.eq.s32.totalorder %s28, 0
      %p198 = por %p196, %p197
      %p199 = scmp.ne.s32.totalorder %s191, %s193
      %p200 = scmp.eq.s32.totalorder %s33, 1
      %p201 = por %p199, %p200
      %p202 = scmp.ne.s32.totalorder %s193, %s194
      %p203 = scmp.eq.s32.totalorder %s33, 0
      %p204 = por %p202, %p203
      %p205 = scmp.ne.s32.totalorder %s193, %s194
      %p206 = scmp.eq.s32.totalorder %s34, 1
      %p207 = por %p205, %p206
      %p209 = scmp.ne.s32.totalorder %s194, %s208
      %p210 = scmp.eq.s32.totalorder %s34, 0
      %p211 = por %p209, %p210
      %s212 = ssub.s32 %s35, %s47
      %s213 = ssub.s32 %s36, %s43
      %s214 = sor.u32 %s212, %s213
      %p215 = scmp.eq.s32.totalorder %s214, 0
      %s217 = sadd.s32 %s216, 1
      %s218 = scalar_select %p215, %s216, %s217
      %p221 = pneg %p215
      %p222 = scmp.eq.s32.totalorder %s28, 1
      %p223 = por %p221, %p222
      %p224 = scmp.ne.s32.totalorder %s216, %s219
      %p225 = scmp.eq.s32.totalorder %s28, 0
      %p226 = por %p224, %p225
      %p227 = scmp.ne.s32.totalorder %s216, %s219
      %p228 = scmp.eq.s32.totalorder %s33, 1
      %p229 = por %p227, %p228
      %p230 = scmp.ne.s32.totalorder %s219, %s220
      %p231 = scmp.eq.s32.totalorder %s33, 0
      %p232 = por %p230, %p231
      %p233 = scmp.ne.s32.totalorder %s219, %s220
      %p234 = scmp.eq.s32.totalorder %s34, 1
      %p235 = por %p233, %p234
      %p237 = scmp.ne.s32.totalorder %s220, %s236
      %p238 = scmp.eq.s32.totalorder %s34, 0
      %p239 = por %p237, %p238
      %s240 = ssub.s32 %s35, %s47
      %s241 = ssub.s32 %s36, %s43
      %s242 = sor.u32 %s240, %s241
      %p243 = scmp.eq.s32.totalorder %s242, 0
      %s245 = sadd.s32 %s244, 1
      %s246 = scalar_select %p243, %s244, %s245
      %p249 = pneg %p243
      %p250 = scmp.eq.s32.totalorder %s28, 1
      %p251 = por %p249, %p250
      %p252 = scmp.ne.s32.totalorder %s244, %s247
      %p253 = scmp.eq.s32.totalorder %s28, 0
      %p254 = por %p252, %p253
      %p255 = scmp.ne.s32.totalorder %s244, %s247
      %p256 = scmp.eq.s32.totalorder %s33, 1
      %p257 = por %p255, %p256
      %p258 = scmp.ne.s32.totalorder %s247, %s248
      %p259 = scmp.eq.s32.totalorder %s33, 0
      %p260 = por %p258, %p259
      %p261 = scmp.ne.s32.totalorder %s247, %s248
      %p262 = scmp.eq.s32.totalorder %s34, 1
      %p263 = por %p261, %p262
      %p265 = scmp.ne.s32.totalorder %s248, %s264
      %p266 = scmp.eq.s32.totalorder %s34, 0
      %p267 = por %p265, %p266
      %p268 = scmp.le.s32.totalorder 1, %s28
      %p269 = scmp.lt.s32.totalorder %s28, 3
      %p270 = pnand %p268, %p269
      %p271 = pneg %p270
      // Predicated region
      $region9: #{tpu_custom_call.1} parent=5 // pred_check
        _
      $region10: #{tpu_custom_call.1} parent=5 // pred_check_branch
        %273 = sbr.rel (%p270) target = $region12
      $region11: #{tpu_custom_call.1} parent=5 // pred_region
        %s274 = ssub.s32 %s28, 1
        // Predicated region
        $region13: #{tpu_custom_call.1} parent=11 // pred_check
          %p275 = pneg %p141
        $region14: #{tpu_custom_call.1} parent=11 // pred_check_branch
          %277 = sbr.rel (%p275) target = $region16
        $region15: #{tpu_custom_call.1} parent=11 // pred_region
          %s279 = ssub.s32 512, 512
          %280 = vsyncadd [#allocation10], %s279
          %s281 = sshll.u32 [#allocation11], 4
          %s282 = int_to_ptr.vmem [resolvable:$true] %s281
          %287 = dma.hbm_to_vmem [thread:$0]  %s3, 512, %s282, [#allocation10], 128, 128, 8
        $region16: #{tpu_custom_call.1} parent=11 // pred_fallthru
          _
        // Predicated region
        $region17: #{tpu_custom_call.1} parent=11 // pred_check
          %p288 = pneg %p162
        $region18: #{tpu_custom_call.1} parent=11 // pred_check_branch
          %290 = sbr.rel (%p288) target = $region20
        $region19: #{tpu_custom_call.1} parent=11 // pred_region
          _
        $region20: #{tpu_custom_call.1} parent=11 // pred_fallthru
          _
        // Predicated region
        $region21: #{tpu_custom_call.1} parent=11 // pred_check
          %p291 = pneg %p183
        $region22: #{tpu_custom_call.1} parent=11 // pred_check_branch
          %293 = sbr.rel (%p291) target = $region24
        $region23: #{tpu_custom_call.1} parent=11 // pred_region
          %s295 = ssub.s32 512, 512
          %296 = vsyncadd [#allocation13], %s295
          %s297 = sshll.u32 [#allocation12], 4
          %s298 = int_to_ptr.vmem [resolvable:$true] %s297
          %303 = dma.hbm_to_vmem [thread:$0]  %s5, 512, %s298, [#allocation13], 128, 128, 8
        $region24: #{tpu_custom_call.1} parent=11 // pred_fallthru
          _
        // Predicated region
        $region25: #{tpu_custom_call.1} parent=11 // pred_check
          %p304 = pneg %p204
        $region26: #{tpu_custom_call.1} parent=11 // pred_check_branch
          %306 = sbr.rel (%p304) target = $region28
        $region27: #{tpu_custom_call.1} parent=11 // pred_region
          _
        $region28: #{tpu_custom_call.1} parent=11 // pred_fallthru
          _
      $region12: #{tpu_custom_call.1} parent=5 // pred_fallthru
        _
      %p307 = scmp.lt.s32.totalorder %s28, 2
      // Predicated region
      $region29: #{tpu_custom_call.1} parent=5 // pred_check
        %p308 = pneg %p307
      $region30: #{tpu_custom_call.1} parent=5 // pred_check_branch
        %310 = sbr.rel (%p308) target = $region32
      $region31: #{tpu_custom_call.1} parent=5 // pred_region
        // Predicated region
        $region33: #{tpu_custom_call.1} parent=31 // pred_check
          %p311 = pneg %p62
        $region34: #{tpu_custom_call.1} parent=31 // pred_check_branch
          %313 = sbr.rel (%p311) target = $region36
        $region35: #{tpu_custom_call.1} parent=31 // pred_region
          %s314 = sand.u32 %s52, 1
          %s315 = scalar_lea.sflag [#allocation7], %s314
          %s316 = sand.u32 %s52, 1
          %s317 = smul.addr %s316, 8
          %s318 = scalar_lea.vmem [#allocation6], %s317
          %s320 = ssub.s32 128, 128
          %321 = vsyncadd %s315, %s320
          %s322 = sadd.s32 %s36, %s35
          %s323 = smul.addr %s322, 128
          %s324 = scalar_lea.hbm %s0, %s323
          %s326 = sshll.u32 %s318, 4
          %s327 = int_to_ptr.vmem [resolvable:$true] %s326
          %329 = dma.hbm_to_vmem [thread:$0]  %s324, 128, %s327, %s315
        $region36: #{tpu_custom_call.1} parent=31 // pred_fallthru
          _
        // Predicated region
        $region37: #{tpu_custom_call.1} parent=31 // pred_check
          %p330 = pneg %p88
        $region38: #{tpu_custom_call.1} parent=31 // pred_check_branch
          %332 = sbr.rel (%p330) target = $region40
        $region39: #{tpu_custom_call.1} parent=31 // pred_region
          %s333 = sand.u32 %s28, 1
          %s334 = scalar_lea.sflag [#allocation10], %s333
          %s335 = sand.u32 %s78, 1
          %s336 = smul.addr %s335, 8
          %s337 = scalar_lea.vmem [#allocation9], %s336
          %s339 = ssub.s32 128, 128
          %340 = vsyncadd %s334, %s339
          %s341 = smul.addr %s35, 128
          %s342 = scalar_lea.hbm %s1, %s341
          %s344 = sshll.u32 %s337, 4
          %s345 = int_to_ptr.vmem [resolvable:$true] %s344
          %347 = dma.hbm_to_vmem [thread:$0]  %s342, 128, %s345, %s334
        $region40: #{tpu_custom_call.1} parent=31 // pred_fallthru
          _
        // Predicated region
        $region41: #{tpu_custom_call.1} parent=31 // pred_check
          %p348 = pneg %p114
        $region42: #{tpu_custom_call.1} parent=31 // pred_check_branch
          %350 = sbr.rel (%p348) target = $region44
        $region43: #{tpu_custom_call.1} parent=31 // pred_region
          %p351 = scmp.lt.s32.totalorder %s35, 1
          %s352 = scalar_select %p351, %s35, 1
          %s353 = scalar_lea.vmem %s2, %s352
        $region44: #{tpu_custom_call.1} parent=31 // pred_fallthru
          _
      $region32: #{tpu_custom_call.1} parent=5 // pred_fallthru
        _
      %p354 = scmp.le.s32.totalorder 1, %s28
      %p355 = scmp.lt.s32.totalorder %s28, 3
      %p356 = pnand %p354, %p355
      %p357 = pneg %p356
      // Predicated region
      $region45: #{tpu_custom_call.1} parent=5 // pred_check
        _
      $region46: #{tpu_custom_call.1} parent=5 // pred_check_branch
        %359 = sbr.rel (%p356) target = $region48
      $region47: #{tpu_custom_call.1} parent=5 // pred_region
        %s360 = ssub.s32 %s28, 1
        %s361 = sand.u32 %s55, 1
        %s362 = scalar_lea.sflag [#allocation7], %s361
        %s363 = sand.u32 %s55, 1
        %s364 = smul.addr %s363, 8
        %s365 = scalar_lea.vmem [#allocation6], %s364
        // Predicated region
        $region49: #{tpu_custom_call.1} parent=47 // pred_check
          %p366 = pneg %p68
        $region50: #{tpu_custom_call.1} parent=47 // pred_check_branch
          %368 = sbr.rel (%p366) target = $region52
        $region51: #{tpu_custom_call.1} parent=47 // pred_region
          %369 = dma.done %s362, 128
        $region52: #{tpu_custom_call.1} parent=47 // pred_fallthru
          _
        %s370 = sand.u32 %s33, 1
        %s371 = scalar_lea.sflag [#allocation10], %s370
        %s372 = sand.u32 %s81, 1
        %s373 = smul.addr %s372, 8
        %s374 = scalar_lea.vmem [#allocation9], %s373
        // Predicated region
        $region53: #{tpu_custom_call.1} parent=47 // pred_check
          %p375 = pneg %p94
        $region54: #{tpu_custom_call.1} parent=47 // pred_check_branch
          %377 = sbr.rel (%p375) target = $region56
        $region55: #{tpu_custom_call.1} parent=47 // pred_region
          %378 = dma.done %s371, 128
        $region56: #{tpu_custom_call.1} parent=47 // pred_fallthru
          _
        // Predicated region
        $region57: #{tpu_custom_call.1} parent=47 // pred_check
          %p379 = pneg %p141
        $region58: #{tpu_custom_call.1} parent=47 // pred_check_branch
          %381 = sbr.rel (%p379) target = $region60
        $region59: #{tpu_custom_call.1} parent=47 // pred_region
          %382 = dma.done [#allocation10], 512
        $region60: #{tpu_custom_call.1} parent=47 // pred_fallthru
          _
        // Predicated region
        $region61: #{tpu_custom_call.1} parent=47 // pred_check
          %p383 = pneg %p183
        $region62: #{tpu_custom_call.1} parent=47 // pred_check_branch
          %385 = sbr.rel (%p383) target = $region64
        $region63: #{tpu_custom_call.1} parent=47 // pred_region
          %386 = dma.done [#allocation13], 512
        $region64: #{tpu_custom_call.1} parent=47 // pred_fallthru
          _
        %s387 = sand.u32 %s55, 1
        %s388 = scalar_lea.sflag [#allocation7], %s387
        %s389 = sand.u32 %s55, 1
        %s390 = smul.addr %s389, 8
        %s391 = scalar_lea.vmem [#allocation6], %s390
        %p392 = pneg %p68
        %p393 = pneg %p65
        %s394 = sand.u32 %s33, 1
        %s395 = scalar_lea.sflag [#allocation10], %s394
        %s396 = sand.u32 %s81, 1
        %s397 = smul.addr %s396, 8
        %s398 = scalar_lea.vmem [#allocation9], %s397
        %p399 = pneg %p94
        %p400 = pneg %p91
        %p401 = scmp.lt.s32.totalorder %s37, 1
        %s402 = scalar_select %p401, %s37, 1
        %s403 = scalar_lea.vmem %s2, %s402
        %p404 = pneg %p120
        %p405 = pneg %p117
        %p406 = pneg %p141
        %p407 = pneg %p138
        %p408 = pneg %p162
        %p409 = pneg %p159
        %p410 = pneg %p183
        %p411 = pneg %p180
        %p412 = pneg %p204
        %p413 = pneg %p201
        %p414 = pneg %p232
        %p415 = pneg %p229
        %s416 = sand.u32 %s219, 1
        %s417 = scalar_lea.sflag [#allocation8], %s416
        %s418 = sand.u32 %s219, 1
        %s419 = smul.addr %s418, 8
        %s420 = scalar_lea.vmem [#allocation14], %s419
        %p421 = pneg %p260
        %p422 = pneg %p257
        %s423 = sand.u32 %s247, 1
        %s424 = scalar_lea.sflag [#allocation16], %s423
        %s425 = sand.u32 %s247, 1
        %s426 = smul.addr %s425, 8
        %s427 = scalar_lea.vmem [#allocation15], %s426
        %p428 = scmp.lt.s32.totalorder %s37, 1
        %s429 = scalar_select %p428, %s37, 1
        %s430 = scalar_lea.vmem %s2, %s429
        %p431 = scmp.eq.s32.totalorder %s38, 0
        // Predicated region
        $region65: #{tpu_custom_call.1} parent=47 // pred_check
          %p432 = pneg %p431
        $region66: #{tpu_custom_call.1} parent=47 // pred_check_branch
          %434 = sbr.rel (%p432) target = $region68
        $region67: #{tpu_custom_call.1} parent=47 // pred_region
          %v435 = vld [vmem:[%s374] sm:$0xff]
          %v436 = vld [vmem:[#allocation12] sm:$0xff]
          %v437 = vld [vmem:[#allocation12 + $0x8] sm:$0xff]
          %v438 = vld [vmem:[#allocation12 + $0x10] sm:$0xff]
          %v439 = vld [vmem:[#allocation12 + $0x18] sm:$0xff]
          %v440 = vld [vmem:[%s6] sm:$0x1]
          %v442 = vlaneseq
          %v443 = vshrl.u32 %v442, 7
          %v444 = vsub.s32 0, %v443
          %v445 = vrot.slane %v440, %v444
          %vm447 = vcmask 261120
          %v449 = vsel %vm447, %v435, 0
          %451 = vmatprep.subr.mxu0 0.0
          %452 = vmatpush1.msra.mxu0 0.0
          %453 = vmatprep.subr.mxu0 0.0
          %454 = vmatpush1.msra.mxu0 0.0
          %455 = vmatprep.subr.mxu0 0.0
          %456 = vmatpush1.msra.mxu0 0.0
          %457 = vmatprep.subr.mxu0 0.0
          %458 = vmatpush1.msra.mxu0 0.0
          %459 = vmatprep.subr.mxu0 0.0
          %460 = vmatpush1.msra.mxu0 0.0
          %461 = vmatprep.subr.mxu0 0.0
          %462 = vmatpush1.msra.mxu0 0.0
          %463 = vmatprep.subr.mxu0 0.0
          %464 = vmatpush1.msra.mxu0 0.0
          %465 = vmatprep.subr.mxu0 0.0
          %466 = vmatpush1.msra.mxu0 0.0
          %467 = vmatprep.subr.mxu0 0.0
          %468 = vmatpush1.msra.mxu0 0.0
          %469 = vmatprep.subr.mxu0 0.0
          %470 = vmatpush1.msra.mxu0 0.0
          %471 = vmatprep.subr.mxu0 0.0
          %472 = vmatpush1.msra.mxu0 0.0
          %473 = vmatprep.subr.mxu0 0.0
          %474 = vmatpush1.msra.mxu0 0.0
          %475 = vmatprep.subr.mxu0 0.0
          %476 = vmatpush1.msra.mxu0 %v439
          %477 = vmatprep.subr.mxu0 0.0
          %478 = vmatpush1.msra.mxu0 %v438
          %479 = vmatprep.subr.mxu0 0.0
          %480 = vmatpush1.msra.mxu0 %v437
          %481 = vmatprep.subr.mxu0 0.0
          %482 = vmatpush1.msra.mxu0 %v436
          %483 = vmatprep.subr.mxu0 0.0
          %484 = vmatpush2.msra.mxu0 0.0
          %485 = vmatprep.subr.mxu0 0.0
          %486 = vmatpush2.msra.mxu0 0.0
          %487 = vmatprep.subr.mxu0 0.0
          %488 = vmatpush2.msra.mxu0 0.0
          %489 = vmatprep.subr.mxu0 0.0
          %490 = vmatpush2.msra.mxu0 0.0
          %491 = vmatprep.subr.mxu0 0.0
          %492 = vmatpush2.msra.mxu0 0.0
          %493 = vmatprep.subr.mxu0 0.0
          %494 = vmatpush2.msra.mxu0 0.0
          %495 = vmatprep.subr.mxu0 0.0
          %496 = vmatpush2.msra.mxu0 0.0
          %497 = vmatprep.subr.mxu0 0.0
          %498 = vmatpush2.msra.mxu0 0.0
          %499 = vmatprep.subr.mxu0 0.0
          %500 = vmatpush2.msra.mxu0 0.0
          %501 = vmatprep.subr.mxu0 0.0
          %502 = vmatpush2.msra.mxu0 0.0
          %503 = vmatprep.subr.mxu0 0.0
          %504 = vmatpush2.msra.mxu0 0.0
          %505 = vmatprep.subr.mxu0 0.0
          %506 = vmatpush2.msra.mxu0 0.0
          %507 = vmatprep.subr.mxu0 0.0
          %508 = vmatpush2.msra.mxu0 0.0
          %509 = vmatprep.subr.mxu0 0.0
          %510 = vmatpush2.msra.mxu0 0.0
          %511 = vmatprep.subr.mxu0 0.0
          %512 = vmatpush2.msra.mxu0 0.0
          %513 = vmatprep.subr.mxu0 0.0
          %514 = vmatpush2.msra.mxu0 0.0
          %515 = vmatprep.mubr.f32.mxu0 0.0
          %516 = vmatmul.mubr.f32.gmra.mxu0 %v449
          %v517 = vpop.f32.mrf.mxu0
          %v518 = vadd.f32 %v445, %v517
          %v519 = vpop.f32.mrf.mxu0
          %520 = vdwg.mxu0
          %521 = vxpose.xlu0.b32.start [1/16] %v518, 128
          %522 = vxpose.xlu0.b32.cont [2/16] 0.0, 128
          %523 = vxpose.xlu0.b32.cont [3/16] 0.0, 128
          %524 = vxpose.xlu0.b32.cont [4/16] 0.0, 128
          %525 = vxpose.xlu0.b32.cont [5/16] 0.0, 128
          %526 = vxpose.xlu0.b32.cont [6/16] 0.0, 128
          %527 = vxpose.xlu0.b32.cont [7/16] 0.0, 128
          %528 = vxpose.xlu0.b32.cont [8/16] 0.0, 128
          %529 = vxpose.xlu0.b32.cont [9/16] 0.0, 128
          %530 = vxpose.xlu0.b32.cont [10/16] 0.0, 128
          %531 = vxpose.xlu0.b32.cont [11/16] 0.0, 128
          %532 = vxpose.xlu0.b32.cont [12/16] 0.0, 128
          %533 = vxpose.xlu0.b32.cont [13/16] 0.0, 128
          %534 = vxpose.xlu0.b32.cont [14/16] 0.0, 128
          %535 = vxpose.xlu0.b32.cont [15/16] 0.0, 128
          %536 = vxpose.xlu0.b32.end [16/16] 0.0, 128
          %v537 = vpop.trf.xlu0
          %v538 = vpop.trf.xlu0
          %v539 = vpop.trf.xlu0
          %v540 = vpop.trf.xlu0
          %v541 = vpop.trf.xlu0
          %v542 = vpop.trf.xlu0
          %v543 = vpop.trf.xlu0
          %v544 = vpop.trf.xlu0
          %v545 = vpop.trf.xlu0
          %v546 = vpop.trf.xlu0
          %v547 = vpop.trf.xlu0
          %v548 = vpop.trf.xlu0
          %v549 = vpop.trf.xlu0
          %v550 = vpop.trf.xlu0
          %v551 = vpop.trf.xlu0
          %v552 = vpop.trf.xlu0
          %vm553 = vcmask 64512
          %554 = vst.msk [vmem:[#allocation2] sm:$0xff] %vm553, %v537
          %555 = vst.msk [vmem:[#allocation2 + $0x8] sm:$0xff] %vm553, %v538
          %556 = vst.msk [vmem:[#allocation2 + $0x10] sm:$0xff] %vm553, %v539
          %557 = vst.msk [vmem:[#allocation2 + $0x18] sm:$0xff] %vm553, %v540
          %559 = vrot.lane.b32.xlu0 %v518, 96
          %v560 = vpop.permute.xlu0 %559
          %562 = vst.msk [vmem:[#allocation3] sm:$0xff] %vm553, %v560
          %563 = vrot.lane.b32.xlu0 %v518, 88
          %v564 = vpop.permute.xlu0 %563
          %s566 = scalar_lea.vmem [#allocation3], 8
          %567 = vst.msk [vmem:[%s566] sm:$0xff] %vm553, %v564
          %568 = vrot.lane.b32.xlu0 %v518, 80
          %v569 = vpop.permute.xlu0 %568
          %s571 = scalar_lea.vmem [#allocation3], 16
          %572 = vst.msk [vmem:[%s571] sm:$0xff] %vm553, %v569
          %573 = vrot.lane.b32.xlu0 %v518, 72
          %v574 = vpop.permute.xlu0 %573
          %s576 = scalar_lea.vmem [#allocation3], 24
          %577 = vst.msk [vmem:[%s576] sm:$0xff] %vm553, %v574
        $region68: #{tpu_custom_call.1} parent=47 // pred_fallthru
          _
        %v578 = vld [vmem:[%s365] sm:$0xff]
        %v579 = vld [vmem:[#allocation11] sm:$0xff]
        %v580 = vld [vmem:[#allocation11 + $0x8] sm:$0xff]
        %v581 = vld [vmem:[#allocation11 + $0x10] sm:$0xff]
        %v582 = vld [vmem:[#allocation11 + $0x18] sm:$0xff]
        %v583 = vld [vmem:[%s4] sm:$0x1]
        %v585 = vlaneseq
        %v586 = vshrl.u32 %v585, 7
        %v587 = vsub.s32 0, %v586
        %v588 = vrot.slane %v583, %v587
        %vm590 = vcmask 261120
        %v592 = vsel %vm590, %v578, 0
        %594 = vmatprep.subr.mxu0 0.0
        %595 = vmatpush1.msra.mxu0 0.0
        %596 = vmatprep.subr.mxu0 0.0
        %597 = vmatpush1.msra.mxu0 0.0
        %598 = vmatprep.subr.mxu0 0.0
        %599 = vmatpush1.msra.mxu0 0.0
        %600 = vmatprep.subr.mxu0 0.0
        %601 = vmatpush1.msra.mxu0 0.0
        %602 = vmatprep.subr.mxu0 0.0
        %603 = vmatpush1.msra.mxu0 0.0
        %604 = vmatprep.subr.mxu0 0.0
        %605 = vmatpush1.msra.mxu0 0.0
        %606 = vmatprep.subr.mxu0 0.0
        %607 = vmatpush1.msra.mxu0 0.0
        %608 = vmatprep.subr.mxu0 0.0
        %609 = vmatpush1.msra.mxu0 0.0
        %610 = vmatprep.subr.mxu0 0.0
        %611 = vmatpush1.msra.mxu0 0.0
        %612 = vmatprep.subr.mxu0 0.0
        %613 = vmatpush1.msra.mxu0 0.0
        %614 = vmatprep.subr.mxu0 0.0
        %615 = vmatpush1.msra.mxu0 0.0
        %616 = vmatprep.subr.mxu0 0.0
        %617 = vmatpush1.msra.mxu0 0.0
        %618 = vmatprep.subr.mxu0 0.0
        %619 = vmatpush1.msra.mxu0 %v582
        %620 = vmatprep.subr.mxu0 0.0
        %621 = vmatpush1.msra.mxu0 %v581
        %622 = vmatprep.subr.mxu0 0.0
        %623 = vmatpush1.msra.mxu0 %v580
        %624 = vmatprep.subr.mxu0 0.0
        %625 = vmatpush1.msra.mxu0 %v579
        %626 = vmatprep.subr.mxu0 0.0
        %627 = vmatpush2.msra.mxu0 0.0
        %628 = vmatprep.subr.mxu0 0.0
        %629 = vmatpush2.msra.mxu0 0.0
        %630 = vmatprep.subr.mxu0 0.0
        %631 = vmatpush2.msra.mxu0 0.0
        %632 = vmatprep.subr.mxu0 0.0
        %633 = vmatpush2.msra.mxu0 0.0
        %634 = vmatprep.subr.mxu0 0.0
        %635 = vmatpush2.msra.mxu0 0.0
        %636 = vmatprep.subr.mxu0 0.0
        %637 = vmatpush2.msra.mxu0 0.0
        %638 = vmatprep.subr.mxu0 0.0
        %639 = vmatpush2.msra.mxu0 0.0
        %640 = vmatprep.subr.mxu0 0.0
        %641 = vmatpush2.msra.mxu0 0.0
        %642 = vmatprep.subr.mxu0 0.0
        %643 = vmatpush2.msra.mxu0 0.0
        %644 = vmatprep.subr.mxu0 0.0
        %645 = vmatpush2.msra.mxu0 0.0
        %646 = vmatprep.subr.mxu0 0.0
        %647 = vmatpush2.msra.mxu0 0.0
        %648 = vmatprep.subr.mxu0 0.0
        %649 = vmatpush2.msra.mxu0 0.0
        %650 = vmatprep.subr.mxu0 0.0
        %651 = vmatpush2.msra.mxu0 0.0
        %652 = vmatprep.subr.mxu0 0.0
        %653 = vmatpush2.msra.mxu0 0.0
        %654 = vmatprep.subr.mxu0 0.0
        %655 = vmatpush2.msra.mxu0 0.0
        %656 = vmatprep.subr.mxu0 0.0
        %657 = vmatpush2.msra.mxu0 0.0
        %658 = vmatprep.mubr.f32.mxu0 0.0
        %659 = vmatmul.mubr.f32.gmra.mxu0 %v592
        %v660 = vpop.f32.mrf.mxu0
        %v661 = vadd.f32 %v588, %v660
        %v662 = vpop.f32.mrf.mxu0
        %663 = vdwg.mxu0
        %vm664 = vcmask 64512
        %665 = vst.msk [vmem:[#allocation4] sm:$0xff] %vm664, %v661
        %667 = vrot.lane.b32.xlu0 %v661, 120
        %v668 = vpop.permute.xlu0 %667
        %s670 = scalar_lea.vmem [#allocation4], 8
        %671 = vst.msk [vmem:[%s670] sm:$0xff] %vm664, %v668
        %672 = vrot.lane.b32.xlu0 %v661, 112
        %v673 = vpop.permute.xlu0 %672
        %s675 = scalar_lea.vmem [#allocation4], 16
        %676 = vst.msk [vmem:[%s675] sm:$0xff] %vm664, %v673
        %677 = vrot.lane.b32.xlu0 %v661, 104
        %v678 = vpop.permute.xlu0 %677
        %s680 = scalar_lea.vmem [#allocation4], 24
        %681 = vst.msk [vmem:[%s680] sm:$0xff] %vm664, %v678
        %v682 = vld [vmem:[%s430] sm:$0x1]
        %v684 = vlaneseq
        %v685 = vshrl.u32 %v684, 7
        %v686 = vsub.s32 0, %v685
        %v687 = vrot.slane %v682, %v686
        %v689 = vld [vmem:[#allocation2] sm:$0xff]
        %v690 = vld [vmem:[#allocation2 + $0x8] sm:$0xff]
        %v691 = vld [vmem:[#allocation2 + $0x10] sm:$0xff]
        %v692 = vld [vmem:[#allocation2 + $0x18] sm:$0xff]
        %v693 = vsel %vm590, %v661, 0
        %695 = vmatprep.subr.mxu0 0.0
        %696 = vmatpush1.msra.mxu0 0.0
        %697 = vmatprep.subr.mxu0 0.0
        %698 = vmatpush1.msra.mxu0 0.0
        %699 = vmatprep.subr.mxu0 0.0
        %700 = vmatpush1.msra.mxu0 0.0
        %701 = vmatprep.subr.mxu0 0.0
        %702 = vmatpush1.msra.mxu0 0.0
        %703 = vmatprep.subr.mxu0 0.0
        %704 = vmatpush1.msra.mxu0 0.0
        %705 = vmatprep.subr.mxu0 0.0
        %706 = vmatpush1.msra.mxu0 0.0
        %707 = vmatprep.subr.mxu0 0.0
        %708 = vmatpush1.msra.mxu0 0.0
        %709 = vmatprep.subr.mxu0 0.0
        %710 = vmatpush1.msra.mxu0 0.0
        %711 = vmatprep.subr.mxu0 0.0
        %712 = vmatpush1.msra.mxu0 0.0
        %713 = vmatprep.subr.mxu0 0.0
        %714 = vmatpush1.msra.mxu0 0.0
        %715 = vmatprep.subr.mxu0 0.0
        %716 = vmatpush1.msra.mxu0 0.0
        %717 = vmatprep.subr.mxu0 0.0
        %718 = vmatpush1.msra.mxu0 0.0
        %719 = vmatprep.subr.mxu0 0.0
        %720 = vmatpush1.msra.mxu0 %v692
        %721 = vmatprep.subr.mxu0 0.0
        %722 = vmatpush1.msra.mxu0 %v691
        %723 = vmatprep.subr.mxu0 0.0
        %724 = vmatpush1.msra.mxu0 %v690
        %725 = vmatprep.subr.mxu0 0.0
        %726 = vmatpush1.msra.mxu0 %v689
        %727 = vmatprep.subr.mxu0 0.0
        %728 = vmatpush2.msra.mxu0 0.0
        %729 = vmatprep.subr.mxu0 0.0
        %730 = vmatpush2.msra.mxu0 0.0
        %731 = vmatprep.subr.mxu0 0.0
        %732 = vmatpush2.msra.mxu0 0.0
        %733 = vmatprep.subr.mxu0 0.0
        %734 = vmatpush2.msra.mxu0 0.0
        %735 = vmatprep.subr.mxu0 0.0
        %736 = vmatpush2.msra.mxu0 0.0
        %737 = vmatprep.subr.mxu0 0.0
        %738 = vmatpush2.msra.mxu0 0.0
        %739 = vmatprep.subr.mxu0 0.0
        %740 = vmatpush2.msra.mxu0 0.0
        %741 = vmatprep.subr.mxu0 0.0
        %742 = vmatpush2.msra.mxu0 0.0
        %743 = vmatprep.subr.mxu0 0.0
        %744 = vmatpush2.msra.mxu0 0.0
        %745 = vmatprep.subr.mxu0 0.0
        %746 = vmatpush2.msra.mxu0 0.0
        %747 = vmatprep.subr.mxu0 0.0
        %748 = vmatpush2.msra.mxu0 0.0
        %749 = vmatprep.subr.mxu0 0.0
        %750 = vmatpush2.msra.mxu0 0.0
        %751 = vmatprep.subr.mxu0 0.0
        %752 = vmatpush2.msra.mxu0 0.0
        %753 = vmatprep.subr.mxu0 0.0
        %754 = vmatpush2.msra.mxu0 0.0
        %755 = vmatprep.subr.mxu0 0.0
        %756 = vmatpush2.msra.mxu0 0.0
        %757 = vmatprep.subr.mxu0 0.0
        %758 = vmatpush2.msra.mxu0 0.0
        %759 = vmatprep.mubr.f32.mxu0 0.0
        %760 = vmatmul.mubr.f32.gmra.mxu0 %v693
        %v761 = vpop.f32.mrf.mxu0
        %v762 = vadd.f32 0.0, %v761
        %v763 = vpop.f32.mrf.mxu0
        %764 = vdwg.mxu0
        %v765 = vmul.f32 %v762, 0.25
        %v766 = vadd.f32 %v765, %v687
        %767 = vst.msk [vmem:[%s427] sm:$0xff] %vm664, %v766
        %v768 = vld [vmem:[#allocation4] sm:$0xff]
        %v769 = vld [vmem:[#allocation2] sm:$0xff]
        %v770 = vld [vmem:[#allocation3] sm:$0xff]
        %v772 = vsel %vm664, %v768, 0
        %774 = vmatprep.subr.mxu0 0.0
        %775 = vmatpush1.msra.mxu0 0.0
        %776 = vmatprep.subr.mxu0 0.0
        %777 = vmatpush1.msra.mxu0 0.0
        %778 = vmatprep.subr.mxu0 0.0
        %779 = vmatpush1.msra.mxu0 0.0
        %780 = vmatprep.subr.mxu0 0.0
        %781 = vmatpush1.msra.mxu0 0.0
        %782 = vmatprep.subr.mxu0 0.0
        %783 = vmatpush1.msra.mxu0 0.0
        %784 = vmatprep.subr.mxu0 0.0
        %785 = vmatpush1.msra.mxu0 0.0
        %786 = vmatprep.subr.mxu0 0.0
        %787 = vmatpush1.msra.mxu0 0.0
        %788 = vmatprep.subr.mxu0 0.0
        %789 = vmatpush1.msra.mxu0 0.0
        %790 = vmatprep.subr.mxu0 0.0
        %791 = vmatpush1.msra.mxu0 0.0
        %792 = vmatprep.subr.mxu0 0.0
        %793 = vmatpush1.msra.mxu0 0.0
        %794 = vmatprep.subr.mxu0 0.0
        %795 = vmatpush1.msra.mxu0 0.0
        %796 = vmatprep.subr.mxu0 0.0
        %797 = vmatpush1.msra.mxu0 0.0
        %798 = vmatprep.subr.mxu0 0.0
        %799 = vmatpush1.msra.mxu0 0.0
        %800 = vmatprep.subr.mxu0 0.0
        %801 = vmatpush1.msra.mxu0 0.0
        %802 = vmatprep.subr.mxu0 0.0
        %803 = vmatpush1.msra.mxu0 0.0
        %804 = vmatprep.subr.mxu0 0.0
        %805 = vmatpush1.msra.mxu0 %v769
        %806 = vmatprep.subr.mxu0 0.0
        %807 = vmatpush2.msra.mxu0 0.0
        %808 = vmatprep.subr.mxu0 0.0
        %809 = vmatpush2.msra.mxu0 0.0
        %810 = vmatprep.subr.mxu0 0.0
        %811 = vmatpush2.msra.mxu0 0.0
        %812 = vmatprep.subr.mxu0 0.0
        %813 = vmatpush2.msra.mxu0 0.0
        %814 = vmatprep.subr.mxu0 0.0
        %815 = vmatpush2.msra.mxu0 0.0
        %816 = vmatprep.subr.mxu0 0.0
        %817 = vmatpush2.msra.mxu0 0.0
        %818 = vmatprep.subr.mxu0 0.0
        %819 = vmatpush2.msra.mxu0 0.0
        %820 = vmatprep.subr.mxu0 0.0
        %821 = vmatpush2.msra.mxu0 0.0
        %822 = vmatprep.subr.mxu0 0.0
        %823 = vmatpush2.msra.mxu0 0.0
        %824 = vmatprep.subr.mxu0 0.0
        %825 = vmatpush2.msra.mxu0 0.0
        %826 = vmatprep.subr.mxu0 0.0
        %827 = vmatpush2.msra.mxu0 0.0
        %828 = vmatprep.subr.mxu0 0.0
        %829 = vmatpush2.msra.mxu0 0.0
        %830 = vmatprep.subr.mxu0 0.0
        %831 = vmatpush2.msra.mxu0 0.0
        %832 = vmatprep.subr.mxu0 0.0
        %833 = vmatpush2.msra.mxu0 0.0
        %834 = vmatprep.subr.mxu0 0.0
        %835 = vmatpush2.msra.mxu0 0.0
        %836 = vmatprep.subr.mxu0 0.0
        %837 = vmatpush2.msra.mxu0 0.0
        %838 = vmatprep.mubr.f32.mxu0 0.0
        %839 = vmatmul.mubr.f32.gmra.mxu0 %v772
        %v840 = vpop.f32.mrf.mxu0
        %v841 = vadd.f32 %v687, %v840
        %v842 = vpop.f32.mrf.mxu0
        %843 = vdwg.mxu0
        %v844 = vsel %vm664, %v841, -inf
        %845 = vmax.xlane.f32.xlu0 %v844
        %v846 = vpop.xlane.xlu0 %845
        %v847 = vsub.f32 %v841, %v846
        %v848 = vmul.f32 %v847, 1.442695
        %v849 = vpow.pop %v848
        %v850 = vsel %vm664, %v849, 0.0
        %851 = vadd.xlane.f32.xlu0 %v850
        %v852 = vpop.xlane.xlu0 %851
        %v853 = vrcp.pop %v852
        %v854 = vmul.f32 %v849, %v853
        %v856 = vsel %vm664, %v854, 0
        %858 = vmatprep.subr.mxu0 0.0
        %859 = vmatpush1.msra.mxu0 0.0
        %860 = vmatprep.subr.mxu0 0.0
        %861 = vmatpush1.msra.mxu0 0.0
        %862 = vmatprep.subr.mxu0 0.0
        %863 = vmatpush1.msra.mxu0 0.0
        %864 = vmatprep.subr.mxu0 0.0
        %865 = vmatpush1.msra.mxu0 0.0
        %866 = vmatprep.subr.mxu0 0.0
        %867 = vmatpush1.msra.mxu0 0.0
        %868 = vmatprep.subr.mxu0 0.0
        %869 = vmatpush1.msra.mxu0 0.0
        %870 = vmatprep.subr.mxu0 0.0
        %871 = vmatpush1.msra.mxu0 0.0
        %872 = vmatprep.subr.mxu0 0.0
        %873 = vmatpush1.msra.mxu0 0.0
        %874 = vmatprep.subr.mxu0 0.0
        %875 = vmatpush1.msra.mxu0 0.0
        %876 = vmatprep.subr.mxu0 0.0
        %877 = vmatpush1.msra.mxu0 0.0
        %878 = vmatprep.subr.mxu0 0.0
        %879 = vmatpush1.msra.mxu0 0.0
        %880 = vmatprep.subr.mxu0 0.0
        %881 = vmatpush1.msra.mxu0 0.0
        %882 = vmatprep.subr.mxu0 0.0
        %883 = vmatpush1.msra.mxu0 0.0
        %884 = vmatprep.subr.mxu0 0.0
        %885 = vmatpush1.msra.mxu0 0.0
        %886 = vmatprep.subr.mxu0 0.0
        %887 = vmatpush1.msra.mxu0 0.0
        %888 = vmatprep.subr.mxu0 0.0
        %889 = vmatpush1.msra.mxu0 %v770
        %890 = vmatprep.subr.mxu0 0.0
        %891 = vmatpush2.msra.mxu0 0.0
        %892 = vmatprep.subr.mxu0 0.0
        %893 = vmatpush2.msra.mxu0 0.0
        %894 = vmatprep.subr.mxu0 0.0
        %895 = vmatpush2.msra.mxu0 0.0
        %896 = vmatprep.subr.mxu0 0.0
        %897 = vmatpush2.msra.mxu0 0.0
        %898 = vmatprep.subr.mxu0 0.0
        %899 = vmatpush2.msra.mxu0 0.0
        %900 = vmatprep.subr.mxu0 0.0
        %901 = vmatpush2.msra.mxu0 0.0
        %902 = vmatprep.subr.mxu0 0.0
        %903 = vmatpush2.msra.mxu0 0.0
        %904 = vmatprep.subr.mxu0 0.0
        %905 = vmatpush2.msra.mxu0 0.0
        %906 = vmatprep.subr.mxu0 0.0
        %907 = vmatpush2.msra.mxu0 0.0
        %908 = vmatprep.subr.mxu0 0.0
        %909 = vmatpush2.msra.mxu0 0.0
        %910 = vmatprep.subr.mxu0 0.0
        %911 = vmatpush2.msra.mxu0 0.0
        %912 = vmatprep.subr.mxu0 0.0
        %913 = vmatpush2.msra.mxu0 0.0
        %914 = vmatprep.subr.mxu0 0.0
        %915 = vmatpush2.msra.mxu0 0.0
        %916 = vmatprep.subr.mxu0 0.0
        %917 = vmatpush2.msra.mxu0 0.0
        %918 = vmatprep.subr.mxu0 0.0
        %919 = vmatpush2.msra.mxu0 0.0
        %920 = vmatprep.subr.mxu0 0.0
        %921 = vmatpush2.msra.mxu0 0.0
        %922 = vmatprep.mubr.f32.mxu0 0.0
        %923 = vmatmul.mubr.f32.gmra.mxu0 %v856
        %v924 = vpop.f32.mrf.mxu0
        %v925 = vadd.f32 0.0, %v924
        %v926 = vpop.f32.mrf.mxu0
        %927 = vdwg.mxu0
        %v928 = vld [vmem:[%s670] sm:$0xff]
        %v929 = vld [vmem:[#allocation2 + $0x8] sm:$0xff]
        %s930 = scalar_lea.vmem [#allocation3], 8
        %v931 = vld [vmem:[%s930] sm:$0xff]
        %v933 = vsel %vm664, %v928, 0
        %935 = vmatprep.subr.mxu0 0.0
        %936 = vmatpush1.msra.mxu0 0.0
        %937 = vmatprep.subr.mxu0 0.0
        %938 = vmatpush1.msra.mxu0 0.0
        %939 = vmatprep.subr.mxu0 0.0
        %940 = vmatpush1.msra.mxu0 0.0
        %941 = vmatprep.subr.mxu0 0.0
        %942 = vmatpush1.msra.mxu0 0.0
        %943 = vmatprep.subr.mxu0 0.0
        %944 = vmatpush1.msra.mxu0 0.0
        %945 = vmatprep.subr.mxu0 0.0
        %946 = vmatpush1.msra.mxu0 0.0
        %947 = vmatprep.subr.mxu0 0.0
        %948 = vmatpush1.msra.mxu0 0.0
        %949 = vmatprep.subr.mxu0 0.0
        %950 = vmatpush1.msra.mxu0 0.0
        %951 = vmatprep.subr.mxu0 0.0
        %952 = vmatpush1.msra.mxu0 0.0
        %953 = vmatprep.subr.mxu0 0.0
        %954 = vmatpush1.msra.mxu0 0.0
        %955 = vmatprep.subr.mxu0 0.0
        %956 = vmatpush1.msra.mxu0 0.0
        %957 = vmatprep.subr.mxu0 0.0
        %958 = vmatpush1.msra.mxu0 0.0
        %959 = vmatprep.subr.mxu0 0.0
        %960 = vmatpush1.msra.mxu0 0.0
        %961 = vmatprep.subr.mxu0 0.0
        %962 = vmatpush1.msra.mxu0 0.0
        %963 = vmatprep.subr.mxu0 0.0
        %964 = vmatpush1.msra.mxu0 0.0
        %965 = vmatprep.subr.mxu0 0.0
        %966 = vmatpush1.msra.mxu0 %v929
        %967 = vmatprep.subr.mxu0 0.0
        %968 = vmatpush2.msra.mxu0 0.0
        %969 = vmatprep.subr.mxu0 0.0
        %970 = vmatpush2.msra.mxu0 0.0
        %971 = vmatprep.subr.mxu0 0.0
        %972 = vmatpush2.msra.mxu0 0.0
        %973 = vmatprep.subr.mxu0 0.0
        %974 = vmatpush2.msra.mxu0 0.0
        %975 = vmatprep.subr.mxu0 0.0
        %976 = vmatpush2.msra.mxu0 0.0
        %977 = vmatprep.subr.mxu0 0.0
        %978 = vmatpush2.msra.mxu0 0.0
        %979 = vmatprep.subr.mxu0 0.0
        %980 = vmatpush2.msra.mxu0 0.0
        %981 = vmatprep.subr.mxu0 0.0
        %982 = vmatpush2.msra.mxu0 0.0
        %983 = vmatprep.subr.mxu0 0.0
        %984 = vmatpush2.msra.mxu0 0.0
        %985 = vmatprep.subr.mxu0 0.0
        %986 = vmatpush2.msra.mxu0 0.0
        %987 = vmatprep.subr.mxu0 0.0
        %988 = vmatpush2.msra.mxu0 0.0
        %989 = vmatprep.subr.mxu0 0.0
        %990 = vmatpush2.msra.mxu0 0.0
        %991 = vmatprep.subr.mxu0 0.0
        %992 = vmatpush2.msra.mxu0 0.0
        %993 = vmatprep.subr.mxu0 0.0
        %994 = vmatpush2.msra.mxu0 0.0
        %995 = vmatprep.subr.mxu0 0.0
        %996 = vmatpush2.msra.mxu0 0.0
        %997 = vmatprep.subr.mxu0 0.0
        %998 = vmatpush2.msra.mxu0 0.0
        %999 = vmatprep.mubr.f32.mxu0 0.0
        %1000 = vmatmul.mubr.f32.gmra.mxu0 %v933
        %v1001 = vpop.f32.mrf.mxu0
        %v1002 = vadd.f32 %v687, %v1001
        %v1003 = vpop.f32.mrf.mxu0
        %1004 = vdwg.mxu0
        %v1005 = vsel %vm664, %v1002, -inf
        %1006 = vmax.xlane.f32.xlu0 %v1005
        %v1007 = vpop.xlane.xlu0 %1006
        %v1008 = vsub.f32 %v1002, %v1007
        %v1009 = vmul.f32 %v1008, 1.442695
        %v1010 = vpow.pop %v1009
        %v1011 = vsel %vm664, %v1010, 0.0
        %1012 = vadd.xlane.f32.xlu0 %v1011
        %v1013 = vpop.xlane.xlu0 %1012
        %v1014 = vrcp.pop %v1013
        %v1015 = vmul.f32 %v1010, %v1014
        %v1017 = vsel %vm664, %v1015, 0
        %1019 = vmatprep.subr.mxu0 0.0
        %1020 = vmatpush1.msra.mxu0 0.0
        %1021 = vmatprep.subr.mxu0 0.0
        %1022 = vmatpush1.msra.mxu0 0.0
        %1023 = vmatprep.subr.mxu0 0.0
        %1024 = vmatpush1.msra.mxu0 0.0
        %1025 = vmatprep.subr.mxu0 0.0
        %1026 = vmatpush1.msra.mxu0 0.0
        %1027 = vmatprep.subr.mxu0 0.0
        %1028 = vmatpush1.msra.mxu0 0.0
        %1029 = vmatprep.subr.mxu0 0.0
        %1030 = vmatpush1.msra.mxu0 0.0
        %1031 = vmatprep.subr.mxu0 0.0
        %1032 = vmatpush1.msra.mxu0 0.0
        %1033 = vmatprep.subr.mxu0 0.0
        %1034 = vmatpush1.msra.mxu0 0.0
        %1035 = vmatprep.subr.mxu0 0.0
        %1036 = vmatpush1.msra.mxu0 0.0
        %1037 = vmatprep.subr.mxu0 0.0
        %1038 = vmatpush1.msra.mxu0 0.0
        %1039 = vmatprep.subr.mxu0 0.0
        %1040 = vmatpush1.msra.mxu0 0.0
        %1041 = vmatprep.subr.mxu0 0.0
        %1042 = vmatpush1.msra.mxu0 0.0
        %1043 = vmatprep.subr.mxu0 0.0
        %1044 = vmatpush1.msra.mxu0 0.0
        %1045 = vmatprep.subr.mxu0 0.0
        %1046 = vmatpush1.msra.mxu0 0.0
        %1047 = vmatprep.subr.mxu0 0.0
        %1048 = vmatpush1.msra.mxu0 0.0
        %1049 = vmatprep.subr.mxu0 0.0
        %1050 = vmatpush1.msra.mxu0 %v931
        %1051 = vmatprep.subr.mxu0 0.0
        %1052 = vmatpush2.msra.mxu0 0.0
        %1053 = vmatprep.subr.mxu0 0.0
        %1054 = vmatpush2.msra.mxu0 0.0
        %1055 = vmatprep.subr.mxu0 0.0
        %1056 = vmatpush2.msra.mxu0 0.0
        %1057 = vmatprep.subr.mxu0 0.0
        %1058 = vmatpush2.msra.mxu0 0.0
        %1059 = vmatprep.subr.mxu0 0.0
        %1060 = vmatpush2.msra.mxu0 0.0
        %1061 = vmatprep.subr.mxu0 0.0
        %1062 = vmatpush2.msra.mxu0 0.0
        %1063 = vmatprep.subr.mxu0 0.0
        %1064 = vmatpush2.msra.mxu0 0.0
        %1065 = vmatprep.subr.mxu0 0.0
        %1066 = vmatpush2.msra.mxu0 0.0
        %1067 = vmatprep.subr.mxu0 0.0
        %1068 = vmatpush2.msra.mxu0 0.0
        %1069 = vmatprep.subr.mxu0 0.0
        %1070 = vmatpush2.msra.mxu0 0.0
        %1071 = vmatprep.subr.mxu0 0.0
        %1072 = vmatpush2.msra.mxu0 0.0
        %1073 = vmatprep.subr.mxu0 0.0
        %1074 = vmatpush2.msra.mxu0 0.0
        %1075 = vmatprep.subr.mxu0 0.0
        %1076 = vmatpush2.msra.mxu0 0.0
        %1077 = vmatprep.subr.mxu0 0.0
        %1078 = vmatpush2.msra.mxu0 0.0
        %1079 = vmatprep.subr.mxu0 0.0
        %1080 = vmatpush2.msra.mxu0 0.0
        %1081 = vmatprep.subr.mxu0 0.0
        %1082 = vmatpush2.msra.mxu0 0.0
        %1083 = vmatprep.mubr.f32.mxu0 0.0
        %1084 = vmatmul.mubr.f32.gmra.mxu0 %v1017
        %v1085 = vpop.f32.mrf.mxu0
        %v1086 = vadd.f32 0.0, %v1085
        %v1087 = vpop.f32.mrf.mxu0
        %1088 = vdwg.mxu0
        %v1089 = vld [vmem:[%s675] sm:$0xff]
        %v1090 = vld [vmem:[#allocation2 + $0x10] sm:$0xff]
        %s1091 = scalar_lea.vmem [#allocation3], 16
        %v1092 = vld [vmem:[%s1091] sm:$0xff]
        %v1094 = vsel %vm664, %v1089, 0
        %1096 = vmatprep.subr.mxu0 0.0
        %1097 = vmatpush1.msra.mxu0 0.0
        %1098 = vmatprep.subr.mxu0 0.0
        %1099 = vmatpush1.msra.mxu0 0.0
        %1100 = vmatprep.subr.mxu0 0.0
        %1101 = vmatpush1.msra.mxu0 0.0
        %1102 = vmatprep.subr.mxu0 0.0
        %1103 = vmatpush1.msra.mxu0 0.0
        %1104 = vmatprep.subr.mxu0 0.0
        %1105 = vmatpush1.msra.mxu0 0.0
        %1106 = vmatprep.subr.mxu0 0.0
        %1107 = vmatpush1.msra.mxu0 0.0
        %1108 = vmatprep.subr.mxu0 0.0
        %1109 = vmatpush1.msra.mxu0 0.0
        %1110 = vmatprep.subr.mxu0 0.0
        %1111 = vmatpush1.msra.mxu0 0.0
        %1112 = vmatprep.subr.mxu0 0.0
        %1113 = vmatpush1.msra.mxu0 0.0
        %1114 = vmatprep.subr.mxu0 0.0
        %1115 = vmatpush1.msra.mxu0 0.0
        %1116 = vmatprep.subr.mxu0 0.0
        %1117 = vmatpush1.msra.mxu0 0.0
        %1118 = vmatprep.subr.mxu0 0.0
        %1119 = vmatpush1.msra.mxu0 0.0
        %1120 = vmatprep.subr.mxu0 0.0
        %1121 = vmatpush1.msra.mxu0 0.0
        %1122 = vmatprep.subr.mxu0 0.0
        %1123 = vmatpush1.msra.mxu0 0.0
        %1124 = vmatprep.subr.mxu0 0.0
        %1125 = vmatpush1.msra.mxu0 0.0
        %1126 = vmatprep.subr.mxu0 0.0
        %1127 = vmatpush1.msra.mxu0 %v1090
        %1128 = vmatprep.subr.mxu0 0.0
        %1129 = vmatpush2.msra.mxu0 0.0
        %1130 = vmatprep.subr.mxu0 0.0
        %1131 = vmatpush2.msra.mxu0 0.0
        %1132 = vmatprep.subr.mxu0 0.0
        %1133 = vmatpush2.msra.mxu0 0.0
        %1134 = vmatprep.subr.mxu0 0.0
        %1135 = vmatpush2.msra.mxu0 0.0
        %1136 = vmatprep.subr.mxu0 0.0
        %1137 = vmatpush2.msra.mxu0 0.0
        %1138 = vmatprep.subr.mxu0 0.0
        %1139 = vmatpush2.msra.mxu0 0.0
        %1140 = vmatprep.subr.mxu0 0.0
        %1141 = vmatpush2.msra.mxu0 0.0
        %1142 = vmatprep.subr.mxu0 0.0
        %1143 = vmatpush2.msra.mxu0 0.0
        %1144 = vmatprep.subr.mxu0 0.0
        %1145 = vmatpush2.msra.mxu0 0.0
        %1146 = vmatprep.subr.mxu0 0.0
        %1147 = vmatpush2.msra.mxu0 0.0
        %1148 = vmatprep.subr.mxu0 0.0
        %1149 = vmatpush2.msra.mxu0 0.0
        %1150 = vmatprep.subr.mxu0 0.0
        %1151 = vmatpush2.msra.mxu0 0.0
        %1152 = vmatprep.subr.mxu0 0.0
        %1153 = vmatpush2.msra.mxu0 0.0
        %1154 = vmatprep.subr.mxu0 0.0
        %1155 = vmatpush2.msra.mxu0 0.0
        %1156 = vmatprep.subr.mxu0 0.0
        %1157 = vmatpush2.msra.mxu0 0.0
        %1158 = vmatprep.subr.mxu0 0.0
        %1159 = vmatpush2.msra.mxu0 0.0
        %1160 = vmatprep.mubr.f32.mxu0 0.0
        %1161 = vmatmul.mubr.f32.gmra.mxu0 %v1094
        %v1162 = vpop.f32.mrf.mxu0
        %v1163 = vadd.f32 %v687, %v1162
        %v1164 = vpop.f32.mrf.mxu0
        %1165 = vdwg.mxu0
        %v1166 = vsel %vm664, %v1163, -inf
        %1167 = vmax.xlane.f32.xlu0 %v1166
        %v1168 = vpop.xlane.xlu0 %1167
        %v1169 = vsub.f32 %v1163, %v1168
        %v1170 = vmul.f32 %v1169, 1.442695
        %v1171 = vpow.pop %v1170
        %v1172 = vsel %vm664, %v1171, 0.0
        %1173 = vadd.xlane.f32.xlu0 %v1172
        %v1174 = vpop.xlane.xlu0 %1173
        %v1175 = vrcp.pop %v1174
        %v1176 = vmul.f32 %v1171, %v1175
        %v1178 = vsel %vm664, %v1176, 0
        %1180 = vmatprep.subr.mxu0 0.0
        %1181 = vmatpush1.msra.mxu0 0.0
        %1182 = vmatprep.subr.mxu0 0.0
        %1183 = vmatpush1.msra.mxu0 0.0
        %1184 = vmatprep.subr.mxu0 0.0
        %1185 = vmatpush1.msra.mxu0 0.0
        %1186 = vmatprep.subr.mxu0 0.0
        %1187 = vmatpush1.msra.mxu0 0.0
        %1188 = vmatprep.subr.mxu0 0.0
        %1189 = vmatpush1.msra.mxu0 0.0
        %1190 = vmatprep.subr.mxu0 0.0
        %1191 = vmatpush1.msra.mxu0 0.0
        %1192 = vmatprep.subr.mxu0 0.0
        %1193 = vmatpush1.msra.mxu0 0.0
        %1194 = vmatprep.subr.mxu0 0.0
        %1195 = vmatpush1.msra.mxu0 0.0
        %1196 = vmatprep.subr.mxu0 0.0
        %1197 = vmatpush1.msra.mxu0 0.0
        %1198 = vmatprep.subr.mxu0 0.0
        %1199 = vmatpush1.msra.mxu0 0.0
        %1200 = vmatprep.subr.mxu0 0.0
        %1201 = vmatpush1.msra.mxu0 0.0
        %1202 = vmatprep.subr.mxu0 0.0
        %1203 = vmatpush1.msra.mxu0 0.0
        %1204 = vmatprep.subr.mxu0 0.0
        %1205 = vmatpush1.msra.mxu0 0.0
        %1206 = vmatprep.subr.mxu0 0.0
        %1207 = vmatpush1.msra.mxu0 0.0
        %1208 = vmatprep.subr.mxu0 0.0
        %1209 = vmatpush1.msra.mxu0 0.0
        %1210 = vmatprep.subr.mxu0 0.0
        %1211 = vmatpush1.msra.mxu0 %v1092
        %1212 = vmatprep.subr.mxu0 0.0
        %1213 = vmatpush2.msra.mxu0 0.0
        %1214 = vmatprep.subr.mxu0 0.0
        %1215 = vmatpush2.msra.mxu0 0.0
        %1216 = vmatprep.subr.mxu0 0.0
        %1217 = vmatpush2.msra.mxu0 0.0
        %1218 = vmatprep.subr.mxu0 0.0
        %1219 = vmatpush2.msra.mxu0 0.0
        %1220 = vmatprep.subr.mxu0 0.0
        %1221 = vmatpush2.msra.mxu0 0.0
        %1222 = vmatprep.subr.mxu0 0.0
        %1223 = vmatpush2.msra.mxu0 0.0
        %1224 = vmatprep.subr.mxu0 0.0
        %1225 = vmatpush2.msra.mxu0 0.0
        %1226 = vmatprep.subr.mxu0 0.0
        %1227 = vmatpush2.msra.mxu0 0.0
        %1228 = vmatprep.subr.mxu0 0.0
        %1229 = vmatpush2.msra.mxu0 0.0
        %1230 = vmatprep.subr.mxu0 0.0
        %1231 = vmatpush2.msra.mxu0 0.0
        %1232 = vmatprep.subr.mxu0 0.0
        %1233 = vmatpush2.msra.mxu0 0.0
        %1234 = vmatprep.subr.mxu0 0.0
        %1235 = vmatpush2.msra.mxu0 0.0
        %1236 = vmatprep.subr.mxu0 0.0
        %1237 = vmatpush2.msra.mxu0 0.0
        %1238 = vmatprep.subr.mxu0 0.0
        %1239 = vmatpush2.msra.mxu0 0.0
        %1240 = vmatprep.subr.mxu0 0.0
        %1241 = vmatpush2.msra.mxu0 0.0
        %1242 = vmatprep.subr.mxu0 0.0
        %1243 = vmatpush2.msra.mxu0 0.0
        %1244 = vmatprep.mubr.f32.mxu0 0.0
        %1245 = vmatmul.mubr.f32.gmra.mxu0 %v1178
        %v1246 = vpop.f32.mrf.mxu0
        %v1247 = vadd.f32 0.0, %v1246
        %v1248 = vpop.f32.mrf.mxu0
        %1249 = vdwg.mxu0
        %v1250 = vld [vmem:[%s680] sm:$0xff]
        %v1251 = vld [vmem:[#allocation2 + $0x18] sm:$0xff]
        %s1252 = scalar_lea.vmem [#allocation3], 24
        %v1253 = vld [vmem:[%s1252] sm:$0xff]
        %v1255 = vsel %vm664, %v1250, 0
        %1257 = vmatprep.subr.mxu0 0.0
        %1258 = vmatpush1.msra.mxu0 0.0
        %1259 = vmatprep.subr.mxu0 0.0
        %1260 = vmatpush1.msra.mxu0 0.0
        %1261 = vmatprep.subr.mxu0 0.0
        %1262 = vmatpush1.msra.mxu0 0.0
        %1263 = vmatprep.subr.mxu0 0.0
        %1264 = vmatpush1.msra.mxu0 0.0
        %1265 = vmatprep.subr.mxu0 0.0
        %1266 = vmatpush1.msra.mxu0 0.0
        %1267 = vmatprep.subr.mxu0 0.0
        %1268 = vmatpush1.msra.mxu0 0.0
        %1269 = vmatprep.subr.mxu0 0.0
        %1270 = vmatpush1.msra.mxu0 0.0
        %1271 = vmatprep.subr.mxu0 0.0
        %1272 = vmatpush1.msra.mxu0 0.0
        %1273 = vmatprep.subr.mxu0 0.0
        %1274 = vmatpush1.msra.mxu0 0.0
        %1275 = vmatprep.subr.mxu0 0.0
        %1276 = vmatpush1.msra.mxu0 0.0
        %1277 = vmatprep.subr.mxu0 0.0
        %1278 = vmatpush1.msra.mxu0 0.0
        %1279 = vmatprep.subr.mxu0 0.0
        %1280 = vmatpush1.msra.mxu0 0.0
        %1281 = vmatprep.subr.mxu0 0.0
        %1282 = vmatpush1.msra.mxu0 0.0
        %1283 = vmatprep.subr.mxu0 0.0
        %1284 = vmatpush1.msra.mxu0 0.0
        %1285 = vmatprep.subr.mxu0 0.0
        %1286 = vmatpush1.msra.mxu0 0.0
        %1287 = vmatprep.subr.mxu0 0.0
        %1288 = vmatpush1.msra.mxu0 %v1251
        %1289 = vmatprep.subr.mxu0 0.0
        %1290 = vmatpush2.msra.mxu0 0.0
        %1291 = vmatprep.subr.mxu0 0.0
        %1292 = vmatpush2.msra.mxu0 0.0
        %1293 = vmatprep.subr.mxu0 0.0
        %1294 = vmatpush2.msra.mxu0 0.0
        %1295 = vmatprep.subr.mxu0 0.0
        %1296 = vmatpush2.msra.mxu0 0.0
        %1297 = vmatprep.subr.mxu0 0.0
        %1298 = vmatpush2.msra.mxu0 0.0
        %1299 = vmatprep.subr.mxu0 0.0
        %1300 = vmatpush2.msra.mxu0 0.0
        %1301 = vmatprep.subr.mxu0 0.0
        %1302 = vmatpush2.msra.mxu0 0.0
        %1303 = vmatprep.subr.mxu0 0.0
        %1304 = vmatpush2.msra.mxu0 0.0
        %1305 = vmatprep.subr.mxu0 0.0
        %1306 = vmatpush2.msra.mxu0 0.0
        %1307 = vmatprep.subr.mxu0 0.0
        %1308 = vmatpush2.msra.mxu0 0.0
        %1309 = vmatprep.subr.mxu0 0.0
        %1310 = vmatpush2.msra.mxu0 0.0
        %1311 = vmatprep.subr.mxu0 0.0
        %1312 = vmatpush2.msra.mxu0 0.0
        %1313 = vmatprep.subr.mxu0 0.0
        %1314 = vmatpush2.msra.mxu0 0.0
        %1315 = vmatprep.subr.mxu0 0.0
        %1316 = vmatpush2.msra.mxu0 0.0
        %1317 = vmatprep.subr.mxu0 0.0
        %1318 = vmatpush2.msra.mxu0 0.0
        %1319 = vmatprep.subr.mxu0 0.0
        %1320 = vmatpush2.msra.mxu0 0.0
        %1321 = vmatprep.mubr.f32.mxu0 0.0
        %1322 = vmatmul.mubr.f32.gmra.mxu0 %v1255
        %v1323 = vpop.f32.mrf.mxu0
        %v1324 = vadd.f32 %v687, %v1323
        %v1325 = vpop.f32.mrf.mxu0
        %1326 = vdwg.mxu0
        %v1327 = vsel %vm664, %v1324, -inf
        %1328 = vmax.xlane.f32.xlu0 %v1327
        %v1329 = vpop.xlane.xlu0 %1328
        %v1330 = vsub.f32 %v1324, %v1329
        %v1331 = vmul.f32 %v1330, 1.442695
        %v1332 = vpow.pop %v1331
        %v1333 = vsel %vm664, %v1332, 0.0
        %1334 = vadd.xlane.f32.xlu0 %v1333
        %v1335 = vpop.xlane.xlu0 %1334
        %v1336 = vrcp.pop %v1335
        %v1337 = vmul.f32 %v1332, %v1336
        %v1339 = vsel %vm664, %v1337, 0
        %1341 = vmatprep.subr.mxu0 0.0
        %1342 = vmatpush1.msra.mxu0 0.0
        %1343 = vmatprep.subr.mxu0 0.0
        %1344 = vmatpush1.msra.mxu0 0.0
        %1345 = vmatprep.subr.mxu0 0.0
        %1346 = vmatpush1.msra.mxu0 0.0
        %1347 = vmatprep.subr.mxu0 0.0
        %1348 = vmatpush1.msra.mxu0 0.0
        %1349 = vmatprep.subr.mxu0 0.0
        %1350 = vmatpush1.msra.mxu0 0.0
        %1351 = vmatprep.subr.mxu0 0.0
        %1352 = vmatpush1.msra.mxu0 0.0
        %1353 = vmatprep.subr.mxu0 0.0
        %1354 = vmatpush1.msra.mxu0 0.0
        %1355 = vmatprep.subr.mxu0 0.0
        %1356 = vmatpush1.msra.mxu0 0.0
        %1357 = vmatprep.subr.mxu0 0.0
        %1358 = vmatpush1.msra.mxu0 0.0
        %1359 = vmatprep.subr.mxu0 0.0
        %1360 = vmatpush1.msra.mxu0 0.0
        %1361 = vmatprep.subr.mxu0 0.0
        %1362 = vmatpush1.msra.mxu0 0.0
        %1363 = vmatprep.subr.mxu0 0.0
        %1364 = vmatpush1.msra.mxu0 0.0
        %1365 = vmatprep.subr.mxu0 0.0
        %1366 = vmatpush1.msra.mxu0 0.0
        %1367 = vmatprep.subr.mxu0 0.0
        %1368 = vmatpush1.msra.mxu0 0.0
        %1369 = vmatprep.subr.mxu0 0.0
        %1370 = vmatpush1.msra.mxu0 0.0
        %1371 = vmatprep.subr.mxu0 0.0
        %1372 = vmatpush1.msra.mxu0 %v1253
        %1373 = vmatprep.subr.mxu0 0.0
        %1374 = vmatpush2.msra.mxu0 0.0
        %1375 = vmatprep.subr.mxu0 0.0
        %1376 = vmatpush2.msra.mxu0 0.0
        %1377 = vmatprep.subr.mxu0 0.0
        %1378 = vmatpush2.msra.mxu0 0.0
        %1379 = vmatprep.subr.mxu0 0.0
        %1380 = vmatpush2.msra.mxu0 0.0
        %1381 = vmatprep.subr.mxu0 0.0
        %1382 = vmatpush2.msra.mxu0 0.0
        %1383 = vmatprep.subr.mxu0 0.0
        %1384 = vmatpush2.msra.mxu0 0.0
        %1385 = vmatprep.subr.mxu0 0.0
        %1386 = vmatpush2.msra.mxu0 0.0
        %1387 = vmatprep.subr.mxu0 0.0
        %1388 = vmatpush2.msra.mxu0 0.0
        %1389 = vmatprep.subr.mxu0 0.0
        %1390 = vmatpush2.msra.mxu0 0.0
        %1391 = vmatprep.subr.mxu0 0.0
        %1392 = vmatpush2.msra.mxu0 0.0
        %1393 = vmatprep.subr.mxu0 0.0
        %1394 = vmatpush2.msra.mxu0 0.0
        %1395 = vmatprep.subr.mxu0 0.0
        %1396 = vmatpush2.msra.mxu0 0.0
        %1397 = vmatprep.subr.mxu0 0.0
        %1398 = vmatpush2.msra.mxu0 0.0
        %1399 = vmatprep.subr.mxu0 0.0
        %1400 = vmatpush2.msra.mxu0 0.0
        %1401 = vmatprep.subr.mxu0 0.0
        %1402 = vmatpush2.msra.mxu0 0.0
        %1403 = vmatprep.subr.mxu0 0.0
        %1404 = vmatpush2.msra.mxu0 0.0
        %1405 = vmatprep.mubr.f32.mxu0 0.0
        %1406 = vmatmul.mubr.f32.gmra.mxu0 %v1339
        %v1407 = vpop.f32.mrf.mxu0
        %v1408 = vadd.f32 0.0, %v1407
        %v1409 = vpop.f32.mrf.mxu0
        %1410 = vdwg.mxu0
        %1412 = vrot.lane.b32.xlu0 %v1086, 8
        %v1413 = vpop.permute.xlu0 %1412
        %1416 = vrot.lane.b32.xlu0 %v1247, 16
        %v1417 = vpop.permute.xlu0 %1416
        %1420 = vrot.lane.b32.xlu0 %v1408, 24
        %v1421 = vpop.permute.xlu0 %1420
        %v1423 = vsel %vm664, %v925, %v1413
        %vm1424 = vcmask 130048
        %v1425 = vsel %vm1424, %v1423, %v1417
        %vm1426 = vcmask 195584
        %v1427 = vsel %vm1426, %v1425, %v1421
        %1428 = vst.msk [vmem:[#allocation5] sm:$0xff] %vm590, %v1427
        %v1429 = vld [vmem:[#allocation5] sm:$0xff]
        %1430 = vst.msk [vmem:[%s420] sm:$0xff] %vm590, %v1429
        %s1431 = sand.u32 %s219, 1
        %s1432 = scalar_lea.sflag [#allocation8], %s1431
        %s1433 = sand.u32 %s219, 1
        %s1434 = smul.addr %s1433, 8
        %s1435 = scalar_lea.vmem [#allocation14], %s1434
        %s1436 = sand.u32 %s247, 1
        %s1437 = scalar_lea.sflag [#allocation16], %s1436
        %s1438 = sand.u32 %s247, 1
        %s1439 = smul.addr %s1438, 8
        %s1440 = scalar_lea.vmem [#allocation15], %s1439
        // Predicated region
        $region69: #{tpu_custom_call.1} parent=47 // pred_check
          %p1441 = pneg %p229
        $region70: #{tpu_custom_call.1} parent=47 // pred_check_branch
          %1443 = sbr.rel (%p1441) target = $region72
        $region71: #{tpu_custom_call.1} parent=47 // pred_region
          %s1445 = ssub.s32 128, 128
          %1446 = vsyncadd %s1432, %s1445
          %s1447 = sadd.s32 %s38, %s37
          %s1448 = smul.addr %s1447, 128
          %s1449 = scalar_lea.hbm %s7, %s1448
          %s1451 = sshll.u32 %s1435, 4
          %s1452 = int_to_ptr.vmem [resolvable:$true] %s1451
          %1454 = dma.vmem_to_hbm [thread:$0]  %s1452, 128, %s1449, %s1432
        $region72: #{tpu_custom_call.1} parent=47 // pred_fallthru
          _
        // Predicated region
        $region73: #{tpu_custom_call.1} parent=47 // pred_check
          %p1455 = pneg %p257
        $region74: #{tpu_custom_call.1} parent=47 // pred_check_branch
          %1457 = sbr.rel (%p1455) target = $region76
        $region75: #{tpu_custom_call.1} parent=47 // pred_region
          %s1459 = ssub.s32 128, 128
          %1460 = vsyncadd %s1437, %s1459
          %s1461 = sadd.s32 %s38, %s37
          %s1462 = smul.addr %s1461, 128
          %s1463 = scalar_lea.hbm %s8, %s1462
          %s1465 = sshll.u32 %s1440, 4
          %s1466 = int_to_ptr.vmem [resolvable:$true] %s1465
          %1468 = dma.vmem_to_hbm [thread:$0]  %s1466, 128, %s1463, %s1437
        $region76: #{tpu_custom_call.1} parent=47 // pred_fallthru
          _
      $region48: #{tpu_custom_call.1} parent=5 // pred_fallthru
        _
      %p1469 = scmp.le.s32.totalorder 2, %s28
      // Predicated region
      $region77: #{tpu_custom_call.1} parent=5 // pred_check
        %p1470 = pneg %p1469
      $region78: #{tpu_custom_call.1} parent=5 // pred_check_branch
        %1472 = sbr.rel (%p1470) target = $region80
      $region79: #{tpu_custom_call.1} parent=5 // pred_region
        %s1473 = ssub.s32 %s28, 2
        // Predicated region
        $region81: #{tpu_custom_call.1} parent=79 // pred_check
          %p1474 = pneg %p235
        $region82: #{tpu_custom_call.1} parent=79 // pred_check_branch
          %1476 = sbr.rel (%p1474) target = $region84
        $region83: #{tpu_custom_call.1} parent=79 // pred_region
          %s1477 = sand.u32 %s220, 1
          %s1478 = scalar_lea.sflag [#allocation8], %s1477
          %s1479 = sand.u32 %s220, 1
          %s1480 = smul.addr %s1479, 8
          %s1481 = scalar_lea.vmem [#allocation14], %s1480
          %1482 = dma.done %s1478, 128
        $region84: #{tpu_custom_call.1} parent=79 // pred_fallthru
          _
        // Predicated region
        $region85: #{tpu_custom_call.1} parent=79 // pred_check
          %p1483 = pneg %p263
        $region86: #{tpu_custom_call.1} parent=79 // pred_check_branch
          %1485 = sbr.rel (%p1483) target = $region88
        $region87: #{tpu_custom_call.1} parent=79 // pred_region
          %s1486 = sand.u32 %s248, 1
          %s1487 = scalar_lea.sflag [#allocation16], %s1486
          %s1488 = sand.u32 %s248, 1
          %s1489 = smul.addr %s1488, 8
          %s1490 = scalar_lea.vmem [#allocation15], %s1489
          %1491 = dma.done %s1487, 128
        $region88: #{tpu_custom_call.1} parent=79 // pred_fallthru
          _
      $region80: #{tpu_custom_call.1} parent=5 // pred_fallthru
        _
    $region6: #{tpu_custom_call.1} parent=1 // loop_footer
      %s32 = sadd.s32 1, %s28
    $region7: #{tpu_custom_call.1} parent=1 // loop_footer_branch
      %27 = sbr.rel target = $region3
    $region8: #{tpu_custom_call.1} parent=1 // loop_exit
      _
    %1492 = vsyncpa [#allocation7], 1
    %s1493 = scalar_lea.sflag [#allocation7], 1
    %1494 = vsyncpa %s1493, 1
    %1495 = vsyncpa [#allocation10], 1
    %s1496 = scalar_lea.sflag [#allocation10], 1
    %1497 = vsyncpa %s1496, 1
    %1498 = vsyncpa [#allocation13], 1
    %1499 = vsyncpa [#allocation8], 1
    %s1500 = scalar_lea.sflag [#allocation8], 1
    %1501 = vsyncpa %s1500, 1
    %1502 = vsyncpa [#allocation16], 1
    %s1503 = scalar_lea.sflag [#allocation16], 1
    %1504 = vsyncpa %s1503, 1

</llo_original>
